<compile_context>
chip_gen: v7x
topology: tpu7x:2x2x1
jax: 0.10.0
libtpu: 0.0.40
codegen_flags: <defaults>
</compile_context>

<pallas_src>
import math
import functools

import jax
import jax.numpy as jnp
from jax.experimental import pallas as pl
from jax.experimental.pallas import tpu as pltpu

LN_EPS = 1e-12               # BERT layer_norm_eps
NEG_INF = -10000.0           # additive mask value (matches the PyTorch module)
MATMUL_DTYPE = jnp.bfloat16  # MXU input dtype; accumulation stays f32

# Numerics / codegen switches ------------------------------------------------
EXACT_SOFTMAX = False        # True -> exact divide (tight parity); False -> EUP vrcp
APPROX_GELU = False          # True -> tanh GELU on the EUP (only if VALU-bound)
USE_EINSHAPE_HEADS = False   # True -> single-relayout head split via pltpu.einshape
                             # (enable after verifying lowering on the target build;
                             #  the slice/stack fallback below is the proven path and
                             #  the big splits are amortized once per batch in scratch)


# ----------------------------------------------------------------------------
# Fused decoder-layer kernel: grid = (batch, query_tile)
# ----------------------------------------------------------------------------
def _decoder_layer_kernel(
    enc_mask_ref,                                     # (1, 1, Lv) additive mask
    dec_ref, enc_ref,                                 # (1, Lt, D), (1, Lv, D)
    sa_wqkv_ref, sa_bqkv_ref,                         # self-attn fused QKV
    an1_w_ref, an1_b_ref, an1_g_ref, an1_beta_ref,    # add&norm 1
    ca_wq_ref, ca_bq_ref, ca_wkv_ref, ca_bkv_ref,     # cross-attn Q / fused KV
    an2_w_ref, an2_b_ref, an2_g_ref, an2_beta_ref,    # add&norm 2
    ff_w1_ref, ff_b1_ref, ff_w2_ref, ff_b2_ref,       # FFN linears
    an3_g_ref, an3_beta_ref,                          # add&norm 3 (LN params)
    out_ref,                                          # (1, tq, D)
    q_self_ref, k_self_ref, v_self_ref,               # (H, Lt, hd) bf16 scratch
    k_cross_ref, v_cross_ref,                         # (H, Lv, hd) bf16 scratch
    *, num_heads, head_dim, q_tile, ffn_chunk):
    qt = pl.program_id(1)
    _, Lt, D = dec_ref.shape
    Lv = enc_ref.shape[1]
    H, hd, tq = num_heads, head_dim, q_tile
    scale = 1.0 / math.sqrt(head_dim)

    def linear(a, w_ref, b_ref):
        return (jnp.dot(a.astype(MATMUL_DTYPE), w_ref[...],
                        preferred_element_type=jnp.float32)
                + b_ref[...].astype(jnp.float32))

    def layer_norm(a, g_ref, b_ref):
        mean = jnp.mean(a, axis=-1, keepdims=True)
        d = a - mean
        var = jnp.mean(d * d, axis=-1, keepdims=True)
        return (d * jax.lax.rsqrt(var + LN_EPS) * g_ref[...].astype(jnp.float32)
                + b_ref[...].astype(jnp.float32))

    def to_heads(a2d):
        # (L, H*hd) -> (H, L, hd) in bf16 for the MXU.
        L = a2d.shape[0]
        if USE_EINSHAPE_HEADS:
            return pltpu.einshape("lhd->hld",
                                  a2d.reshape(L, H, hd)).astype(MATMUL_DTYPE)
        return jnp.stack([a2d[:, h * hd:(h + 1) * hd] for h in range(H)],
                         axis=0).astype(MATMUL_DTYPE)

    def from_heads(ctx):
        # (H, Lq, hd) -> (Lq, H*hd): PyTorch permute(0,2,1,3).view layout.
        if USE_EINSHAPE_HEADS:
            Lq = ctx.shape[1]
            return pltpu.einshape("hqd->qhd", ctx).reshape(Lq, H * hd)
        return jnp.concatenate([ctx[h] for h in range(H)], axis=-1)

    def softmax_lastdim(s):
        s = s - jnp.max(s, axis=-1, keepdims=True)
        p = jnp.exp(s)
        denom = jnp.sum(p, axis=-1, keepdims=True)
        if EXACT_SOFTMAX:
            return p / denom
        return p * pl.reciprocal(denom, approx=True)

    def gelu(h):
        if APPROX_GELU:
            return jax.nn.gelu(h, approximate=True)
        return 0.5 * h * (1.0 + jax.lax.erf(h * (1.0 / math.sqrt(2.0))))

    # -- query-tile-invariant work: once per batch element, persists in VMEM
    #    scratch across the (arbitrary) query-tile axis. --------------------
    @pl.when(qt == 0)
    def _precompute():
        x_full = dec_ref[0].astype(jnp.float32)                    # (Lt, D)
        qkv = linear(x_full, sa_wqkv_ref, sa_bqkv_ref)             # (Lt, 3D)
        q_self_ref[...] = to_heads(qkv[:, :D] * scale)             # scale folded into Q
        k_self_ref[...] = to_heads(qkv[:, D:2 * D])
        v_self_ref[...] = to_heads(qkv[:, 2 * D:])
        enc_f = enc_ref[0].astype(jnp.float32)                     # (Lv, D)
        kv = linear(enc_f, ca_wkv_ref, ca_bkv_ref)                 # (Lv, 2D)
        k_cross_ref[...] = to_heads(kv[:, :D])
        v_cross_ref[...] = to_heads(kv[:, D:])

    # -- per-query-tile work -------------------------------------------------
    q0 = pl.multiple_of(qt * tq, tq)
    x_tile = dec_ref[0, pl.ds(q0, tq), :].astype(jnp.float32)      # (tq, D)

    # self attention (causal mask built in-kernel; the PyTorch module applies
    # only the triangular mask, no decoder key-padding mask)
    row = q0 + jax.lax.broadcasted_iota(jnp.int32, (tq, Lt), 0)
    col = jax.lax.broadcasted_iota(jnp.int32, (tq, Lt), 1)
    tri_add = jnp.where(col <= row, 0.0, NEG_INF).astype(jnp.float32)
    qh = q_self_ref[:, pl.ds(q0, tq), :]                           # (H, tq, hd)
    s = (jnp.einsum('hqd,hkd->hqk', qh, k_self_ref[...],
                    preferred_element_type=jnp.float32) + tri_add[None])
    p = softmax_lastdim(s)                                         # attn dropout: identity
    ctx = jnp.einsum('hqk,hkd->hqd', p.astype(MATMUL_DTYPE), v_self_ref[...],
                     preferred_element_type=jnp.float32)
    y1 = layer_norm(linear(from_heads(ctx), an1_w_ref, an1_b_ref) + x_tile,
                    an1_g_ref, an1_beta_ref)

    # decoder-encoder cross attention (encoder padding mask broadcast in-kernel)
    enc_add = enc_mask_ref[...].astype(jnp.float32)                # (1, 1, Lv)
    q2h = to_heads(linear(y1, ca_wq_ref, ca_bq_ref) * scale)       # (H, tq, hd)
    s2 = (jnp.einsum('hqd,hkd->hqk', q2h, k_cross_ref[...],
                     preferred_element_type=jnp.float32) + enc_add)
    p2 = softmax_lastdim(s2)
    ctx2 = jnp.einsum('hqk,hkd->hqd', p2.astype(MATMUL_DTYPE), v_cross_ref[...],
                      preferred_element_type=jnp.float32)
    y2 = layer_norm(linear(from_heads(ctx2), an2_w_ref, an2_b_ref) + y1,
                    an2_g_ref, an2_beta_ref)

    # feed-forward, tiled over the intermediate dimension Di
    Di = ff_w1_ref.shape[1]
    n_chunks = Di // ffn_chunk
    if n_chunks == 1:
        h1 = gelu(linear(y2, ff_w1_ref, ff_b1_ref))
        ffn = linear(h1, ff_w2_ref, ff_b2_ref)
    else:
        y2_bf = y2.astype(MATMUL_DTYPE)

        def body(ci, acc):
            c0 = pl.multiple_of(ci * ffn_chunk, ffn_chunk)
            hc = (jnp.dot(y2_bf, ff_w1_ref[:, pl.ds(c0, ffn_chunk)],
                          preferred_element_type=jnp.float32)
                  + ff_b1_ref[:, pl.ds(c0, ffn_chunk)].astype(jnp.float32))
            hc = gelu(hc)
            return acc + jnp.dot(hc.astype(MATMUL_DTYPE),
                                 ff_w2_ref[pl.ds(c0, ffn_chunk), :],
                                 preferred_element_type=jnp.float32)

        ffn = (jax.lax.fori_loop(0, n_chunks, body,
                                 jnp.zeros((tq, D), jnp.float32))
               + ff_b2_ref[...].astype(jnp.float32))

    y3 = layer_norm(ffn + y2, an3_g_ref, an3_beta_ref)
    out_ref[0] = y3.astype(out_ref.dtype)


# ----------------------------------------------------------------------------
# Tiling helpers
# ----------------------------------------------------------------------------
def _pick_q_tile(Lt, target=256):
    """Largest multiple of 8 <= target that divides Lt (or Lt itself)."""
    if Lt <= target:
        return Lt
    t = target - (target % 8)
    while t >= 8:
        if Lt % t == 0:
            return t
        t -= 8
    return Lt


def _pick_ffn_chunk(Di, target=512):
    """Largest 128-aligned chunk <= target that divides Di (or Di itself)."""
    if Di <= target:
        return Di
    c = target - (target % 128)
    while c >= 128:
        if Di % c == 0:
            return c
        c -= 128
    return Di


# ----------------------------------------------------------------------------
# pallas_call wrapper: one fused call per decoder layer
# ----------------------------------------------------------------------------
def decoder_layer(dec, enc, enc_add_mask, lp, num_heads, q_tile=None):
    """dec:(N,Lt,D)  enc:(N,Lv,D)  enc_add_mask:(N,1,Lv) additive."""
    N, Lt, D = dec.shape
    Lv = enc.shape[1]
    Di = lp["ffn"]["w1"].shape[1]
    head_dim = D // num_heads
    tq = _pick_q_tile(Lt) if q_tile is None else q_tile
    assert Lt % tq == 0
    n_qt = Lt // tq
    ffn_chunk = _pick_ffn_chunk(Di)

    kernel = functools.partial(_decoder_layer_kernel, num_heads=num_heads,
                               head_dim=head_dim, q_tile=tq, ffn_chunk=ffn_chunk)

    weights = (lp["self_attn"]["wqkv"], lp["self_attn"]["bqkv"],
               lp["add_norm_1"]["w"], lp["add_norm_1"]["b"],
               lp["add_norm_1"]["gamma"], lp["add_norm_1"]["beta"],
               lp["cross_attn"]["wq"], lp["cross_attn"]["bq"],
               lp["cross_attn"]["wkv"], lp["cross_attn"]["bkv"],
               lp["add_norm_2"]["w"], lp["add_norm_2"]["b"],
               lp["add_norm_2"]["gamma"], lp["add_norm_2"]["beta"],
               lp["ffn"]["w1"], lp["ffn"]["b1"],
               lp["ffn"]["w2"], lp["ffn"]["b2"],
               lp["ffn"]["gamma"], lp["ffn"]["beta"])

    # ---- VMEM budget: single-buffered resident weights + double-buffered
    #      activation blocks + persistent head scratch + f32 working set ----
    def _rup(x, m):
        return (x + m - 1) // m * m

    itemsize = dec.dtype.itemsize
    weight_bytes = sum(int(w.size) * w.dtype.itemsize for w in weights)
    act_bytes = 2 * (Lt * D + Lv * D + tq * D) * itemsize + 2 * Lv * 4
    pad_hd = _rup(head_dim, 128)
    scratch_bytes = 2 * (3 * num_heads * _rup(Lt, 8)
                         + 2 * num_heads * _rup(Lv, 8)) * pad_hd
    work_bytes = 4 * (2 * num_heads * tq * max(Lt, Lv)
                      + 8 * tq * max(D, ffn_chunk))
    vmem_limit = int(1.25 * (weight_bytes + act_bytes + scratch_bytes + work_bytes))
    vmem_limit = max(32 << 20, min(vmem_limit, 100 << 20))

    flops = 2 * N * (Lt * D * 3 * D          # self QKV projection
                     + 2 * Lt * Lt * D       # self scores + context
                     + Lt * D * D            # add&norm 1 projection
                     + Lt * D * D            # cross Q projection
                     + Lv * D * 2 * D        # cross fused KV projection
                     + 2 * Lt * Lv * D       # cross scores + context
                     + Lt * D * D            # add&norm 2 projection
                     + 2 * Lt * D * Di)      # FFN
    transcendentals = N * (num_heads * Lt * (Lt + Lv) + Lt * Di)
    operands = (enc_add_mask, dec, enc) + weights
    bytes_accessed = (sum(int(a.size) * a.dtype.itemsize for a in operands)
                      + N * Lt * D * itemsize)

    # Grid-invariant weights: whole-array, single-buffered VMEM residents
    # (no per-step pipelining / no double-buffer).
    wspec = pl.BlockSpec(memory_space=pltpu.MemorySpace.VMEM)

    return pl.pallas_call(
        kernel,
        out_shape=jax.ShapeDtypeStruct((N, Lt, D), dec.dtype),
        grid=(N, n_qt),
        in_specs=[
            pl.BlockSpec((1, 1, Lv), lambda n, q: (n, 0, 0)),   # enc padding mask
            pl.BlockSpec((1, Lt, D), lambda n, q: (n, 0, 0)),   # decoder hidden (full seq)
            pl.BlockSpec((1, Lv, D), lambda n, q: (n, 0, 0)),   # encoder outputs
        ] + [wspec] * len(weights),
        out_specs=pl.BlockSpec((1, tq, D), lambda n, q: (n, q, 0)),
        scratch_shapes=[
            pltpu.VMEM((num_heads, Lt, head_dim), MATMUL_DTYPE),   # self Q (pre-scaled)
            pltpu.VMEM((num_heads, Lt, head_dim), MATMUL_DTYPE),   # self K
            pltpu.VMEM((num_heads, Lt, head_dim), MATMUL_DTYPE),   # self V
            pltpu.VMEM((num_heads, Lv, head_dim), MATMUL_DTYPE),   # cross K
            pltpu.VMEM((num_heads, Lv, head_dim), MATMUL_DTYPE),   # cross V
        ],
        compiler_params=pltpu.CompilerParams(
            # batch axis parallel (megacore); query-tile axis carries the
            # per-batch K/V scratch -> "arbitrary".
            dimension_semantics=("parallel", "arbitrary"),
            vmem_limit_bytes=vmem_limit),
        cost_estimate=pl.CostEstimate(flops=flops,
                                      transcendentals=transcendentals,
                                      bytes_accessed=bytes_accessed),
    )(*operands)


# ----------------------------------------------------------------------------
# Decoder forward (glue) -- mirrors BertDecoder.forward semantics
# ----------------------------------------------------------------------------
def bert_decoder(dec_hidden_states, enc_outputs, enc_mask, params, num_heads,
                 output_all_encoded_layers=False):
    """dec_hidden_states:(N,Lt,D)  enc_outputs:(N,Lv,D)  enc_mask:(N,Lv) in {0,1}."""
    # Encoder key-padding mask -> small additive (N,1,Lv); broadcast in-kernel.
    enc_add = ((1.0 - enc_mask.astype(jnp.float32)) * NEG_INF)[:, None, :]

    all_encoder_layers = []
    x = dec_hidden_states
    for lp in params:
        x = decoder_layer(x, enc_outputs, enc_add, lp, num_heads)
        if output_all_encoded_layers:
            all_encoder_layers.append(x)
    if not output_all_encoded_layers:
        all_encoder_layers.append(x)
    return all_encoder_layers


# ----------------------------------------------------------------------------
# Deterministic synthetic parameter init (BERT-style N(0, 0.02), LN gamma=1 beta=0)
# Matmul weights stored pre-transposed as (in, out) in bf16; biases/LN in f32.
# ----------------------------------------------------------------------------
def init_params(key, num_layers, hidden, intermediate):
    def w(k, din, dout):
        return (jax.random.normal(k, (din, dout), jnp.float32) * 0.02
                ).astype(MATMUL_DTYPE)

    def b(k, dout):
        return jax.random.normal(k, (1, dout), jnp.float32) * 0.02

    def ln():
        return {"gamma": jnp.ones((1, hidden), jnp.float32),
                "beta": jnp.zeros((1, hidden), jnp.float32)}

    params = []
    for lk in jax.random.split(key, num_layers):
        ks = jax.random.split(lk, 14)
        params.append({
            "self_attn": {"wqkv": w(ks[0], hidden, 3 * hidden),
                          "bqkv": b(ks[1], 3 * hidden)},
            "add_norm_1": {"w": w(ks[2], hidden, hidden),
                           "b": b(ks[3], hidden), **ln()},
            "cross_attn": {"wq": w(ks[4], hidden, hidden),
                           "bq": b(ks[5], hidden),
                           "wkv": w(ks[6], hidden, 2 * hidden),
                           "bkv": b(ks[7], 2 * hidden)},
            "add_norm_2": {"w": w(ks[8], hidden, hidden),
                           "b": b(ks[9], hidden), **ln()},
            "ffn": {"w1": w(ks[10], hidden, intermediate),
                    "b1": b(ks[11], intermediate),
                    "w2": w(ks[12], intermediate, hidden),
                    "b2": b(ks[13], hidden), **ln()},
        })
    return params


# ----------------------------------------------------------------------------
if __name__ == "__main__":
    N, Lt, Lv = 2, 8, 16          # batch, decoder length, encoder length
    D, H, Di = 32, 4, 64          # hidden, heads, intermediate
    NUM_LAYERS = 2
    # NOTE: real BERT shapes (D=768/1024, Di=3072/4096, Lt=512) are multiples of
    # 128 / 8 and exercise the multi-tile / chunked-FFN paths; these toy shapes
    # collapse to a single query tile and a single FFN chunk (correctness path).

    key = jax.random.PRNGKey(0)
    k_dec, k_enc, k_mask, k_param = jax.random.split(key, 4)
    dec_hidden_states = jax.random.normal(k_dec, (N, Lt, D), jnp.float32)
    enc_outputs = jax.random.normal(k_enc, (N, Lv, D), jnp.float32)
    enc_mask = (jax.random.uniform(k_mask, (N, Lv)) > 0.2).astype(jnp.float32)

    params = init_params(k_param, NUM_LAYERS, D, Di)

    outs = bert_decoder(dec_hidden_states, enc_outputs, enc_mask, params, H)
    jax.block_until_ready(outs)
    assert outs[-1].shape == (N, Lt, D)
    print("KERNEL_OK")
</pallas_src>

<mosaic_0001>
module attributes {stable_mosaic.version = 11 : i64} {
  func.func @_decoder_layer_kernel(%arg0: i32, %arg1: i32, %arg2: memref<1x1x16xf32, #tpu.memory_space<vmem>>, %arg3: memref<1x8x32xf32, #tpu.memory_space<vmem>>, %arg4: memref<1x16x32xf32, #tpu.memory_space<vmem>>, %arg5: memref<32x96xbf16, #tpu.memory_space<vmem>>, %arg6: memref<1x96xf32, #tpu.memory_space<vmem>>, %arg7: memref<32x32xbf16, #tpu.memory_space<vmem>>, %arg8: memref<1x32xf32, #tpu.memory_space<vmem>>, %arg9: memref<1x32xf32, #tpu.memory_space<vmem>>, %arg10: memref<1x32xf32, #tpu.memory_space<vmem>>, %arg11: memref<32x32xbf16, #tpu.memory_space<vmem>>, %arg12: memref<1x32xf32, #tpu.memory_space<vmem>>, %arg13: memref<32x64xbf16, #tpu.memory_space<vmem>>, %arg14: memref<1x64xf32, #tpu.memory_space<vmem>>, %arg15: memref<32x32xbf16, #tpu.memory_space<vmem>>, %arg16: memref<1x32xf32, #tpu.memory_space<vmem>>, %arg17: memref<1x32xf32, #tpu.memory_space<vmem>>, %arg18: memref<1x32xf32, #tpu.memory_space<vmem>>, %arg19: memref<32x64xbf16, #tpu.memory_space<vmem>>, %arg20: memref<1x64xf32, #tpu.memory_space<vmem>>, %arg21: memref<64x32xbf16, #tpu.memory_space<vmem>>, %arg22: memref<1x32xf32, #tpu.memory_space<vmem>>, %arg23: memref<1x32xf32, #tpu.memory_space<vmem>>, %arg24: memref<1x32xf32, #tpu.memory_space<vmem>>, %arg25: memref<1x8x32xf32, #tpu.memory_space<vmem>>, %arg26: memref<4x8x8xbf16, #tpu.memory_space<vmem>>, %arg27: memref<4x8x8xbf16, #tpu.memory_space<vmem>>, %arg28: memref<4x8x8xbf16, #tpu.memory_space<vmem>>, %arg29: memref<4x16x8xbf16, #tpu.memory_space<vmem>>, %arg30: memref<4x16x8xbf16, #tpu.memory_space<vmem>>) attributes {dimension_semantics = [#tpu.dimension_semantics<parallel>, #tpu.dimension_semantics<arbitrary>], iteration_bounds = array<i64: 2, 1>, scalar_prefetch = 0 : i64, scratch_operands = 5 : i64, tpu.core_type = #tpu.core_type<tc>, window_params = [{transform_indices = @transform_0, window_bounds = array<i64: 1, 1, 16>}, {transform_indices = @transform_1, window_bounds = array<i64: 1, 8, 32>}, {transform_indices = @transform_2, window_bounds = array<i64: 1, 16, 32>}, {pipeline_mode = #tpu.pipeline_mode<synchronous>, transform_indices = @transform_3, window_bounds = array<i64: 32, 96>}, {pipeline_mode = #tpu.pipeline_mode<synchronous>, transform_indices = @transform_4, window_bounds = array<i64: 1, 96>}, {pipeline_mode = #tpu.pipeline_mode<synchronous>, transform_indices = @transform_5, window_bounds = array<i64: 32, 32>}, {pipeline_mode = #tpu.pipeline_mode<synchronous>, transform_indices = @transform_6, window_bounds = array<i64: 1, 32>}, {pipeline_mode = #tpu.pipeline_mode<synchronous>, transform_indices = @transform_7, window_bounds = array<i64: 1, 32>}, {pipeline_mode = #tpu.pipeline_mode<synchronous>, transform_indices = @transform_8, window_bounds = array<i64: 1, 32>}, {pipeline_mode = #tpu.pipeline_mode<synchronous>, transform_indices = @transform_9, window_bounds = array<i64: 32, 32>}, {pipeline_mode = #tpu.pipeline_mode<synchronous>, transform_indices = @transform_10, window_bounds = array<i64: 1, 32>}, {pipeline_mode = #tpu.pipeline_mode<synchronous>, transform_indices = @transform_11, window_bounds = array<i64: 32, 64>}, {pipeline_mode = #tpu.pipeline_mode<synchronous>, transform_indices = @transform_12, window_bounds = array<i64: 1, 64>}, {pipeline_mode = #tpu.pipeline_mode<synchronous>, transform_indices = @transform_13, window_bounds = array<i64: 32, 32>}, {pipeline_mode = #tpu.pipeline_mode<synchronous>, transform_indices = @transform_14, window_bounds = array<i64: 1, 32>}, {pipeline_mode = #tpu.pipeline_mode<synchronous>, transform_indices = @transform_15, window_bounds = array<i64: 1, 32>}, {pipeline_mode = #tpu.pipeline_mode<synchronous>, transform_indices = @transform_16, window_bounds = array<i64: 1, 32>}, {pipeline_mode = #tpu.pipeline_mode<synchronous>, transform_indices = @transform_17, window_bounds = array<i64: 32, 64>}, {pipeline_mode = #tpu.pipeline_mode<synchronous>, transform_indices = @transform_18, window_bounds = array<i64: 1, 64>}, {pipeline_mode = #tpu.pipeline_mode<synchronous>, transform_indices = @transform_19, window_bounds = array<i64: 64, 32>}, {pipeline_mode = #tpu.pipeline_mode<synchronous>, transform_indices = @transform_20, window_bounds = array<i64: 1, 32>}, {pipeline_mode = #tpu.pipeline_mode<synchronous>, transform_indices = @transform_21, window_bounds = array<i64: 1, 32>}, {pipeline_mode = #tpu.pipeline_mode<synchronous>, transform_indices = @transform_22, window_bounds = array<i64: 1, 32>}, {transform_indices = @transform_23, window_bounds = array<i64: 1, 8, 32>}]} {
    %c0_i32 = arith.constant 0 : i32
    %0 = arith.cmpi eq, %arg1, %c0_i32 : i32
    %1 = arith.extui %0 : i1 to i32
    %c0_i32_0 = arith.constant 0 : i32
    %2 = arith.cmpi ne, %1, %c0_i32_0 : i32
    scf.if %2 {
      %c0_87 = arith.constant 0 : index
      %c0_88 = arith.constant 0 : index
      %c0_89 = arith.constant 0 : index
      %194 = vector.load %arg3[%c0_87, %c0_88, %c0_89] : memref<1x8x32xf32, #tpu.memory_space<vmem>>, vector<1x8x32xf32>
      %195 = vector.shape_cast %194 : vector<1x8x32xf32> to vector<8x32xf32>
      %196 = arith.truncf %195 : vector<8x32xf32> to vector<8x32xbf16>
      %c0_90 = arith.constant 0 : index
      %c0_91 = arith.constant 0 : index
      %197 = vector.load %arg5[%c0_90, %c0_91] : memref<32x96xbf16, #tpu.memory_space<vmem>>, vector<32x96xbf16>
      %cst_92 = arith.constant dense<0.000000e+00> : vector<8x96xf32>
      %198 = tpu.matmul %196, %197, %cst_92 {dimension_numbers = #tpu.dot_dimension_numbers<[1], [0], [0], [1], [0, 0, 1, 1], [], []>} : vector<8x32xbf16>, vector<32x96xbf16>, vector<8x96xf32> -> vector<8x96xf32>
      %c0_93 = arith.constant 0 : index
      %c0_94 = arith.constant 0 : index
      %199 = vector.load %arg6[%c0_93, %c0_94] : memref<1x96xf32, #tpu.memory_space<vmem>>, vector<1x96xf32>
      %200 = vector.broadcast %199 : vector<1x96xf32> to vector<8x96xf32>
      %201 = arith.addf %198, %200 : vector<8x96xf32>
      %202 = vector.extract_strided_slice %201 {offsets = [0, 0], sizes = [8, 32], strides = [1, 1]} : vector<8x96xf32> to vector<8x32xf32>
      %cst_95 = arith.constant 0.353553385 : f32
      %203 = vector.broadcast %cst_95 : f32 to vector<8x32xf32>
      %204 = arith.mulf %202, %203 : vector<8x32xf32>
      %205 = vector.extract_strided_slice %204 {offsets = [0, 0], sizes = [8, 8], strides = [1, 1]} : vector<8x32xf32> to vector<8x8xf32>
      %206 = vector.extract_strided_slice %204 {offsets = [0, 8], sizes = [8, 8], strides = [1, 1]} : vector<8x32xf32> to vector<8x8xf32>
      %207 = vector.extract_strided_slice %204 {offsets = [0, 16], sizes = [8, 8], strides = [1, 1]} : vector<8x32xf32> to vector<8x8xf32>
      %208 = vector.extract_strided_slice %204 {offsets = [0, 24], sizes = [8, 8], strides = [1, 1]} : vector<8x32xf32> to vector<8x8xf32>
      %209 = vector.shape_cast %205 : vector<8x8xf32> to vector<1x8x8xf32>
      %210 = vector.shape_cast %206 : vector<8x8xf32> to vector<1x8x8xf32>
      %211 = vector.shape_cast %207 : vector<8x8xf32> to vector<1x8x8xf32>
      %212 = vector.shape_cast %208 : vector<8x8xf32> to vector<1x8x8xf32>
      %213 = tpu.concatenate %209, %210, %211, %212 in 0 : vector<1x8x8xf32>, vector<1x8x8xf32>, vector<1x8x8xf32>, vector<1x8x8xf32> -> vector<4x8x8xf32>
      %214 = arith.truncf %213 : vector<4x8x8xf32> to vector<4x8x8xbf16>
      %c0_96 = arith.constant 0 : index
      %c0_97 = arith.constant 0 : index
      %c0_98 = arith.constant 0 : index
      %215 = vector.load %arg26[%c0_96, %c0_97, %c0_98] : memref<4x8x8xbf16, #tpu.memory_space<vmem>>, vector<4x8x8xbf16>
      tpu.vector_store %arg26[%c0_96, %c0_97, %c0_98], %214 {strides = array<i32>} : memref<4x8x8xbf16, #tpu.memory_space<vmem>>, vector<4x8x8xbf16>,
      %216 = vector.extract_strided_slice %201 {offsets = [0, 32], sizes = [8, 32], strides = [1, 1]} : vector<8x96xf32> to vector<8x32xf32>
      %217 = vector.extract_strided_slice %216 {offsets = [0, 0], sizes = [8, 8], strides = [1, 1]} : vector<8x32xf32> to vector<8x8xf32>
      %218 = vector.extract_strided_slice %216 {offsets = [0, 8], sizes = [8, 8], strides = [1, 1]} : vector<8x32xf32> to vector<8x8xf32>
      %219 = vector.extract_strided_slice %216 {offsets = [0, 16], sizes = [8, 8], strides = [1, 1]} : vector<8x32xf32> to vector<8x8xf32>
      %220 = vector.extract_strided_slice %216 {offsets = [0, 24], sizes = [8, 8], strides = [1, 1]} : vector<8x32xf32> to vector<8x8xf32>
      %221 = vector.shape_cast %217 : vector<8x8xf32> to vector<1x8x8xf32>
      %222 = vector.shape_cast %218 : vector<8x8xf32> to vector<1x8x8xf32>
      %223 = vector.shape_cast %219 : vector<8x8xf32> to vector<1x8x8xf32>
      %224 = vector.shape_cast %220 : vector<8x8xf32> to vector<1x8x8xf32>
      %225 = tpu.concatenate %221, %222, %223, %224 in 0 : vector<1x8x8xf32>, vector<1x8x8xf32>, vector<1x8x8xf32>, vector<1x8x8xf32> -> vector<4x8x8xf32>
      %226 = arith.truncf %225 : vector<4x8x8xf32> to vector<4x8x8xbf16>
      %c0_99 = arith.constant 0 : index
      %c0_100 = arith.constant 0 : index
      %c0_101 = arith.constant 0 : index
      %227 = vector.load %arg27[%c0_99, %c0_100, %c0_101] : memref<4x8x8xbf16, #tpu.memory_space<vmem>>, vector<4x8x8xbf16>
      tpu.vector_store %arg27[%c0_99, %c0_100, %c0_101], %226 {strides = array<i32>} : memref<4x8x8xbf16, #tpu.memory_space<vmem>>, vector<4x8x8xbf16>,
      %228 = vector.extract_strided_slice %201 {offsets = [0, 64], sizes = [8, 32], strides = [1, 1]} : vector<8x96xf32> to vector<8x32xf32>
      %229 = vector.extract_strided_slice %228 {offsets = [0, 0], sizes = [8, 8], strides = [1, 1]} : vector<8x32xf32> to vector<8x8xf32>
      %230 = vector.extract_strided_slice %228 {offsets = [0, 8], sizes = [8, 8], strides = [1, 1]} : vector<8x32xf32> to vector<8x8xf32>
      %231 = vector.extract_strided_slice %228 {offsets = [0, 16], sizes = [8, 8], strides = [1, 1]} : vector<8x32xf32> to vector<8x8xf32>
      %232 = vector.extract_strided_slice %228 {offsets = [0, 24], sizes = [8, 8], strides = [1, 1]} : vector<8x32xf32> to vector<8x8xf32>
      %233 = vector.shape_cast %229 : vector<8x8xf32> to vector<1x8x8xf32>
      %234 = vector.shape_cast %230 : vector<8x8xf32> to vector<1x8x8xf32>
      %235 = vector.shape_cast %231 : vector<8x8xf32> to vector<1x8x8xf32>
      %236 = vector.shape_cast %232 : vector<8x8xf32> to vector<1x8x8xf32>
      %237 = tpu.concatenate %233, %234, %235, %236 in 0 : vector<1x8x8xf32>, vector<1x8x8xf32>, vector<1x8x8xf32>, vector<1x8x8xf32> -> vector<4x8x8xf32>
      %238 = arith.truncf %237 : vector<4x8x8xf32> to vector<4x8x8xbf16>
      %c0_102 = arith.constant 0 : index
      %c0_103 = arith.constant 0 : index
      %c0_104 = arith.constant 0 : index
      %239 = vector.load %arg28[%c0_102, %c0_103, %c0_104] : memref<4x8x8xbf16, #tpu.memory_space<vmem>>, vector<4x8x8xbf16>
      tpu.vector_store %arg28[%c0_102, %c0_103, %c0_104], %238 {strides = array<i32>} : memref<4x8x8xbf16, #tpu.memory_space<vmem>>, vector<4x8x8xbf16>,
      %c0_105 = arith.constant 0 : index
      %c0_106 = arith.constant 0 : index
      %c0_107 = arith.constant 0 : index
      %240 = vector.load %arg4[%c0_105, %c0_106, %c0_107] : memref<1x16x32xf32, #tpu.memory_space<vmem>>, vector<1x16x32xf32>
      %241 = vector.shape_cast %240 : vector<1x16x32xf32> to vector<16x32xf32>
      %242 = arith.truncf %241 : vector<16x32xf32> to vector<16x32xbf16>
      %c0_108 = arith.constant 0 : index
      %c0_109 = arith.constant 0 : index
      %243 = vector.load %arg13[%c0_108, %c0_109] : memref<32x64xbf16, #tpu.memory_space<vmem>>, vector<32x64xbf16>
      %cst_110 = arith.constant dense<0.000000e+00> : vector<16x64xf32>
      %244 = tpu.matmul %242, %243, %cst_110 {dimension_numbers = #tpu.dot_dimension_numbers<[1], [0], [0], [1], [0, 0, 1, 1], [], []>} : vector<16x32xbf16>, vector<32x64xbf16>, vector<16x64xf32> -> vector<16x64xf32>
      %c0_111 = arith.constant 0 : index
      %c0_112 = arith.constant 0 : index
      %245 = vector.load %arg14[%c0_111, %c0_112] : memref<1x64xf32, #tpu.memory_space<vmem>>, vector<1x64xf32>
      %246 = vector.broadcast %245 : vector<1x64xf32> to vector<16x64xf32>
      %247 = arith.addf %244, %246 : vector<16x64xf32>
      %248 = vector.extract_strided_slice %247 {offsets = [0, 0], sizes = [16, 32], strides = [1, 1]} : vector<16x64xf32> to vector<16x32xf32>
      %249 = vector.extract_strided_slice %248 {offsets = [0, 0], sizes = [16, 8], strides = [1, 1]} : vector<16x32xf32> to vector<16x8xf32>
      %250 = vector.extract_strided_slice %248 {offsets = [0, 8], sizes = [16, 8], strides = [1, 1]} : vector<16x32xf32> to vector<16x8xf32>
      %251 = vector.extract_strided_slice %248 {offsets = [0, 16], sizes = [16, 8], strides = [1, 1]} : vector<16x32xf32> to vector<16x8xf32>
      %252 = vector.extract_strided_slice %248 {offsets = [0, 24], sizes = [16, 8], strides = [1, 1]} : vector<16x32xf32> to vector<16x8xf32>
      %253 = vector.shape_cast %249 : vector<16x8xf32> to vector<1x16x8xf32>
      %254 = vector.shape_cast %250 : vector<16x8xf32> to vector<1x16x8xf32>
      %255 = vector.shape_cast %251 : vector<16x8xf32> to vector<1x16x8xf32>
      %256 = vector.shape_cast %252 : vector<16x8xf32> to vector<1x16x8xf32>
      %257 = tpu.concatenate %253, %254, %255, %256 in 0 : vector<1x16x8xf32>, vector<1x16x8xf32>, vector<1x16x8xf32>, vector<1x16x8xf32> -> vector<4x16x8xf32>
      %258 = arith.truncf %257 : vector<4x16x8xf32> to vector<4x16x8xbf16>
      %c0_113 = arith.constant 0 : index
      %c0_114 = arith.constant 0 : index
      %c0_115 = arith.constant 0 : index
      %259 = vector.load %arg29[%c0_113, %c0_114, %c0_115] : memref<4x16x8xbf16, #tpu.memory_space<vmem>>, vector<4x16x8xbf16>
      tpu.vector_store %arg29[%c0_113, %c0_114, %c0_115], %258 {strides = array<i32>} : memref<4x16x8xbf16, #tpu.memory_space<vmem>>, vector<4x16x8xbf16>,
      %260 = vector.extract_strided_slice %247 {offsets = [0, 32], sizes = [16, 32], strides = [1, 1]} : vector<16x64xf32> to vector<16x32xf32>
      %261 = vector.extract_strided_slice %260 {offsets = [0, 0], sizes = [16, 8], strides = [1, 1]} : vector<16x32xf32> to vector<16x8xf32>
      %262 = vector.extract_strided_slice %260 {offsets = [0, 8], sizes = [16, 8], strides = [1, 1]} : vector<16x32xf32> to vector<16x8xf32>
      %263 = vector.extract_strided_slice %260 {offsets = [0, 16], sizes = [16, 8], strides = [1, 1]} : vector<16x32xf32> to vector<16x8xf32>
      %264 = vector.extract_strided_slice %260 {offsets = [0, 24], sizes = [16, 8], strides = [1, 1]} : vector<16x32xf32> to vector<16x8xf32>
      %265 = vector.shape_cast %261 : vector<16x8xf32> to vector<1x16x8xf32>
      %266 = vector.shape_cast %262 : vector<16x8xf32> to vector<1x16x8xf32>
      %267 = vector.shape_cast %263 : vector<16x8xf32> to vector<1x16x8xf32>
      %268 = vector.shape_cast %264 : vector<16x8xf32> to vector<1x16x8xf32>
      %269 = tpu.concatenate %265, %266, %267, %268 in 0 : vector<1x16x8xf32>, vector<1x16x8xf32>, vector<1x16x8xf32>, vector<1x16x8xf32> -> vector<4x16x8xf32>
      %270 = arith.truncf %269 : vector<4x16x8xf32> to vector<4x16x8xbf16>
      %c0_116 = arith.constant 0 : index
      %c0_117 = arith.constant 0 : index
      %c0_118 = arith.constant 0 : index
      %271 = vector.load %arg30[%c0_116, %c0_117, %c0_118] : memref<4x16x8xbf16, #tpu.memory_space<vmem>>, vector<4x16x8xbf16>
      tpu.vector_store %arg30[%c0_116, %c0_117, %c0_118], %270 {strides = array<i32>} : memref<4x16x8xbf16, #tpu.memory_space<vmem>>, vector<4x16x8xbf16>,
    } else {
    }
    %c8_i32 = arith.constant 8 : i32
    %3 = arith.muli %arg1, %c8_i32 : i32
    %4 = tpu.assume_multiple %3, 8 : i32
    %c0 = arith.constant 0 : index
    %5 = arith.index_cast %4 : i32 to index
    %c0_1 = arith.constant 0 : index
    %6 = vector.load %arg3[%c0, %5, %c0_1] : memref<1x8x32xf32, #tpu.memory_space<vmem>>, vector<1x8x32xf32>
    %7 = vector.shape_cast %6 : vector<1x8x32xf32> to vector<8x32xf32>
    %8 = tpu.iota {dimensions = array<i32: 0>} : vector<8x8xi32>
    %9 = vector.broadcast %4 : i32 to vector<8x8xi32>
    %10 = arith.addi %9, %8 : vector<8x8xi32>
    %11 = tpu.iota {dimensions = array<i32: 1>} : vector<8x8xi32>
    %12 = arith.cmpi sle, %11, %10 : vector<8x8xi32>
    %cst = arith.constant 0.000000e+00 : f32
    %cst_2 = arith.constant -1.000000e+04 : f32
    %13 = vector.broadcast %cst : f32 to vector<8x8xf32>
    %14 = vector.broadcast %cst_2 : f32 to vector<8x8xf32>
    %15 = arith.select %12, %13, %14 : vector<8x8xi1>, vector<8x8xf32>
    %c0_3 = arith.constant 0 : index
    %16 = arith.index_cast %4 : i32 to index
    %c0_4 = arith.constant 0 : index
    %17 = vector.load %arg26[%c0_3, %16, %c0_4] : memref<4x8x8xbf16, #tpu.memory_space<vmem>>, vector<4x8x8xbf16>
    %c0_5 = arith.constant 0 : index
    %c0_6 = arith.constant 0 : index
    %c0_7 = arith.constant 0 : index
    %18 = vector.load %arg27[%c0_5, %c0_6, %c0_7] : memref<4x8x8xbf16, #tpu.memory_space<vmem>>, vector<4x8x8xbf16>
    "tpu.trace_start"() <{level = 10 : i32, message = "hqd,hkd->hqk"}> : () -> ()
    %cst_8 = arith.constant dense<0.000000e+00> : vector<4x8x8xf32>
    %19 = tpu.matmul %17, %18, %cst_8 {dimension_numbers = #tpu.dot_dimension_numbers<[2], [2], [1], [1], [0, 0, 0, 1, 1, 1], [0], [0]>} : vector<4x8x8xbf16>, vector<4x8x8xbf16>, vector<4x8x8xf32> -> vector<4x8x8xf32>
    "tpu.trace_stop"() : () -> ()
    %20 = vector.shape_cast %15 : vector<8x8xf32> to vector<1x8x8xf32>
    %21 = vector.broadcast %20 : vector<1x8x8xf32> to vector<4x8x8xf32>
    %22 = arith.addf %19, %21 : vector<4x8x8xf32>
    %cst_9 = arith.constant dense<0xFF800000> : vector<4x8xf32>
    %23 = vector.multi_reduction <maximumf>, %22, %cst_9 [2] : vector<4x8x8xf32> to vector<4x8xf32>
    %24 = vector.shape_cast %23 : vector<4x8xf32> to vector<4x8x1xf32>
    %25 = vector.broadcast %24 : vector<4x8x1xf32> to vector<4x8x8xf32>
    %26 = arith.subf %22, %25 : vector<4x8x8xf32>
    %27 = math.exp %26 : vector<4x8x8xf32>
    %cst_10 = arith.constant dense<0.000000e+00> : vector<4x8xf32>
    %28 = vector.multi_reduction <add>, %27, %cst_10 [2] : vector<4x8x8xf32> to vector<4x8xf32>
    %29 = vector.shape_cast %28 : vector<4x8xf32> to vector<4x8x1xf32>
    %30 = tpu.reciprocal %29 {approx = true} : vector<4x8x1xf32> -> vector<4x8x1xf32>
    %31 = vector.broadcast %30 : vector<4x8x1xf32> to vector<4x8x8xf32>
    %32 = arith.mulf %27, %31 : vector<4x8x8xf32>
    %33 = arith.truncf %32 : vector<4x8x8xf32> to vector<4x8x8xbf16>
    %c0_11 = arith.constant 0 : index
    %c0_12 = arith.constant 0 : index
    %c0_13 = arith.constant 0 : index
    %34 = vector.load %arg28[%c0_11, %c0_12, %c0_13] : memref<4x8x8xbf16, #tpu.memory_space<vmem>>, vector<4x8x8xbf16>
    "tpu.trace_start"() <{level = 10 : i32, message = "hqk,hkd->hqd"}> : () -> ()
    %cst_14 = arith.constant dense<0.000000e+00> : vector<4x8x8xf32>
    %35 = tpu.matmul %33, %34, %cst_14 {dimension_numbers = #tpu.dot_dimension_numbers<[2], [1], [1], [2], [0, 0, 0, 1, 1, 2], [0], [0]>} : vector<4x8x8xbf16>, vector<4x8x8xbf16>, vector<4x8x8xf32> -> vector<4x8x8xf32>
    "tpu.trace_stop"() : () -> ()
    %36 = vector.extract_strided_slice %35 {offsets = [0, 0, 0], sizes = [1, 8, 8], strides = [1, 1, 1]} : vector<4x8x8xf32> to vector<1x8x8xf32>
    %37 = vector.shape_cast %36 : vector<1x8x8xf32> to vector<8x8xf32>
    %38 = vector.extract_strided_slice %35 {offsets = [1, 0, 0], sizes = [1, 8, 8], strides = [1, 1, 1]} : vector<4x8x8xf32> to vector<1x8x8xf32>
    %39 = vector.shape_cast %38 : vector<1x8x8xf32> to vector<8x8xf32>
    %40 = vector.extract_strided_slice %35 {offsets = [2, 0, 0], sizes = [1, 8, 8], strides = [1, 1, 1]} : vector<4x8x8xf32> to vector<1x8x8xf32>
    %41 = vector.shape_cast %40 : vector<1x8x8xf32> to vector<8x8xf32>
    %42 = vector.extract_strided_slice %35 {offsets = [3, 0, 0], sizes = [1, 8, 8], strides = [1, 1, 1]} : vector<4x8x8xf32> to vector<1x8x8xf32>
    %43 = vector.shape_cast %42 : vector<1x8x8xf32> to vector<8x8xf32>
    %44 = tpu.concatenate %37, %39, %41, %43 in 1 : vector<8x8xf32>, vector<8x8xf32>, vector<8x8xf32>, vector<8x8xf32> -> vector<8x32xf32>
    %45 = arith.truncf %44 : vector<8x32xf32> to vector<8x32xbf16>
    %c0_15 = arith.constant 0 : index
    %c0_16 = arith.constant 0 : index
    %46 = vector.load %arg7[%c0_15, %c0_16] : memref<32x32xbf16, #tpu.memory_space<vmem>>, vector<32x32xbf16>
    %cst_17 = arith.constant dense<0.000000e+00> : vector<8x32xf32>
    %47 = tpu.matmul %45, %46, %cst_17 {dimension_numbers = #tpu.dot_dimension_numbers<[1], [0], [0], [1], [0, 0, 1, 1], [], []>} : vector<8x32xbf16>, vector<32x32xbf16>, vector<8x32xf32> -> vector<8x32xf32>
    %c0_18 = arith.constant 0 : index
    %c0_19 = arith.constant 0 : index
    %48 = vector.load %arg8[%c0_18, %c0_19] : memref<1x32xf32, #tpu.memory_space<vmem>>, vector<1x32xf32>
    %49 = vector.broadcast %48 : vector<1x32xf32> to vector<8x32xf32>
    %50 = arith.addf %47, %49 : vector<8x32xf32>
    %51 = arith.addf %50, %7 : vector<8x32xf32>
    %cst_20 = arith.constant dense<0.000000e+00> : vector<8xf32>
    %52 = vector.multi_reduction <add>, %51, %cst_20 [1] : vector<8x32xf32> to vector<8xf32>
    %53 = vector.shape_cast %52 : vector<8xf32> to vector<8x1xf32>
    %cst_21 = arith.constant 3.200000e+01 : f32
    %54 = vector.broadcast %cst_21 : f32 to vector<8x1xf32>
    %55 = arith.divf %53, %54 : vector<8x1xf32>
    %56 = vector.broadcast %55 : vector<8x1xf32> to vector<8x32xf32>
    %57 = arith.subf %51, %56 : vector<8x32xf32>
    %58 = arith.mulf %57, %57 : vector<8x32xf32>
    %cst_22 = arith.constant dense<0.000000e+00> : vector<8xf32>
    %59 = vector.multi_reduction <add>, %58, %cst_22 [1] : vector<8x32xf32> to vector<8xf32>
    %60 = vector.shape_cast %59 : vector<8xf32> to vector<8x1xf32>
    %cst_23 = arith.constant 3.200000e+01 : f32
    %61 = vector.broadcast %cst_23 : f32 to vector<8x1xf32>
    %62 = arith.divf %60, %61 : vector<8x1xf32>
    %cst_24 = arith.constant 9.99999996E-13 : f32
    %63 = vector.broadcast %cst_24 : f32 to vector<8x1xf32>
    %64 = arith.addf %62, %63 : vector<8x1xf32>
    %65 = math.rsqrt %64 : vector<8x1xf32>
    %66 = vector.broadcast %65 : vector<8x1xf32> to vector<8x32xf32>
    %67 = arith.mulf %57, %66 : vector<8x32xf32>
    %c0_25 = arith.constant 0 : index
    %c0_26 = arith.constant 0 : index
    %68 = vector.load %arg9[%c0_25, %c0_26] : memref<1x32xf32, #tpu.memory_space<vmem>>, vector<1x32xf32>
    %69 = vector.broadcast %68 : vector<1x32xf32> to vector<8x32xf32>
    %70 = arith.mulf %67, %69 : vector<8x32xf32>
    %c0_27 = arith.constant 0 : index
    %c0_28 = arith.constant 0 : index
    %71 = vector.load %arg10[%c0_27, %c0_28] : memref<1x32xf32, #tpu.memory_space<vmem>>, vector<1x32xf32>
    %72 = vector.broadcast %71 : vector<1x32xf32> to vector<8x32xf32>
    %73 = arith.addf %70, %72 : vector<8x32xf32>
    %c0_29 = arith.constant 0 : index
    %c0_30 = arith.constant 0 : index
    %c0_31 = arith.constant 0 : index
    %74 = vector.load %arg2[%c0_29, %c0_30, %c0_31] : memref<1x1x16xf32, #tpu.memory_space<vmem>>, vector<1x1x16xf32>
    %75 = arith.truncf %73 : vector<8x32xf32> to vector<8x32xbf16>
    %c0_32 = arith.constant 0 : index
    %c0_33 = arith.constant 0 : index
    %76 = vector.load %arg11[%c0_32, %c0_33] : memref<32x32xbf16, #tpu.memory_space<vmem>>, vector<32x32xbf16>
    %cst_34 = arith.constant dense<0.000000e+00> : vector<8x32xf32>
    %77 = tpu.matmul %75, %76, %cst_34 {dimension_numbers = #tpu.dot_dimension_numbers<[1], [0], [0], [1], [0, 0, 1, 1], [], []>} : vector<8x32xbf16>, vector<32x32xbf16>, vector<8x32xf32> -> vector<8x32xf32>
    %c0_35 = arith.constant 0 : index
    %c0_36 = arith.constant 0 : index
    %78 = vector.load %arg12[%c0_35, %c0_36] : memref<1x32xf32, #tpu.memory_space<vmem>>, vector<1x32xf32>
    %79 = vector.broadcast %78 : vector<1x32xf32> to vector<8x32xf32>
    %80 = arith.addf %77, %79 : vector<8x32xf32>
    %cst_37 = arith.constant 0.353553385 : f32
    %81 = vector.broadcast %cst_37 : f32 to vector<8x32xf32>
    %82 = arith.mulf %80, %81 : vector<8x32xf32>
    %83 = vector.extract_strided_slice %82 {offsets = [0, 0], sizes = [8, 8], strides = [1, 1]} : vector<8x32xf32> to vector<8x8xf32>
    %84 = vector.extract_strided_slice %82 {offsets = [0, 8], sizes = [8, 8], strides = [1, 1]} : vector<8x32xf32> to vector<8x8xf32>
    %85 = vector.extract_strided_slice %82 {offsets = [0, 16], sizes = [8, 8], strides = [1, 1]} : vector<8x32xf32> to vector<8x8xf32>
    %86 = vector.extract_strided_slice %82 {offsets = [0, 24], sizes = [8, 8], strides = [1, 1]} : vector<8x32xf32> to vector<8x8xf32>
    %87 = vector.shape_cast %83 : vector<8x8xf32> to vector<1x8x8xf32>
    %88 = vector.shape_cast %84 : vector<8x8xf32> to vector<1x8x8xf32>
    %89 = vector.shape_cast %85 : vector<8x8xf32> to vector<1x8x8xf32>
    %90 = vector.shape_cast %86 : vector<8x8xf32> to vector<1x8x8xf32>
    %91 = tpu.concatenate %87, %88, %89, %90 in 0 : vector<1x8x8xf32>, vector<1x8x8xf32>, vector<1x8x8xf32>, vector<1x8x8xf32> -> vector<4x8x8xf32>
    %92 = arith.truncf %91 : vector<4x8x8xf32> to vector<4x8x8xbf16>
    %c0_38 = arith.constant 0 : index
    %c0_39 = arith.constant 0 : index
    %c0_40 = arith.constant 0 : index
    %93 = vector.load %arg29[%c0_38, %c0_39, %c0_40] : memref<4x16x8xbf16, #tpu.memory_space<vmem>>, vector<4x16x8xbf16>
    "tpu.trace_start"() <{level = 10 : i32, message = "hqd,hkd->hqk"}> : () -> ()
    %cst_41 = arith.constant dense<0.000000e+00> : vector<4x8x16xf32>
    %94 = tpu.matmul %92, %93, %cst_41 {dimension_numbers = #tpu.dot_dimension_numbers<[2], [2], [1], [1], [0, 0, 0, 1, 1, 1], [0], [0]>} : vector<4x8x8xbf16>, vector<4x16x8xbf16>, vector<4x8x16xf32> -> vector<4x8x16xf32>
    "tpu.trace_stop"() : () -> ()
    %95 = vector.broadcast %74 : vector<1x1x16xf32> to vector<4x8x16xf32>
    %96 = arith.addf %94, %95 : vector<4x8x16xf32>
    %cst_42 = arith.constant dense<0xFF800000> : vector<4x8xf32>
    %97 = vector.multi_reduction <maximumf>, %96, %cst_42 [2] : vector<4x8x16xf32> to vector<4x8xf32>
    %98 = vector.shape_cast %97 : vector<4x8xf32> to vector<4x8x1xf32>
    %99 = vector.broadcast %98 : vector<4x8x1xf32> to vector<4x8x16xf32>
    %100 = arith.subf %96, %99 : vector<4x8x16xf32>
    %101 = math.exp %100 : vector<4x8x16xf32>
    %cst_43 = arith.constant dense<0.000000e+00> : vector<4x8xf32>
    %102 = vector.multi_reduction <add>, %101, %cst_43 [2] : vector<4x8x16xf32> to vector<4x8xf32>
    %103 = vector.shape_cast %102 : vector<4x8xf32> to vector<4x8x1xf32>
    %104 = tpu.reciprocal %103 {approx = true} : vector<4x8x1xf32> -> vector<4x8x1xf32>
    %105 = vector.broadcast %104 : vector<4x8x1xf32> to vector<4x8x16xf32>
    %106 = arith.mulf %101, %105 : vector<4x8x16xf32>
    %107 = arith.truncf %106 : vector<4x8x16xf32> to vector<4x8x16xbf16>
    %c0_44 = arith.constant 0 : index
    %c0_45 = arith.constant 0 : index
    %c0_46 = arith.constant 0 : index
    %108 = vector.load %arg30[%c0_44, %c0_45, %c0_46] : memref<4x16x8xbf16, #tpu.memory_space<vmem>>, vector<4x16x8xbf16>
    "tpu.trace_start"() <{level = 10 : i32, message = "hqk,hkd->hqd"}> : () -> ()
    %cst_47 = arith.constant dense<0.000000e+00> : vector<4x8x8xf32>
    %109 = tpu.matmul %107, %108, %cst_47 {dimension_numbers = #tpu.dot_dimension_numbers<[2], [1], [1], [2], [0, 0, 0, 1, 1, 2], [0], [0]>} : vector<4x8x16xbf16>, vector<4x16x8xbf16>, vector<4x8x8xf32> -> vector<4x8x8xf32>
    "tpu.trace_stop"() : () -> ()
    %110 = vector.extract_strided_slice %109 {offsets = [0, 0, 0], sizes = [1, 8, 8], strides = [1, 1, 1]} : vector<4x8x8xf32> to vector<1x8x8xf32>
    %111 = vector.shape_cast %110 : vector<1x8x8xf32> to vector<8x8xf32>
    %112 = vector.extract_strided_slice %109 {offsets = [1, 0, 0], sizes = [1, 8, 8], strides = [1, 1, 1]} : vector<4x8x8xf32> to vector<1x8x8xf32>
    %113 = vector.shape_cast %112 : vector<1x8x8xf32> to vector<8x8xf32>
    %114 = vector.extract_strided_slice %109 {offsets = [2, 0, 0], sizes = [1, 8, 8], strides = [1, 1, 1]} : vector<4x8x8xf32> to vector<1x8x8xf32>
    %115 = vector.shape_cast %114 : vector<1x8x8xf32> to vector<8x8xf32>
    %116 = vector.extract_strided_slice %109 {offsets = [3, 0, 0], sizes = [1, 8, 8], strides = [1, 1, 1]} : vector<4x8x8xf32> to vector<1x8x8xf32>
    %117 = vector.shape_cast %116 : vector<1x8x8xf32> to vector<8x8xf32>
    %118 = tpu.concatenate %111, %113, %115, %117 in 1 : vector<8x8xf32>, vector<8x8xf32>, vector<8x8xf32>, vector<8x8xf32> -> vector<8x32xf32>
    %119 = arith.truncf %118 : vector<8x32xf32> to vector<8x32xbf16>
    %c0_48 = arith.constant 0 : index
    %c0_49 = arith.constant 0 : index
    %120 = vector.load %arg15[%c0_48, %c0_49] : memref<32x32xbf16, #tpu.memory_space<vmem>>, vector<32x32xbf16>
    %cst_50 = arith.constant dense<0.000000e+00> : vector<8x32xf32>
    %121 = tpu.matmul %119, %120, %cst_50 {dimension_numbers = #tpu.dot_dimension_numbers<[1], [0], [0], [1], [0, 0, 1, 1], [], []>} : vector<8x32xbf16>, vector<32x32xbf16>, vector<8x32xf32> -> vector<8x32xf32>
    %c0_51 = arith.constant 0 : index
    %c0_52 = arith.constant 0 : index
    %122 = vector.load %arg16[%c0_51, %c0_52] : memref<1x32xf32, #tpu.memory_space<vmem>>, vector<1x32xf32>
    %123 = vector.broadcast %122 : vector<1x32xf32> to vector<8x32xf32>
    %124 = arith.addf %121, %123 : vector<8x32xf32>
    %125 = arith.addf %124, %73 : vector<8x32xf32>
    %cst_53 = arith.constant dense<0.000000e+00> : vector<8xf32>
    %126 = vector.multi_reduction <add>, %125, %cst_53 [1] : vector<8x32xf32> to vector<8xf32>
    %127 = vector.shape_cast %126 : vector<8xf32> to vector<8x1xf32>
    %cst_54 = arith.constant 3.200000e+01 : f32
    %128 = vector.broadcast %cst_54 : f32 to vector<8x1xf32>
    %129 = arith.divf %127, %128 : vector<8x1xf32>
    %130 = vector.broadcast %129 : vector<8x1xf32> to vector<8x32xf32>
    %131 = arith.subf %125, %130 : vector<8x32xf32>
    %132 = arith.mulf %131, %131 : vector<8x32xf32>
    %cst_55 = arith.constant dense<0.000000e+00> : vector<8xf32>
    %133 = vector.multi_reduction <add>, %132, %cst_55 [1] : vector<8x32xf32> to vector<8xf32>
    %134 = vector.shape_cast %133 : vector<8xf32> to vector<8x1xf32>
    %cst_56 = arith.constant 3.200000e+01 : f32
    %135 = vector.broadcast %cst_56 : f32 to vector<8x1xf32>
    %136 = arith.divf %134, %135 : vector<8x1xf32>
    %cst_57 = arith.constant 9.99999996E-13 : f32
    %137 = vector.broadcast %cst_57 : f32 to vector<8x1xf32>
    %138 = arith.addf %136, %137 : vector<8x1xf32>
    %139 = math.rsqrt %138 : vector<8x1xf32>
    %140 = vector.broadcast %139 : vector<8x1xf32> to vector<8x32xf32>
    %141 = arith.mulf %131, %140 : vector<8x32xf32>
    %c0_58 = arith.constant 0 : index
    %c0_59 = arith.constant 0 : index
    %142 = vector.load %arg17[%c0_58, %c0_59] : memref<1x32xf32, #tpu.memory_space<vmem>>, vector<1x32xf32>
    %143 = vector.broadcast %142 : vector<1x32xf32> to vector<8x32xf32>
    %144 = arith.mulf %141, %143 : vector<8x32xf32>
    %c0_60 = arith.constant 0 : index
    %c0_61 = arith.constant 0 : index
    %145 = vector.load %arg18[%c0_60, %c0_61] : memref<1x32xf32, #tpu.memory_space<vmem>>, vector<1x32xf32>
    %146 = vector.broadcast %145 : vector<1x32xf32> to vector<8x32xf32>
    %147 = arith.addf %144, %146 : vector<8x32xf32>
    %148 = arith.truncf %147 : vector<8x32xf32> to vector<8x32xbf16>
    %c0_62 = arith.constant 0 : index
    %c0_63 = arith.constant 0 : index
    %149 = vector.load %arg19[%c0_62, %c0_63] : memref<32x64xbf16, #tpu.memory_space<vmem>>, vector<32x64xbf16>
    %cst_64 = arith.constant dense<0.000000e+00> : vector<8x64xf32>
    %150 = tpu.matmul %148, %149, %cst_64 {dimension_numbers = #tpu.dot_dimension_numbers<[1], [0], [0], [1], [0, 0, 1, 1], [], []>} : vector<8x32xbf16>, vector<32x64xbf16>, vector<8x64xf32> -> vector<8x64xf32>
    %c0_65 = arith.constant 0 : index
    %c0_66 = arith.constant 0 : index
    %151 = vector.load %arg20[%c0_65, %c0_66] : memref<1x64xf32, #tpu.memory_space<vmem>>, vector<1x64xf32>
    %152 = vector.broadcast %151 : vector<1x64xf32> to vector<8x64xf32>
    %153 = arith.addf %150, %152 : vector<8x64xf32>
    %cst_67 = arith.constant 5.000000e-01 : f32
    %154 = vector.broadcast %cst_67 : f32 to vector<8x64xf32>
    %155 = arith.mulf %154, %153 : vector<8x64xf32>
    %cst_68 = arith.constant 0.707106769 : f32
    %156 = vector.broadcast %cst_68 : f32 to vector<8x64xf32>
    %157 = arith.mulf %153, %156 : vector<8x64xf32>
    %158 = math.erf %157 : vector<8x64xf32>
    %cst_69 = arith.constant 1.000000e+00 : f32
    %159 = vector.broadcast %cst_69 : f32 to vector<8x64xf32>
    %160 = arith.addf %159, %158 : vector<8x64xf32>
    %161 = arith.mulf %155, %160 : vector<8x64xf32>
    %162 = arith.truncf %161 : vector<8x64xf32> to vector<8x64xbf16>
    %c0_70 = arith.constant 0 : index
    %c0_71 = arith.constant 0 : index
    %163 = vector.load %arg21[%c0_70, %c0_71] : memref<64x32xbf16, #tpu.memory_space<vmem>>, vector<64x32xbf16>
    %cst_72 = arith.constant dense<0.000000e+00> : vector<8x32xf32>
    %164 = tpu.matmul %162, %163, %cst_72 {dimension_numbers = #tpu.dot_dimension_numbers<[1], [0], [0], [1], [0, 0, 1, 1], [], []>} : vector<8x64xbf16>, vector<64x32xbf16>, vector<8x32xf32> -> vector<8x32xf32>
    %c0_73 = arith.constant 0 : index
    %c0_74 = arith.constant 0 : index
    %165 = vector.load %arg22[%c0_73, %c0_74] : memref<1x32xf32, #tpu.memory_space<vmem>>, vector<1x32xf32>
    %166 = vector.broadcast %165 : vector<1x32xf32> to vector<8x32xf32>
    %167 = arith.addf %164, %166 : vector<8x32xf32>
    %168 = arith.addf %167, %147 : vector<8x32xf32>
    %cst_75 = arith.constant dense<0.000000e+00> : vector<8xf32>
    %169 = vector.multi_reduction <add>, %168, %cst_75 [1] : vector<8x32xf32> to vector<8xf32>
    %170 = vector.shape_cast %169 : vector<8xf32> to vector<8x1xf32>
    %cst_76 = arith.constant 3.200000e+01 : f32
    %171 = vector.broadcast %cst_76 : f32 to vector<8x1xf32>
    %172 = arith.divf %170, %171 : vector<8x1xf32>
    %173 = vector.broadcast %172 : vector<8x1xf32> to vector<8x32xf32>
    %174 = arith.subf %168, %173 : vector<8x32xf32>
    %175 = arith.mulf %174, %174 : vector<8x32xf32>
    %cst_77 = arith.constant dense<0.000000e+00> : vector<8xf32>
    %176 = vector.multi_reduction <add>, %175, %cst_77 [1] : vector<8x32xf32> to vector<8xf32>
    %177 = vector.shape_cast %176 : vector<8xf32> to vector<8x1xf32>
    %cst_78 = arith.constant 3.200000e+01 : f32
    %178 = vector.broadcast %cst_78 : f32 to vector<8x1xf32>
    %179 = arith.divf %177, %178 : vector<8x1xf32>
    %cst_79 = arith.constant 9.99999996E-13 : f32
    %180 = vector.broadcast %cst_79 : f32 to vector<8x1xf32>
    %181 = arith.addf %179, %180 : vector<8x1xf32>
    %182 = math.rsqrt %181 : vector<8x1xf32>
    %183 = vector.broadcast %182 : vector<8x1xf32> to vector<8x32xf32>
    %184 = arith.mulf %174, %183 : vector<8x32xf32>
    %c0_80 = arith.constant 0 : index
    %c0_81 = arith.constant 0 : index
    %185 = vector.load %arg23[%c0_80, %c0_81] : memref<1x32xf32, #tpu.memory_space<vmem>>, vector<1x32xf32>
    %186 = vector.broadcast %185 : vector<1x32xf32> to vector<8x32xf32>
    %187 = arith.mulf %184, %186 : vector<8x32xf32>
    %c0_82 = arith.constant 0 : index
    %c0_83 = arith.constant 0 : index
    %188 = vector.load %arg24[%c0_82, %c0_83] : memref<1x32xf32, #tpu.memory_space<vmem>>, vector<1x32xf32>
    %189 = vector.broadcast %188 : vector<1x32xf32> to vector<8x32xf32>
    %190 = arith.addf %187, %189 : vector<8x32xf32>
    %c0_84 = arith.constant 0 : index
    %c0_85 = arith.constant 0 : index
    %c0_86 = arith.constant 0 : index
    %191 = vector.load %arg25[%c0_84, %c0_85, %c0_86] : memref<1x8x32xf32, #tpu.memory_space<vmem>>, vector<1x8x32xf32>
    %192 = vector.shape_cast %191 : vector<1x8x32xf32> to vector<8x32xf32>
    %193 = vector.shape_cast %190 : vector<8x32xf32> to vector<1x8x32xf32>
    tpu.vector_store %arg25[%c0_84, %c0_85, %c0_86], %193 {strides = array<i32>} : memref<1x8x32xf32, #tpu.memory_space<vmem>>, vector<1x8x32xf32>,
    return
  }
  func.func @transform_0(%arg0: i32, %arg1: i32) -> (i32, i32, i32) {
    %c0_i32 = arith.constant 0 : i32
    %c0_i32_0 = arith.constant 0 : i32
    %c0_i32_1 = arith.constant 0 : i32
    return %arg0, %c0_i32, %c0_i32_0 : i32, i32, i32
  }
  func.func @transform_1(%arg0: i32, %arg1: i32) -> (i32, i32, i32) {
    %c0_i32 = arith.constant 0 : i32
    %c0_i32_0 = arith.constant 0 : i32
    %c0_i32_1 = arith.constant 0 : i32
    return %arg0, %c0_i32, %c0_i32_0 : i32, i32, i32
  }
  func.func @transform_2(%arg0: i32, %arg1: i32) -> (i32, i32, i32) {
    %c0_i32 = arith.constant 0 : i32
    %c0_i32_0 = arith.constant 0 : i32
    %c0_i32_1 = arith.constant 0 : i32
    return %arg0, %c0_i32, %c0_i32_0 : i32, i32, i32
  }
  func.func @transform_3(%arg0: i32, %arg1: i32) -> (i32, i32) {
    %c0_i32 = arith.constant 0 : i32
    %c0_i32_0 = arith.constant 0 : i32
    %c0_i32_1 = arith.constant 0 : i32
    return %c0_i32, %c0_i32_0 : i32, i32
  }
  func.func @transform_4(%arg0: i32, %arg1: i32) -> (i32, i32) {
    %c0_i32 = arith.constant 0 : i32
    %c0_i32_0 = arith.constant 0 : i32
    %c0_i32_1 = arith.constant 0 : i32
    return %c0_i32, %c0_i32_0 : i32, i32
  }
  func.func @transform_5(%arg0: i32, %arg1: i32) -> (i32, i32) {
    %c0_i32 = arith.constant 0 : i32
    %c0_i32_0 = arith.constant 0 : i32
    %c0_i32_1 = arith.constant 0 : i32
    return %c0_i32, %c0_i32_0 : i32, i32
  }
  func.func @transform_6(%arg0: i32, %arg1: i32) -> (i32, i32) {
    %c0_i32 = arith.constant 0 : i32
    %c0_i32_0 = arith.constant 0 : i32
    %c0_i32_1 = arith.constant 0 : i32
    return %c0_i32, %c0_i32_0 : i32, i32
  }
  func.func @transform_7(%arg0: i32, %arg1: i32) -> (i32, i32) {
    %c0_i32 = arith.constant 0 : i32
    %c0_i32_0 = arith.constant 0 : i32
    %c0_i32_1 = arith.constant 0 : i32
    return %c0_i32, %c0_i32_0 : i32, i32
  }
  func.func @transform_8(%arg0: i32, %arg1: i32) -> (i32, i32) {
    %c0_i32 = arith.constant 0 : i32
    %c0_i32_0 = arith.constant 0 : i32
    %c0_i32_1 = arith.constant 0 : i32
    return %c0_i32, %c0_i32_0 : i32, i32
  }
  func.func @transform_9(%arg0: i32, %arg1: i32) -> (i32, i32) {
    %c0_i32 = arith.constant 0 : i32
    %c0_i32_0 = arith.constant 0 : i32
    %c0_i32_1 = arith.constant 0 : i32
    return %c0_i32, %c0_i32_0 : i32, i32
  }
  func.func @transform_10(%arg0: i32, %arg1: i32) -> (i32, i32) {
    %c0_i32 = arith.constant 0 : i32
    %c0_i32_0 = arith.constant 0 : i32
    %c0_i32_1 = arith.constant 0 : i32
    return %c0_i32, %c0_i32_0 : i32, i32
  }
  func.func @transform_11(%arg0: i32, %arg1: i32) -> (i32, i32) {
    %c0_i32 = arith.constant 0 : i32
    %c0_i32_0 = arith.constant 0 : i32
    %c0_i32_1 = arith.constant 0 : i32
    return %c0_i32, %c0_i32_0 : i32, i32
  }
  func.func @transform_12(%arg0: i32, %arg1: i32) -> (i32, i32) {
    %c0_i32 = arith.constant 0 : i32
    %c0_i32_0 = arith.constant 0 : i32
    %c0_i32_1 = arith.constant 0 : i32
    return %c0_i32, %c0_i32_0 : i32, i32
  }
  func.func @transform_13(%arg0: i32, %arg1: i32) -> (i32, i32) {
    %c0_i32 = arith.constant 0 : i32
    %c0_i32_0 = arith.constant 0 : i32
    %c0_i32_1 = arith.constant 0 : i32
    return %c0_i32, %c0_i32_0 : i32, i32
  }
  func.func @transform_14(%arg0: i32, %arg1: i32) -> (i32, i32) {
    %c0_i32 = arith.constant 0 : i32
    %c0_i32_0 = arith.constant 0 : i32
    %c0_i32_1 = arith.constant 0 : i32
    return %c0_i32, %c0_i32_0 : i32, i32
  }
  func.func @transform_15(%arg0: i32, %arg1: i32) -> (i32, i32) {
    %c0_i32 = arith.constant 0 : i32
    %c0_i32_0 = arith.constant 0 : i32
    %c0_i32_1 = arith.constant 0 : i32
    return %c0_i32, %c0_i32_0 : i32, i32
  }
  func.func @transform_16(%arg0: i32, %arg1: i32) -> (i32, i32) {
    %c0_i32 = arith.constant 0 : i32
    %c0_i32_0 = arith.constant 0 : i32
    %c0_i32_1 = arith.constant 0 : i32
    return %c0_i32, %c0_i32_0 : i32, i32
  }
  func.func @transform_17(%arg0: i32, %arg1: i32) -> (i32, i32) {
    %c0_i32 = arith.constant 0 : i32
    %c0_i32_0 = arith.constant 0 : i32
    %c0_i32_1 = arith.constant 0 : i32
    return %c0_i32, %c0_i32_0 : i32, i32
  }
  func.func @transform_18(%arg0: i32, %arg1: i32) -> (i32, i32) {
    %c0_i32 = arith.constant 0 : i32
    %c0_i32_0 = arith.constant 0 : i32
    %c0_i32_1 = arith.constant 0 : i32
    return %c0_i32, %c0_i32_0 : i32, i32
  }
  func.func @transform_19(%arg0: i32, %arg1: i32) -> (i32, i32) {
    %c0_i32 = arith.constant 0 : i32
    %c0_i32_0 = arith.constant 0 : i32
    %c0_i32_1 = arith.constant 0 : i32
    return %c0_i32, %c0_i32_0 : i32, i32
  }
  func.func @transform_20(%arg0: i32, %arg1: i32) -> (i32, i32) {
    %c0_i32 = arith.constant 0 : i32
    %c0_i32_0 = arith.constant 0 : i32
    %c0_i32_1 = arith.constant 0 : i32
    return %c0_i32, %c0_i32_0 : i32, i32
  }
  func.func @transform_21(%arg0: i32, %arg1: i32) -> (i32, i32) {
    %c0_i32 = arith.constant 0 : i32
    %c0_i32_0 = arith.constant 0 : i32
    %c0_i32_1 = arith.constant 0 : i32
    return %c0_i32, %c0_i32_0 : i32, i32
  }
  func.func @transform_22(%arg0: i32, %arg1: i32) -> (i32, i32) {
    %c0_i32 = arith.constant 0 : i32
    %c0_i32_0 = arith.constant 0 : i32
    %c0_i32_1 = arith.constant 0 : i32
    return %c0_i32, %c0_i32_0 : i32, i32
  }
  func.func @transform_23(%arg0: i32, %arg1: i32) -> (i32, i32, i32) {
    %c0_i32 = arith.constant 0 : i32
    %c0_i32_0 = arith.constant 0 : i32
    return %arg0, %arg1, %c0_i32 : i32, i32, i32
  }
}

</mosaic_0001>

<llo_original>
// kernel: tpu_custom_call.1
$region0: #{tpu_custom_call.1}
  #allocation0 [shape = 'u32[]', space=smem, size = 0x4, offset = 0x4, fixed_abs, tag = 'smem constant byte address 0x4 - core index']
  #allocation1 [shape = 'u32[144,128]{1,0:T(1,128)}', space=vmem, size = 0x12000, scoped, tag = 'internal scratch']
  #allocation2 [shape = 'bf16[4,8,8]{2,1,0:T(8,128)(2,1)}', space=vmem, size = 0x2000, scoped, tag = 'scratch operand']
  #allocation3 [shape = 'bf16[4,8,8]{2,1,0:T(8,128)(2,1)}', space=vmem, size = 0x2000, scoped, tag = 'scratch operand']
  #allocation4 [shape = 'bf16[4,8,8]{2,1,0:T(8,128)(2,1)}', space=vmem, size = 0x2000, scoped, tag = 'scratch operand']
  #allocation5 [shape = 'bf16[4,16,8]{2,1,0:T(16,128)(2,1)}', space=vmem, size = 0x4000, scoped, tag = 'scratch operand']
  #allocation6 [shape = 'bf16[4,16,8]{2,1,0:T(16,128)(2,1)}', space=vmem, size = 0x4000, scoped, tag = 'scratch operand']
  %s0 = inlined_call_operand.hbm [shape: f32[2,1,16], index: 0, kind: input, shape index: {}]
  %s1 = inlined_call_operand.vmem [shape: f32[2,8,32], index: 1, kind: input, shape index: {}]
  %s2 = inlined_call_operand.vmem [shape: f32[2,16,32], index: 2, kind: input, shape index: {}]
  %s3 = inlined_call_operand.hbm [shape: bf16[32,96], index: 3, kind: input, shape index: {}]
  %s4 = inlined_call_operand.hbm [shape: f32[1,96], index: 4, kind: input, shape index: {}]
  %s5 = inlined_call_operand.hbm [shape: bf16[32,32], index: 5, kind: input, shape index: {}]
  %s6 = inlined_call_operand.hbm [shape: f32[1,32], index: 6, kind: input, shape index: {}]
  %s7 = inlined_call_operand.hbm [shape: f32[1,32], index: 7, kind: input, shape index: {}]
  %s8 = inlined_call_operand.hbm [shape: f32[1,32], index: 8, kind: input, shape index: {}]
  %s9 = inlined_call_operand.vmem [shape: bf16[32,32], index: 9, kind: input, shape index: {}]
  %s10 = inlined_call_operand.hbm [shape: f32[1,32], index: 10, kind: input, shape index: {}]
  %s11 = inlined_call_operand.hbm [shape: bf16[32,64], index: 11, kind: input, shape index: {}]
  %s12 = inlined_call_operand.hbm [shape: f32[1,64], index: 12, kind: input, shape index: {}]
  %s13 = inlined_call_operand.vmem [shape: bf16[32,32], index: 13, kind: input, shape index: {}]
  %s14 = inlined_call_operand.hbm [shape: f32[1,32], index: 14, kind: input, shape index: {}]
  %s15 = inlined_call_operand.hbm [shape: f32[1,32], index: 15, kind: input, shape index: {}]
  %s16 = inlined_call_operand.hbm [shape: f32[1,32], index: 16, kind: input, shape index: {}]
  %s17 = inlined_call_operand.vmem [shape: bf16[32,64], index: 17, kind: input, shape index: {}]
  %s18 = inlined_call_operand.vmem [shape: f32[1,64], index: 18, kind: input, shape index: {}]
  %s19 = inlined_call_operand.vmem [shape: bf16[64,32], index: 19, kind: input, shape index: {}]
  %s20 = inlined_call_operand.vmem [shape: f32[1,32], index: 20, kind: input, shape index: {}]
  %s21 = inlined_call_operand.vmem [shape: f32[1,32], index: 21, kind: input, shape index: {}]
  %s22 = inlined_call_operand.vmem [shape: f32[1,32], index: 22, kind: input, shape index: {}]
  %s23 = inlined_call_operand.hbm [shape: f32[2,8,32], index: 23, kind: output, shape index: {}]
  %s24 = sld [smem:[#allocation0]]
  $region181: #{tpu_custom_call.1} parent=0
    _
  %s26 = ssub.s32 1, %s24
  %s27 = scalar_select 0, %s26, %s24
  $region1: #{tpu_custom_call.1} parent=0
    #allocation7 [shape = 'u8[1024]{0}', space=vmem, size = 0x400, scoped, tag = 'input window, operand 0']
    #allocation8 [shape = 's32[2]{0}', space=sflag, size = 0x8, scoped, tag = 'scoped memory for tpu_custom_call.1']
    #allocation9 [shape = 's32[2]{0}', space=sflag, size = 0x8, scoped, tag = 'scoped memory for tpu_custom_call.1']
    #allocation10 [shape = 'u8[8192]{0}', space=vmem, size = 0x2000, scoped, tag = 'input window, operand 3, single buffered']
    #allocation11 [shape = 's32[1]{0}', space=sflag, size = 0x4, scoped, tag = 'scoped memory for tpu_custom_call.1']
    #allocation12 [shape = 'u8[512]{0}', space=vmem, size = 0x400, scoped, tag = 'input window, operand 4, single buffered']
    #allocation13 [shape = 'u8[8192]{0}', space=vmem, size = 0x2000, scoped, tag = 'input window, operand 5, single buffered']
    #allocation14 [shape = 's32[1]{0}', space=sflag, size = 0x4, scoped, tag = 'scoped memory for tpu_custom_call.1']
    #allocation15 [shape = 'u8[512]{0}', space=vmem, size = 0x400, scoped, tag = 'input window, operand 6, single buffered']
    #allocation16 [shape = 'u8[512]{0}', space=vmem, size = 0x400, scoped, tag = 'input window, operand 7, single buffered']
    #allocation17 [shape = 's32[1]{0}', space=sflag, size = 0x4, scoped, tag = 'scoped memory for tpu_custom_call.1']
    #allocation18 [shape = 'u8[512]{0}', space=vmem, size = 0x400, scoped, tag = 'input window, operand 8, single buffered']
    #allocation19 [shape = 'u8[512]{0}', space=vmem, size = 0x400, scoped, tag = 'input window, operand 10, single buffered']
    #allocation20 [shape = 's32[1]{0}', space=sflag, size = 0x4, scoped, tag = 'scoped memory for tpu_custom_call.1']
    #allocation21 [shape = 'u8[8192]{0}', space=vmem, size = 0x2000, scoped, tag = 'input window, operand 11, single buffered']
    #allocation22 [shape = 'u8[512]{0}', space=vmem, size = 0x400, scoped, tag = 'input window, operand 12, single buffered']
    #allocation23 [shape = 's32[1]{0}', space=sflag, size = 0x4, scoped, tag = 'scoped memory for tpu_custom_call.1']
    #allocation24 [shape = 'u8[512]{0}', space=vmem, size = 0x400, scoped, tag = 'input window, operand 14, single buffered']
    #allocation25 [shape = 'u8[512]{0}', space=vmem, size = 0x400, scoped, tag = 'input window, operand 15, single buffered']
    #allocation26 [shape = 's32[1]{0}', space=sflag, size = 0x4, scoped, tag = 'scoped memory for tpu_custom_call.1']
    #allocation27 [shape = 'u8[512]{0}', space=vmem, size = 0x400, scoped, tag = 'input window, operand 16, single buffered']
    #allocation28 [shape = 'u8[8192]{0}', space=vmem, size = 0x2000, scoped, tag = 'output window, operand 0']
    %28 = vsyncpa [#allocation8], 0
    %s29 = scalar_lea.sflag [#allocation8], 1
    %30 = vsyncpa %s29, 0
    %31 = vsyncpa [#allocation11], 0
    %32 = vsyncpa [#allocation14], 0
    %33 = vsyncpa [#allocation17], 0
    %34 = vsyncpa [#allocation20], 0
    %35 = vsyncpa [#allocation23], 0
    %36 = vsyncpa [#allocation26], 0
    %37 = vsyncpa [#allocation9], 0
    %s38 = scalar_lea.sflag [#allocation9], 1
    %39 = vsyncpa %s38, 0
    loop: start=0, step=1, limit=4
    $region2: #{tpu_custom_call.1} parent=1 // loop_pre_header
      _
    $region3: #{tpu_custom_call.1} parent=1 // loop_header
      %s41 = sphi 0, %s45
      %p42 = scmp.ge.s32.totalorder %s41, 4
      %s48 = sphi 0, %s60
      %s49 = sphi 0, %s56
      %s50 = sphi 0, %s48
      %s51 = sphi 0, %s49
      %s52 = sphi 0, %s50
      %s53 = sphi 0, %s51
      %s63 = sphi 0, %s65
      %s66 = sphi 0, %s63
      %s67 = sphi 0, %s66
      %s83 = sphi 0, %s67
      %s89 = sphi 0, %s91
      %s92 = sphi 0, %s89
      %s93 = sphi 0, %s92
      %s109 = sphi 0, %s93
      %s115 = sphi 0, %s117
      %s118 = sphi 0, %s115
      %s119 = sphi 0, %s118
      %s135 = sphi 0, %s119
      %s139 = sphi 0, %s139
      %s141 = sphi 0, %s139
      %s142 = sphi 0, %s141
      %s156 = sphi 0, %s142
      %s160 = sphi 0, %s160
      %s162 = sphi 0, %s160
      %s163 = sphi 0, %s162
      %s177 = sphi 0, %s163
      %s181 = sphi 0, %s181
      %s183 = sphi 0, %s181
      %s184 = sphi 0, %s183
      %s198 = sphi 0, %s184
      %s202 = sphi 0, %s202
      %s204 = sphi 0, %s202
      %s205 = sphi 0, %s204
      %s219 = sphi 0, %s205
      %s223 = sphi 0, %s223
      %s225 = sphi 0, %s223
      %s226 = sphi 0, %s225
      %s240 = sphi 0, %s226
      %s244 = sphi 0, %s244
      %s246 = sphi 0, %s244
      %s247 = sphi 0, %s246
      %s261 = sphi 0, %s247
      %s265 = sphi 0, %s265
      %s267 = sphi 0, %s265
      %s268 = sphi 0, %s267
      %s282 = sphi 0, %s268
      %s286 = sphi 0, %s286
      %s288 = sphi 0, %s286
      %s289 = sphi 0, %s288
      %s303 = sphi 0, %s289
      %s307 = sphi 0, %s307
      %s309 = sphi 0, %s307
      %s310 = sphi 0, %s309
      %s324 = sphi 0, %s310
      %s328 = sphi 0, %s328
      %s330 = sphi 0, %s328
      %s331 = sphi 0, %s330
      %s345 = sphi 0, %s331
      %s349 = sphi 0, %s349
      %s351 = sphi 0, %s349
      %s352 = sphi 0, %s351
      %s366 = sphi 0, %s352
      %s370 = sphi 0, %s370
      %s372 = sphi 0, %s370
      %s373 = sphi 0, %s372
      %s387 = sphi 0, %s373
      %s391 = sphi 0, %s391
      %s393 = sphi 0, %s391
      %s394 = sphi 0, %s393
      %s408 = sphi 0, %s394
      %s412 = sphi 0, %s412
      %s414 = sphi 0, %s412
      %s415 = sphi 0, %s414
      %s429 = sphi 0, %s415
      %s433 = sphi 0, %s433
      %s435 = sphi 0, %s433
      %s436 = sphi 0, %s435
      %s450 = sphi 0, %s436
      %s454 = sphi 0, %s454
      %s456 = sphi 0, %s454
      %s457 = sphi 0, %s456
      %s471 = sphi 0, %s457
      %s475 = sphi 0, %s475
      %s477 = sphi 0, %s475
      %s478 = sphi 0, %s477
      %s492 = sphi 0, %s478
      %s496 = sphi 0, %s496
      %s498 = sphi 0, %s496
      %s499 = sphi 0, %s498
      %s513 = sphi 0, %s499
      %s517 = sphi 0, %s517
      %s519 = sphi 0, %s517
      %s520 = sphi 0, %s519
      %s534 = sphi 0, %s520
      %s538 = sphi 0, %s538
      %s540 = sphi 0, %s538
      %s541 = sphi 0, %s540
      %s555 = sphi 0, %s541
      %s563 = sphi 0, %s565
      %s566 = sphi 0, %s563
      %s567 = sphi 0, %s566
      %s583 = sphi 0, %s567
    $region4: #{tpu_custom_call.1} parent=1 // loop_header_branch
      %44 = sbr.rel (%p42) target = $region8
    $region5: #{tpu_custom_call.1} parent=1 // loop_body
      %s46 = ssub.s32 %s41, 1
      %s47 = ssub.s32 %s41, 2
      %s54 = sadd.s32 1, %s49
      %p55 = scmp.ge.s32.totalorder %s54, 1
      %s56 = scalar_select %p55, 0, %s54
      %s57 = sadd.s32 1, %s48
      %s58 = scalar_select %p55, %s57, %s48
      %p59 = scmp.ge.s32.totalorder %s58, 2
      %s60 = scalar_select %p59, 0, %s58
      %s61 = ssub.s32 %s48, %s60
      %p62 = scmp.eq.s32.totalorder %s61, 0
      %s64 = sadd.s32 %s63, 1
      %s65 = scalar_select %p62, %s63, %s64
      %p68 = pneg %p62
      %p69 = scmp.eq.s32.totalorder %s41, 1
      %p70 = por %p68, %p69
      %p71 = scmp.ne.s32.totalorder %s63, %s66
      %p72 = scmp.eq.s32.totalorder %s41, 0
      %p73 = por %p71, %p72
      %p74 = scmp.ne.s32.totalorder %s63, %s66
      %p75 = scmp.eq.s32.totalorder %s46, 1
      %p76 = por %p74, %p75
      %p77 = scmp.ne.s32.totalorder %s66, %s67
      %p78 = scmp.eq.s32.totalorder %s46, 0
      %p79 = por %p77, %p78
      %p80 = scmp.ne.s32.totalorder %s66, %s67
      %p81 = scmp.eq.s32.totalorder %s47, 1
      %p82 = por %p80, %p81
      %p84 = scmp.ne.s32.totalorder %s67, %s83
      %p85 = scmp.eq.s32.totalorder %s47, 0
      %p86 = por %p84, %p85
      %s87 = ssub.s32 %s48, %s60
      %p88 = scmp.eq.s32.totalorder %s87, 0
      %s90 = sadd.s32 %s89, 1
      %s91 = scalar_select %p88, %s89, %s90
      %p94 = pneg %p88
      %p95 = scmp.eq.s32.totalorder %s41, 1
      %p96 = por %p94, %p95
      %p97 = scmp.ne.s32.totalorder %s89, %s92
      %p98 = scmp.eq.s32.totalorder %s41, 0
      %p99 = por %p97, %p98
      %p100 = scmp.ne.s32.totalorder %s89, %s92
      %p101 = scmp.eq.s32.totalorder %s46, 1
      %p102 = por %p100, %p101
      %p103 = scmp.ne.s32.totalorder %s92, %s93
      %p104 = scmp.eq.s32.totalorder %s46, 0
      %p105 = por %p103, %p104
      %p106 = scmp.ne.s32.totalorder %s92, %s93
      %p107 = scmp.eq.s32.totalorder %s47, 1
      %p108 = por %p106, %p107
      %p110 = scmp.ne.s32.totalorder %s93, %s109
      %p111 = scmp.eq.s32.totalorder %s47, 0
      %p112 = por %p110, %p111
      %s113 = ssub.s32 %s48, %s60
      %p114 = scmp.eq.s32.totalorder %s113, 0
      %s116 = sadd.s32 %s115, 1
      %s117 = scalar_select %p114, %s115, %s116
      %p120 = pneg %p114
      %p121 = scmp.eq.s32.totalorder %s41, 1
      %p122 = por %p120, %p121
      %p123 = scmp.ne.s32.totalorder %s115, %s118
      %p124 = scmp.eq.s32.totalorder %s41, 0
      %p125 = por %p123, %p124
      %p126 = scmp.ne.s32.totalorder %s115, %s118
      %p127 = scmp.eq.s32.totalorder %s46, 1
      %p128 = por %p126, %p127
      %p129 = scmp.ne.s32.totalorder %s118, %s119
      %p130 = scmp.eq.s32.totalorder %s46, 0
      %p131 = por %p129, %p130
      %p132 = scmp.ne.s32.totalorder %s118, %s119
      %p133 = scmp.eq.s32.totalorder %s47, 1
      %p134 = por %p132, %p133
      %p136 = scmp.ne.s32.totalorder %s119, %s135
      %p137 = scmp.eq.s32.totalorder %s47, 0
      %p138 = por %p136, %p137
      %s140 = sadd.s32 %s139, 1
      %p143 = scmp.eq.s32.totalorder %s41, 1
      %p144 = scmp.ne.s32.totalorder %s139, %s141
      %p145 = scmp.eq.s32.totalorder %s41, 0
      %p146 = por %p144, %p145
      %p147 = scmp.ne.s32.totalorder %s139, %s141
      %p148 = scmp.eq.s32.totalorder %s46, 1
      %p149 = por %p147, %p148
      %p150 = scmp.ne.s32.totalorder %s141, %s142
      %p151 = scmp.eq.s32.totalorder %s46, 0
      %p152 = por %p150, %p151
      %p153 = scmp.ne.s32.totalorder %s141, %s142
      %p154 = scmp.eq.s32.totalorder %s47, 1
      %p155 = por %p153, %p154
      %p157 = scmp.ne.s32.totalorder %s142, %s156
      %p158 = scmp.eq.s32.totalorder %s47, 0
      %p159 = por %p157, %p158
      %s161 = sadd.s32 %s160, 1
      %p164 = scmp.eq.s32.totalorder %s41, 1
      %p165 = scmp.ne.s32.totalorder %s160, %s162
      %p166 = scmp.eq.s32.totalorder %s41, 0
      %p167 = por %p165, %p166
      %p168 = scmp.ne.s32.totalorder %s160, %s162
      %p169 = scmp.eq.s32.totalorder %s46, 1
      %p170 = por %p168, %p169
      %p171 = scmp.ne.s32.totalorder %s162, %s163
      %p172 = scmp.eq.s32.totalorder %s46, 0
      %p173 = por %p171, %p172
      %p174 = scmp.ne.s32.totalorder %s162, %s163
      %p175 = scmp.eq.s32.totalorder %s47, 1
      %p176 = por %p174, %p175
      %p178 = scmp.ne.s32.totalorder %s163, %s177
      %p179 = scmp.eq.s32.totalorder %s47, 0
      %p180 = por %p178, %p179
      %s182 = sadd.s32 %s181, 1
      %p185 = scmp.eq.s32.totalorder %s41, 1
      %p186 = scmp.ne.s32.totalorder %s181, %s183
      %p187 = scmp.eq.s32.totalorder %s41, 0
      %p188 = por %p186, %p187
      %p189 = scmp.ne.s32.totalorder %s181, %s183
      %p190 = scmp.eq.s32.totalorder %s46, 1
      %p191 = por %p189, %p190
      %p192 = scmp.ne.s32.totalorder %s183, %s184
      %p193 = scmp.eq.s32.totalorder %s46, 0
      %p194 = por %p192, %p193
      %p195 = scmp.ne.s32.totalorder %s183, %s184
      %p196 = scmp.eq.s32.totalorder %s47, 1
      %p197 = por %p195, %p196
      %p199 = scmp.ne.s32.totalorder %s184, %s198
      %p200 = scmp.eq.s32.totalorder %s47, 0
      %p201 = por %p199, %p200
      %s203 = sadd.s32 %s202, 1
      %p206 = scmp.eq.s32.totalorder %s41, 1
      %p207 = scmp.ne.s32.totalorder %s202, %s204
      %p208 = scmp.eq.s32.totalorder %s41, 0
      %p209 = por %p207, %p208
      %p210 = scmp.ne.s32.totalorder %s202, %s204
      %p211 = scmp.eq.s32.totalorder %s46, 1
      %p212 = por %p210, %p211
      %p213 = scmp.ne.s32.totalorder %s204, %s205
      %p214 = scmp.eq.s32.totalorder %s46, 0
      %p215 = por %p213, %p214
      %p216 = scmp.ne.s32.totalorder %s204, %s205
      %p217 = scmp.eq.s32.totalorder %s47, 1
      %p218 = por %p216, %p217
      %p220 = scmp.ne.s32.totalorder %s205, %s219
      %p221 = scmp.eq.s32.totalorder %s47, 0
      %p222 = por %p220, %p221
      %s224 = sadd.s32 %s223, 1
      %p227 = scmp.eq.s32.totalorder %s41, 1
      %p228 = scmp.ne.s32.totalorder %s223, %s225
      %p229 = scmp.eq.s32.totalorder %s41, 0
      %p230 = por %p228, %p229
      %p231 = scmp.ne.s32.totalorder %s223, %s225
      %p232 = scmp.eq.s32.totalorder %s46, 1
      %p233 = por %p231, %p232
      %p234 = scmp.ne.s32.totalorder %s225, %s226
      %p235 = scmp.eq.s32.totalorder %s46, 0
      %p236 = por %p234, %p235
      %p237 = scmp.ne.s32.totalorder %s225, %s226
      %p238 = scmp.eq.s32.totalorder %s47, 1
      %p239 = por %p237, %p238
      %p241 = scmp.ne.s32.totalorder %s226, %s240
      %p242 = scmp.eq.s32.totalorder %s47, 0
      %p243 = por %p241, %p242
      %s245 = sadd.s32 %s244, 1
      %p248 = scmp.eq.s32.totalorder %s41, 1
      %p249 = scmp.ne.s32.totalorder %s244, %s246
      %p250 = scmp.eq.s32.totalorder %s41, 0
      %p251 = por %p249, %p250
      %p252 = scmp.ne.s32.totalorder %s244, %s246
      %p253 = scmp.eq.s32.totalorder %s46, 1
      %p254 = por %p252, %p253
      %p255 = scmp.ne.s32.totalorder %s246, %s247
      %p256 = scmp.eq.s32.totalorder %s46, 0
      %p257 = por %p255, %p256
      %p258 = scmp.ne.s32.totalorder %s246, %s247
      %p259 = scmp.eq.s32.totalorder %s47, 1
      %p260 = por %p258, %p259
      %p262 = scmp.ne.s32.totalorder %s247, %s261
      %p263 = scmp.eq.s32.totalorder %s47, 0
      %p264 = por %p262, %p263
      %s266 = sadd.s32 %s265, 1
      %p269 = scmp.eq.s32.totalorder %s41, 1
      %p270 = scmp.ne.s32.totalorder %s265, %s267
      %p271 = scmp.eq.s32.totalorder %s41, 0
      %p272 = por %p270, %p271
      %p273 = scmp.ne.s32.totalorder %s265, %s267
      %p274 = scmp.eq.s32.totalorder %s46, 1
      %p275 = por %p273, %p274
      %p276 = scmp.ne.s32.totalorder %s267, %s268
      %p277 = scmp.eq.s32.totalorder %s46, 0
      %p278 = por %p276, %p277
      %p279 = scmp.ne.s32.totalorder %s267, %s268
      %p280 = scmp.eq.s32.totalorder %s47, 1
      %p281 = por %p279, %p280
      %p283 = scmp.ne.s32.totalorder %s268, %s282
      %p284 = scmp.eq.s32.totalorder %s47, 0
      %p285 = por %p283, %p284
      %s287 = sadd.s32 %s286, 1
      %p290 = scmp.eq.s32.totalorder %s41, 1
      %p291 = scmp.ne.s32.totalorder %s286, %s288
      %p292 = scmp.eq.s32.totalorder %s41, 0
      %p293 = por %p291, %p292
      %p294 = scmp.ne.s32.totalorder %s286, %s288
      %p295 = scmp.eq.s32.totalorder %s46, 1
      %p296 = por %p294, %p295
      %p297 = scmp.ne.s32.totalorder %s288, %s289
      %p298 = scmp.eq.s32.totalorder %s46, 0
      %p299 = por %p297, %p298
      %p300 = scmp.ne.s32.totalorder %s288, %s289
      %p301 = scmp.eq.s32.totalorder %s47, 1
      %p302 = por %p300, %p301
      %p304 = scmp.ne.s32.totalorder %s289, %s303
      %p305 = scmp.eq.s32.totalorder %s47, 0
      %p306 = por %p304, %p305
      %s308 = sadd.s32 %s307, 1
      %p311 = scmp.eq.s32.totalorder %s41, 1
      %p312 = scmp.ne.s32.totalorder %s307, %s309
      %p313 = scmp.eq.s32.totalorder %s41, 0
      %p314 = por %p312, %p313
      %p315 = scmp.ne.s32.totalorder %s307, %s309
      %p316 = scmp.eq.s32.totalorder %s46, 1
      %p317 = por %p315, %p316
      %p318 = scmp.ne.s32.totalorder %s309, %s310
      %p319 = scmp.eq.s32.totalorder %s46, 0
      %p320 = por %p318, %p319
      %p321 = scmp.ne.s32.totalorder %s309, %s310
      %p322 = scmp.eq.s32.totalorder %s47, 1
      %p323 = por %p321, %p322
      %p325 = scmp.ne.s32.totalorder %s310, %s324
      %p326 = scmp.eq.s32.totalorder %s47, 0
      %p327 = por %p325, %p326
      %s329 = sadd.s32 %s328, 1
      %p332 = scmp.eq.s32.totalorder %s41, 1
      %p333 = scmp.ne.s32.totalorder %s328, %s330
      %p334 = scmp.eq.s32.totalorder %s41, 0
      %p335 = por %p333, %p334
      %p336 = scmp.ne.s32.totalorder %s328, %s330
      %p337 = scmp.eq.s32.totalorder %s46, 1
      %p338 = por %p336, %p337
      %p339 = scmp.ne.s32.totalorder %s330, %s331
      %p340 = scmp.eq.s32.totalorder %s46, 0
      %p341 = por %p339, %p340
      %p342 = scmp.ne.s32.totalorder %s330, %s331
      %p343 = scmp.eq.s32.totalorder %s47, 1
      %p344 = por %p342, %p343
      %p346 = scmp.ne.s32.totalorder %s331, %s345
      %p347 = scmp.eq.s32.totalorder %s47, 0
      %p348 = por %p346, %p347
      %s350 = sadd.s32 %s349, 1
      %p353 = scmp.eq.s32.totalorder %s41, 1
      %p354 = scmp.ne.s32.totalorder %s349, %s351
      %p355 = scmp.eq.s32.totalorder %s41, 0
      %p356 = por %p354, %p355
      %p357 = scmp.ne.s32.totalorder %s349, %s351
      %p358 = scmp.eq.s32.totalorder %s46, 1
      %p359 = por %p357, %p358
      %p360 = scmp.ne.s32.totalorder %s351, %s352
      %p361 = scmp.eq.s32.totalorder %s46, 0
      %p362 = por %p360, %p361
      %p363 = scmp.ne.s32.totalorder %s351, %s352
      %p364 = scmp.eq.s32.totalorder %s47, 1
      %p365 = por %p363, %p364
      %p367 = scmp.ne.s32.totalorder %s352, %s366
      %p368 = scmp.eq.s32.totalorder %s47, 0
      %p369 = por %p367, %p368
      %s371 = sadd.s32 %s370, 1
      %p374 = scmp.eq.s32.totalorder %s41, 1
      %p375 = scmp.ne.s32.totalorder %s370, %s372
      %p376 = scmp.eq.s32.totalorder %s41, 0
      %p377 = por %p375, %p376
      %p378 = scmp.ne.s32.totalorder %s370, %s372
      %p379 = scmp.eq.s32.totalorder %s46, 1
      %p380 = por %p378, %p379
      %p381 = scmp.ne.s32.totalorder %s372, %s373
      %p382 = scmp.eq.s32.totalorder %s46, 0
      %p383 = por %p381, %p382
      %p384 = scmp.ne.s32.totalorder %s372, %s373
      %p385 = scmp.eq.s32.totalorder %s47, 1
      %p386 = por %p384, %p385
      %p388 = scmp.ne.s32.totalorder %s373, %s387
      %p389 = scmp.eq.s32.totalorder %s47, 0
      %p390 = por %p388, %p389
      %s392 = sadd.s32 %s391, 1
      %p395 = scmp.eq.s32.totalorder %s41, 1
      %p396 = scmp.ne.s32.totalorder %s391, %s393
      %p397 = scmp.eq.s32.totalorder %s41, 0
      %p398 = por %p396, %p397
      %p399 = scmp.ne.s32.totalorder %s391, %s393
      %p400 = scmp.eq.s32.totalorder %s46, 1
      %p401 = por %p399, %p400
      %p402 = scmp.ne.s32.totalorder %s393, %s394
      %p403 = scmp.eq.s32.totalorder %s46, 0
      %p404 = por %p402, %p403
      %p405 = scmp.ne.s32.totalorder %s393, %s394
      %p406 = scmp.eq.s32.totalorder %s47, 1
      %p407 = por %p405, %p406
      %p409 = scmp.ne.s32.totalorder %s394, %s408
      %p410 = scmp.eq.s32.totalorder %s47, 0
      %p411 = por %p409, %p410
      %s413 = sadd.s32 %s412, 1
      %p416 = scmp.eq.s32.totalorder %s41, 1
      %p417 = scmp.ne.s32.totalorder %s412, %s414
      %p418 = scmp.eq.s32.totalorder %s41, 0
      %p419 = por %p417, %p418
      %p420 = scmp.ne.s32.totalorder %s412, %s414
      %p421 = scmp.eq.s32.totalorder %s46, 1
      %p422 = por %p420, %p421
      %p423 = scmp.ne.s32.totalorder %s414, %s415
      %p424 = scmp.eq.s32.totalorder %s46, 0
      %p425 = por %p423, %p424
      %p426 = scmp.ne.s32.totalorder %s414, %s415
      %p427 = scmp.eq.s32.totalorder %s47, 1
      %p428 = por %p426, %p427
      %p430 = scmp.ne.s32.totalorder %s415, %s429
      %p431 = scmp.eq.s32.totalorder %s47, 0
      %p432 = por %p430, %p431
      %s434 = sadd.s32 %s433, 1
      %p437 = scmp.eq.s32.totalorder %s41, 1
      %p438 = scmp.ne.s32.totalorder %s433, %s435
      %p439 = scmp.eq.s32.totalorder %s41, 0
      %p440 = por %p438, %p439
      %p441 = scmp.ne.s32.totalorder %s433, %s435
      %p442 = scmp.eq.s32.totalorder %s46, 1
      %p443 = por %p441, %p442
      %p444 = scmp.ne.s32.totalorder %s435, %s436
      %p445 = scmp.eq.s32.totalorder %s46, 0
      %p446 = por %p444, %p445
      %p447 = scmp.ne.s32.totalorder %s435, %s436
      %p448 = scmp.eq.s32.totalorder %s47, 1
      %p449 = por %p447, %p448
      %p451 = scmp.ne.s32.totalorder %s436, %s450
      %p452 = scmp.eq.s32.totalorder %s47, 0
      %p453 = por %p451, %p452
      %s455 = sadd.s32 %s454, 1
      %p458 = scmp.eq.s32.totalorder %s41, 1
      %p459 = scmp.ne.s32.totalorder %s454, %s456
      %p460 = scmp.eq.s32.totalorder %s41, 0
      %p461 = por %p459, %p460
      %p462 = scmp.ne.s32.totalorder %s454, %s456
      %p463 = scmp.eq.s32.totalorder %s46, 1
      %p464 = por %p462, %p463
      %p465 = scmp.ne.s32.totalorder %s456, %s457
      %p466 = scmp.eq.s32.totalorder %s46, 0
      %p467 = por %p465, %p466
      %p468 = scmp.ne.s32.totalorder %s456, %s457
      %p469 = scmp.eq.s32.totalorder %s47, 1
      %p470 = por %p468, %p469
      %p472 = scmp.ne.s32.totalorder %s457, %s471
      %p473 = scmp.eq.s32.totalorder %s47, 0
      %p474 = por %p472, %p473
      %s476 = sadd.s32 %s475, 1
      %p479 = scmp.eq.s32.totalorder %s41, 1
      %p480 = scmp.ne.s32.totalorder %s475, %s477
      %p481 = scmp.eq.s32.totalorder %s41, 0
      %p482 = por %p480, %p481
      %p483 = scmp.ne.s32.totalorder %s475, %s477
      %p484 = scmp.eq.s32.totalorder %s46, 1
      %p485 = por %p483, %p484
      %p486 = scmp.ne.s32.totalorder %s477, %s478
      %p487 = scmp.eq.s32.totalorder %s46, 0
      %p488 = por %p486, %p487
      %p489 = scmp.ne.s32.totalorder %s477, %s478
      %p490 = scmp.eq.s32.totalorder %s47, 1
      %p491 = por %p489, %p490
      %p493 = scmp.ne.s32.totalorder %s478, %s492
      %p494 = scmp.eq.s32.totalorder %s47, 0
      %p495 = por %p493, %p494
      %s497 = sadd.s32 %s496, 1
      %p500 = scmp.eq.s32.totalorder %s41, 1
      %p501 = scmp.ne.s32.totalorder %s496, %s498
      %p502 = scmp.eq.s32.totalorder %s41, 0
      %p503 = por %p501, %p502
      %p504 = scmp.ne.s32.totalorder %s496, %s498
      %p505 = scmp.eq.s32.totalorder %s46, 1
      %p506 = por %p504, %p505
      %p507 = scmp.ne.s32.totalorder %s498, %s499
      %p508 = scmp.eq.s32.totalorder %s46, 0
      %p509 = por %p507, %p508
      %p510 = scmp.ne.s32.totalorder %s498, %s499
      %p511 = scmp.eq.s32.totalorder %s47, 1
      %p512 = por %p510, %p511
      %p514 = scmp.ne.s32.totalorder %s499, %s513
      %p515 = scmp.eq.s32.totalorder %s47, 0
      %p516 = por %p514, %p515
      %s518 = sadd.s32 %s517, 1
      %p521 = scmp.eq.s32.totalorder %s41, 1
      %p522 = scmp.ne.s32.totalorder %s517, %s519
      %p523 = scmp.eq.s32.totalorder %s41, 0
      %p524 = por %p522, %p523
      %p525 = scmp.ne.s32.totalorder %s517, %s519
      %p526 = scmp.eq.s32.totalorder %s46, 1
      %p527 = por %p525, %p526
      %p528 = scmp.ne.s32.totalorder %s519, %s520
      %p529 = scmp.eq.s32.totalorder %s46, 0
      %p530 = por %p528, %p529
      %p531 = scmp.ne.s32.totalorder %s519, %s520
      %p532 = scmp.eq.s32.totalorder %s47, 1
      %p533 = por %p531, %p532
      %p535 = scmp.ne.s32.totalorder %s520, %s534
      %p536 = scmp.eq.s32.totalorder %s47, 0
      %p537 = por %p535, %p536
      %s539 = sadd.s32 %s538, 1
      %p542 = scmp.eq.s32.totalorder %s41, 1
      %p543 = scmp.ne.s32.totalorder %s538, %s540
      %p544 = scmp.eq.s32.totalorder %s41, 0
      %p545 = por %p543, %p544
      %p546 = scmp.ne.s32.totalorder %s538, %s540
      %p547 = scmp.eq.s32.totalorder %s46, 1
      %p548 = por %p546, %p547
      %p549 = scmp.ne.s32.totalorder %s540, %s541
      %p550 = scmp.eq.s32.totalorder %s46, 0
      %p551 = por %p549, %p550
      %p552 = scmp.ne.s32.totalorder %s540, %s541
      %p553 = scmp.eq.s32.totalorder %s47, 1
      %p554 = por %p552, %p553
      %p556 = scmp.ne.s32.totalorder %s541, %s555
      %p557 = scmp.eq.s32.totalorder %s47, 0
      %p558 = por %p556, %p557
      %s559 = ssub.s32 %s48, %s60
      %s560 = ssub.s32 %s49, %s56
      %s561 = sor.u32 %s559, %s560
      %p562 = scmp.eq.s32.totalorder %s561, 0
      %s564 = sadd.s32 %s563, 1
      %s565 = scalar_select %p562, %s563, %s564
      %p568 = pneg %p562
      %p569 = scmp.eq.s32.totalorder %s41, 1
      %p570 = por %p568, %p569
      %p571 = scmp.ne.s32.totalorder %s563, %s566
      %p572 = scmp.eq.s32.totalorder %s41, 0
      %p573 = por %p571, %p572
      %p574 = scmp.ne.s32.totalorder %s563, %s566
      %p575 = scmp.eq.s32.totalorder %s46, 1
      %p576 = por %p574, %p575
      %p577 = scmp.ne.s32.totalorder %s566, %s567
      %p578 = scmp.eq.s32.totalorder %s46, 0
      %p579 = por %p577, %p578
      %p580 = scmp.ne.s32.totalorder %s566, %s567
      %p581 = scmp.eq.s32.totalorder %s47, 1
      %p582 = por %p580, %p581
      %p584 = scmp.ne.s32.totalorder %s567, %s583
      %p585 = scmp.eq.s32.totalorder %s47, 0
      %p586 = por %p584, %p585
      %p587 = scmp.le.s32.totalorder 1, %s41
      %p588 = scmp.lt.s32.totalorder %s41, 3
      %p589 = pnand %p587, %p588
      %p590 = pneg %p589
      // Predicated region
      $region9: #{tpu_custom_call.1} parent=5 // pred_check
        _
      $region10: #{tpu_custom_call.1} parent=5 // pred_check_branch
        %592 = sbr.rel (%p589) target = $region12
      $region11: #{tpu_custom_call.1} parent=5 // pred_region
        %s593 = ssub.s32 %s41, 1
        // Predicated region
        $region13: #{tpu_custom_call.1} parent=11 // pred_check
          %p594 = pneg %p152
        $region14: #{tpu_custom_call.1} parent=11 // pred_check_branch
          %596 = sbr.rel (%p594) target = $region16
        $region15: #{tpu_custom_call.1} parent=11 // pred_region
          %s598 = ssub.s32 256, 256
          %599 = vsyncadd [#allocation11], %s598
          %s600 = sshll.u32 [#allocation10], 4
          %s601 = int_to_ptr.vmem [resolvable:$true] %s600
          %606 = dma.hbm_to_vmem [thread:$0]  %s3, 256, %s601, [#allocation11], 64, 64, 4
        $region16: #{tpu_custom_call.1} parent=11 // pred_fallthru
          _
        // Predicated region
        $region17: #{tpu_custom_call.1} parent=11 // pred_check
          %p607 = pneg %p173
        $region18: #{tpu_custom_call.1} parent=11 // pred_check_branch
          %609 = sbr.rel (%p607) target = $region20
        $region19: #{tpu_custom_call.1} parent=11 // pred_region
          %s611 = ssub.s32 16, 16
          %612 = vsyncadd [#allocation11], %s611
          %s614 = sshll.u32 [#allocation12], 4
          %s615 = int_to_ptr.vmem [resolvable:$true] %s614
          %617 = dma.hbm_to_vmem [thread:$0]  %s4, 16, %s615, [#allocation11]
        $region20: #{tpu_custom_call.1} parent=11 // pred_fallthru
          _
        // Predicated region
        $region21: #{tpu_custom_call.1} parent=11 // pred_check
          %p618 = pneg %p194
        $region22: #{tpu_custom_call.1} parent=11 // pred_check_branch
          %620 = sbr.rel (%p618) target = $region24
        $region23: #{tpu_custom_call.1} parent=11 // pred_region
          %s622 = ssub.s32 256, 256
          %623 = vsyncadd [#allocation14], %s622
          %s624 = sshll.u32 [#allocation13], 4
          %s625 = int_to_ptr.vmem [resolvable:$true] %s624
          %630 = dma.hbm_to_vmem [thread:$0]  %s5, 256, %s625, [#allocation14], 64, 64, 4
        $region24: #{tpu_custom_call.1} parent=11 // pred_fallthru
          _
        // Predicated region
        $region25: #{tpu_custom_call.1} parent=11 // pred_check
          %p631 = pneg %p215
        $region26: #{tpu_custom_call.1} parent=11 // pred_check_branch
          %633 = sbr.rel (%p631) target = $region28
        $region27: #{tpu_custom_call.1} parent=11 // pred_region
          %s635 = ssub.s32 16, 16
          %636 = vsyncadd [#allocation14], %s635
          %s638 = sshll.u32 [#allocation15], 4
          %s639 = int_to_ptr.vmem [resolvable:$true] %s638
          %641 = dma.hbm_to_vmem [thread:$0]  %s6, 16, %s639, [#allocation14]
        $region28: #{tpu_custom_call.1} parent=11 // pred_fallthru
          _
        // Predicated region
        $region29: #{tpu_custom_call.1} parent=11 // pred_check
          %p642 = pneg %p236
        $region30: #{tpu_custom_call.1} parent=11 // pred_check_branch
          %644 = sbr.rel (%p642) target = $region32
        $region31: #{tpu_custom_call.1} parent=11 // pred_region
          %s646 = ssub.s32 16, 16
          %647 = vsyncadd [#allocation17], %s646
          %s649 = sshll.u32 [#allocation16], 4
          %s650 = int_to_ptr.vmem [resolvable:$true] %s649
          %652 = dma.hbm_to_vmem [thread:$0]  %s7, 16, %s650, [#allocation17]
        $region32: #{tpu_custom_call.1} parent=11 // pred_fallthru
          _
        // Predicated region
        $region33: #{tpu_custom_call.1} parent=11 // pred_check
          %p653 = pneg %p257
        $region34: #{tpu_custom_call.1} parent=11 // pred_check_branch
          %655 = sbr.rel (%p653) target = $region36
        $region35: #{tpu_custom_call.1} parent=11 // pred_region
          %s657 = ssub.s32 16, 16
          %658 = vsyncadd [#allocation17], %s657
          %s660 = sshll.u32 [#allocation18], 4
          %s661 = int_to_ptr.vmem [resolvable:$true] %s660
          %663 = dma.hbm_to_vmem [thread:$0]  %s8, 16, %s661, [#allocation17]
        $region36: #{tpu_custom_call.1} parent=11 // pred_fallthru
          _
        // Predicated region
        $region37: #{tpu_custom_call.1} parent=11 // pred_check
          %p664 = pneg %p278
        $region38: #{tpu_custom_call.1} parent=11 // pred_check_branch
          %666 = sbr.rel (%p664) target = $region40
        $region39: #{tpu_custom_call.1} parent=11 // pred_region
          _
        $region40: #{tpu_custom_call.1} parent=11 // pred_fallthru
          _
        // Predicated region
        $region41: #{tpu_custom_call.1} parent=11 // pred_check
          %p667 = pneg %p299
        $region42: #{tpu_custom_call.1} parent=11 // pred_check_branch
          %669 = sbr.rel (%p667) target = $region44
        $region43: #{tpu_custom_call.1} parent=11 // pred_region
          %s671 = ssub.s32 16, 16
          %672 = vsyncadd [#allocation20], %s671
          %s674 = sshll.u32 [#allocation19], 4
          %s675 = int_to_ptr.vmem [resolvable:$true] %s674
          %677 = dma.hbm_to_vmem [thread:$0]  %s10, 16, %s675, [#allocation20]
        $region44: #{tpu_custom_call.1} parent=11 // pred_fallthru
          _
        // Predicated region
        $region45: #{tpu_custom_call.1} parent=11 // pred_check
          %p678 = pneg %p320
        $region46: #{tpu_custom_call.1} parent=11 // pred_check_branch
          %680 = sbr.rel (%p678) target = $region48
        $region47: #{tpu_custom_call.1} parent=11 // pred_region
          %s682 = ssub.s32 256, 256
          %683 = vsyncadd [#allocation20], %s682
          %s684 = sshll.u32 [#allocation21], 4
          %s685 = int_to_ptr.vmem [resolvable:$true] %s684
          %690 = dma.hbm_to_vmem [thread:$0]  %s11, 256, %s685, [#allocation20], 64, 64, 4
        $region48: #{tpu_custom_call.1} parent=11 // pred_fallthru
          _
        // Predicated region
        $region49: #{tpu_custom_call.1} parent=11 // pred_check
          %p691 = pneg %p341
        $region50: #{tpu_custom_call.1} parent=11 // pred_check_branch
          %693 = sbr.rel (%p691) target = $region52
        $region51: #{tpu_custom_call.1} parent=11 // pred_region
          %s695 = ssub.s32 16, 16
          %696 = vsyncadd [#allocation23], %s695
          %s698 = sshll.u32 [#allocation22], 4
          %s699 = int_to_ptr.vmem [resolvable:$true] %s698
          %701 = dma.hbm_to_vmem [thread:$0]  %s12, 16, %s699, [#allocation23]
        $region52: #{tpu_custom_call.1} parent=11 // pred_fallthru
          _
        // Predicated region
        $region53: #{tpu_custom_call.1} parent=11 // pred_check
          %p702 = pneg %p362
        $region54: #{tpu_custom_call.1} parent=11 // pred_check_branch
          %704 = sbr.rel (%p702) target = $region56
        $region55: #{tpu_custom_call.1} parent=11 // pred_region
          _
        $region56: #{tpu_custom_call.1} parent=11 // pred_fallthru
          _
        // Predicated region
        $region57: #{tpu_custom_call.1} parent=11 // pred_check
          %p705 = pneg %p383
        $region58: #{tpu_custom_call.1} parent=11 // pred_check_branch
          %707 = sbr.rel (%p705) target = $region60
        $region59: #{tpu_custom_call.1} parent=11 // pred_region
          %s709 = ssub.s32 16, 16
          %710 = vsyncadd [#allocation23], %s709
          %s712 = sshll.u32 [#allocation24], 4
          %s713 = int_to_ptr.vmem [resolvable:$true] %s712
          %715 = dma.hbm_to_vmem [thread:$0]  %s14, 16, %s713, [#allocation23]
        $region60: #{tpu_custom_call.1} parent=11 // pred_fallthru
          _
        // Predicated region
        $region61: #{tpu_custom_call.1} parent=11 // pred_check
          %p716 = pneg %p404
        $region62: #{tpu_custom_call.1} parent=11 // pred_check_branch
          %718 = sbr.rel (%p716) target = $region64
        $region63: #{tpu_custom_call.1} parent=11 // pred_region
          %s720 = ssub.s32 16, 16
          %721 = vsyncadd [#allocation26], %s720
          %s723 = sshll.u32 [#allocation25], 4
          %s724 = int_to_ptr.vmem [resolvable:$true] %s723
          %726 = dma.hbm_to_vmem [thread:$0]  %s15, 16, %s724, [#allocation26]
        $region64: #{tpu_custom_call.1} parent=11 // pred_fallthru
          _
        // Predicated region
        $region65: #{tpu_custom_call.1} parent=11 // pred_check
          %p727 = pneg %p425
        $region66: #{tpu_custom_call.1} parent=11 // pred_check_branch
          %729 = sbr.rel (%p727) target = $region68
        $region67: #{tpu_custom_call.1} parent=11 // pred_region
          %s731 = ssub.s32 16, 16
          %732 = vsyncadd [#allocation26], %s731
          %s734 = sshll.u32 [#allocation27], 4
          %s735 = int_to_ptr.vmem [resolvable:$true] %s734
          %737 = dma.hbm_to_vmem [thread:$0]  %s16, 16, %s735, [#allocation26]
        $region68: #{tpu_custom_call.1} parent=11 // pred_fallthru
          _
        // Predicated region
        $region69: #{tpu_custom_call.1} parent=11 // pred_check
          %p738 = pneg %p446
        $region70: #{tpu_custom_call.1} parent=11 // pred_check_branch
          %740 = sbr.rel (%p738) target = $region72
        $region71: #{tpu_custom_call.1} parent=11 // pred_region
          _
        $region72: #{tpu_custom_call.1} parent=11 // pred_fallthru
          _
        // Predicated region
        $region73: #{tpu_custom_call.1} parent=11 // pred_check
          %p741 = pneg %p467
        $region74: #{tpu_custom_call.1} parent=11 // pred_check_branch
          %743 = sbr.rel (%p741) target = $region76
        $region75: #{tpu_custom_call.1} parent=11 // pred_region
          _
        $region76: #{tpu_custom_call.1} parent=11 // pred_fallthru
          _
        // Predicated region
        $region77: #{tpu_custom_call.1} parent=11 // pred_check
          %p744 = pneg %p488
        $region78: #{tpu_custom_call.1} parent=11 // pred_check_branch
          %746 = sbr.rel (%p744) target = $region80
        $region79: #{tpu_custom_call.1} parent=11 // pred_region
          _
        $region80: #{tpu_custom_call.1} parent=11 // pred_fallthru
          _
        // Predicated region
        $region81: #{tpu_custom_call.1} parent=11 // pred_check
          %p747 = pneg %p509
        $region82: #{tpu_custom_call.1} parent=11 // pred_check_branch
          %749 = sbr.rel (%p747) target = $region84
        $region83: #{tpu_custom_call.1} parent=11 // pred_region
          _
        $region84: #{tpu_custom_call.1} parent=11 // pred_fallthru
          _
        // Predicated region
        $region85: #{tpu_custom_call.1} parent=11 // pred_check
          %p750 = pneg %p530
        $region86: #{tpu_custom_call.1} parent=11 // pred_check_branch
          %752 = sbr.rel (%p750) target = $region88
        $region87: #{tpu_custom_call.1} parent=11 // pred_region
          _
        $region88: #{tpu_custom_call.1} parent=11 // pred_fallthru
          _
        // Predicated region
        $region89: #{tpu_custom_call.1} parent=11 // pred_check
          %p753 = pneg %p551
        $region90: #{tpu_custom_call.1} parent=11 // pred_check_branch
          %755 = sbr.rel (%p753) target = $region92
        $region91: #{tpu_custom_call.1} parent=11 // pred_region
          _
        $region92: #{tpu_custom_call.1} parent=11 // pred_fallthru
          _
      $region12: #{tpu_custom_call.1} parent=5 // pred_fallthru
        _
      %p756 = scmp.lt.s32.totalorder %s41, 2
      // Predicated region
      $region93: #{tpu_custom_call.1} parent=5 // pred_check
        %p757 = pneg %p756
      $region94: #{tpu_custom_call.1} parent=5 // pred_check_branch
        %759 = sbr.rel (%p757) target = $region96
      $region95: #{tpu_custom_call.1} parent=5 // pred_region
        // Predicated region
        $region97: #{tpu_custom_call.1} parent=95 // pred_check
          %p760 = pneg %p73
        $region98: #{tpu_custom_call.1} parent=95 // pred_check_branch
          %762 = sbr.rel (%p760) target = $region100
        $region99: #{tpu_custom_call.1} parent=95 // pred_region
          %s763 = sand.u32 %s63, 1
          %s764 = scalar_lea.sflag [#allocation8], %s763
          %s765 = sand.u32 %s63, 1
          %s766 = scalar_lea.vmem [#allocation7], %s765
          %s768 = ssub.s32 16, 16
          %769 = vsyncadd %s764, %s768
          %s770 = smul.addr %s48, 16
          %s771 = scalar_lea.hbm %s0, %s770
          %s773 = sshll.u32 %s766, 4
          %s774 = int_to_ptr.vmem [resolvable:$true] %s773
          %776 = dma.hbm_to_vmem [thread:$0]  %s771, 16, %s774, %s764
        $region100: #{tpu_custom_call.1} parent=95 // pred_fallthru
          _
        // Predicated region
        $region101: #{tpu_custom_call.1} parent=95 // pred_check
          %p777 = pneg %p99
        $region102: #{tpu_custom_call.1} parent=95 // pred_check_branch
          %779 = sbr.rel (%p777) target = $region104
        $region103: #{tpu_custom_call.1} parent=95 // pred_region
          %p780 = scmp.lt.s32.totalorder %s48, 1
          %s781 = scalar_select %p780, %s48, 1
          %s782 = smul.addr %s781, 8
          %s783 = scalar_lea.vmem %s1, %s782
        $region104: #{tpu_custom_call.1} parent=95 // pred_fallthru
          _
        // Predicated region
        $region105: #{tpu_custom_call.1} parent=95 // pred_check
          %p784 = pneg %p125
        $region106: #{tpu_custom_call.1} parent=95 // pred_check_branch
          %786 = sbr.rel (%p784) target = $region108
        $region107: #{tpu_custom_call.1} parent=95 // pred_region
          %p787 = scmp.lt.s32.totalorder %s48, 1
          %s788 = scalar_select %p787, %s48, 1
          %s789 = smul.addr %s788, 2
          %s790 = smul.addr %s789, 8
          %s791 = scalar_lea.vmem %s2, %s790
        $region108: #{tpu_custom_call.1} parent=95 // pred_fallthru
          _
      $region96: #{tpu_custom_call.1} parent=5 // pred_fallthru
        _
      %p792 = scmp.le.s32.totalorder 1, %s41
      %p793 = scmp.lt.s32.totalorder %s41, 3
      %p794 = pnand %p792, %p793
      %p795 = pneg %p794
      // Predicated region
      $region109: #{tpu_custom_call.1} parent=5 // pred_check
        _
      $region110: #{tpu_custom_call.1} parent=5 // pred_check_branch
        %797 = sbr.rel (%p794) target = $region112
      $region111: #{tpu_custom_call.1} parent=5 // pred_region
        %s798 = ssub.s32 %s41, 1
        %s799 = sand.u32 %s66, 1
        %s800 = scalar_lea.sflag [#allocation8], %s799
        %s801 = sand.u32 %s66, 1
        %s802 = scalar_lea.vmem [#allocation7], %s801
        // Predicated region
        $region113: #{tpu_custom_call.1} parent=111 // pred_check
          %p803 = pneg %p79
        $region114: #{tpu_custom_call.1} parent=111 // pred_check_branch
          %805 = sbr.rel (%p803) target = $region116
        $region115: #{tpu_custom_call.1} parent=111 // pred_region
          %806 = dma.done %s800, 16
        $region116: #{tpu_custom_call.1} parent=111 // pred_fallthru
          _
        // Predicated region
        $region117: #{tpu_custom_call.1} parent=111 // pred_check
          %p807 = pneg %p152
        $region118: #{tpu_custom_call.1} parent=111 // pred_check_branch
          %809 = sbr.rel (%p807) target = $region120
        $region119: #{tpu_custom_call.1} parent=111 // pred_region
          %810 = dma.done [#allocation11], 256
        $region120: #{tpu_custom_call.1} parent=111 // pred_fallthru
          _
        // Predicated region
        $region121: #{tpu_custom_call.1} parent=111 // pred_check
          %p811 = pneg %p173
        $region122: #{tpu_custom_call.1} parent=111 // pred_check_branch
          %813 = sbr.rel (%p811) target = $region124
        $region123: #{tpu_custom_call.1} parent=111 // pred_region
          %814 = dma.done [#allocation11], 16
        $region124: #{tpu_custom_call.1} parent=111 // pred_fallthru
          _
        // Predicated region
        $region125: #{tpu_custom_call.1} parent=111 // pred_check
          %p815 = pneg %p194
        $region126: #{tpu_custom_call.1} parent=111 // pred_check_branch
          %817 = sbr.rel (%p815) target = $region128
        $region127: #{tpu_custom_call.1} parent=111 // pred_region
          %818 = dma.done [#allocation14], 256
        $region128: #{tpu_custom_call.1} parent=111 // pred_fallthru
          _
        // Predicated region
        $region129: #{tpu_custom_call.1} parent=111 // pred_check
          %p819 = pneg %p215
        $region130: #{tpu_custom_call.1} parent=111 // pred_check_branch
          %821 = sbr.rel (%p819) target = $region132
        $region131: #{tpu_custom_call.1} parent=111 // pred_region
          %822 = dma.done [#allocation14], 16
        $region132: #{tpu_custom_call.1} parent=111 // pred_fallthru
          _
        // Predicated region
        $region133: #{tpu_custom_call.1} parent=111 // pred_check
          %p823 = pneg %p236
        $region134: #{tpu_custom_call.1} parent=111 // pred_check_branch
          %825 = sbr.rel (%p823) target = $region136
        $region135: #{tpu_custom_call.1} parent=111 // pred_region
          %826 = dma.done [#allocation17], 16
        $region136: #{tpu_custom_call.1} parent=111 // pred_fallthru
          _
        // Predicated region
        $region137: #{tpu_custom_call.1} parent=111 // pred_check
          %p827 = pneg %p257
        $region138: #{tpu_custom_call.1} parent=111 // pred_check_branch
          %829 = sbr.rel (%p827) target = $region140
        $region139: #{tpu_custom_call.1} parent=111 // pred_region
          %830 = dma.done [#allocation17], 16
        $region140: #{tpu_custom_call.1} parent=111 // pred_fallthru
          _
        // Predicated region
        $region141: #{tpu_custom_call.1} parent=111 // pred_check
          %p831 = pneg %p299
        $region142: #{tpu_custom_call.1} parent=111 // pred_check_branch
          %833 = sbr.rel (%p831) target = $region144
        $region143: #{tpu_custom_call.1} parent=111 // pred_region
          %834 = dma.done [#allocation20], 16
        $region144: #{tpu_custom_call.1} parent=111 // pred_fallthru
          _
        // Predicated region
        $region145: #{tpu_custom_call.1} parent=111 // pred_check
          %p835 = pneg %p320
        $region146: #{tpu_custom_call.1} parent=111 // pred_check_branch
          %837 = sbr.rel (%p835) target = $region148
        $region147: #{tpu_custom_call.1} parent=111 // pred_region
          %838 = dma.done [#allocation20], 256
        $region148: #{tpu_custom_call.1} parent=111 // pred_fallthru
          _
        // Predicated region
        $region149: #{tpu_custom_call.1} parent=111 // pred_check
          %p839 = pneg %p341
        $region150: #{tpu_custom_call.1} parent=111 // pred_check_branch
          %841 = sbr.rel (%p839) target = $region152
        $region151: #{tpu_custom_call.1} parent=111 // pred_region
          %842 = dma.done [#allocation23], 16
        $region152: #{tpu_custom_call.1} parent=111 // pred_fallthru
          _
        // Predicated region
        $region153: #{tpu_custom_call.1} parent=111 // pred_check
          %p843 = pneg %p383
        $region154: #{tpu_custom_call.1} parent=111 // pred_check_branch
          %845 = sbr.rel (%p843) target = $region156
        $region155: #{tpu_custom_call.1} parent=111 // pred_region
          %846 = dma.done [#allocation23], 16
        $region156: #{tpu_custom_call.1} parent=111 // pred_fallthru
          _
        // Predicated region
        $region157: #{tpu_custom_call.1} parent=111 // pred_check
          %p847 = pneg %p404
        $region158: #{tpu_custom_call.1} parent=111 // pred_check_branch
          %849 = sbr.rel (%p847) target = $region160
        $region159: #{tpu_custom_call.1} parent=111 // pred_region
          %850 = dma.done [#allocation26], 16
        $region160: #{tpu_custom_call.1} parent=111 // pred_fallthru
          _
        // Predicated region
        $region161: #{tpu_custom_call.1} parent=111 // pred_check
          %p851 = pneg %p425
        $region162: #{tpu_custom_call.1} parent=111 // pred_check_branch
          %853 = sbr.rel (%p851) target = $region164
        $region163: #{tpu_custom_call.1} parent=111 // pred_region
          %854 = dma.done [#allocation26], 16
        $region164: #{tpu_custom_call.1} parent=111 // pred_fallthru
          _
        %s855 = sand.u32 %s66, 1
        %s856 = scalar_lea.sflag [#allocation8], %s855
        %s857 = sand.u32 %s66, 1
        %s858 = scalar_lea.vmem [#allocation7], %s857
        %p859 = pneg %p79
        %p860 = pneg %p76
        %p861 = scmp.lt.s32.totalorder %s50, 1
        %s862 = scalar_select %p861, %s50, 1
        %s863 = smul.addr %s862, 8
        %s864 = scalar_lea.vmem %s1, %s863
        %p865 = pneg %p105
        %p866 = pneg %p102
        %p867 = scmp.lt.s32.totalorder %s50, 1
        %s868 = scalar_select %p867, %s50, 1
        %s869 = smul.addr %s868, 2
        %s870 = smul.addr %s869, 8
        %s871 = scalar_lea.vmem %s2, %s870
        %p872 = pneg %p131
        %p873 = pneg %p128
        %p874 = pneg %p152
        %p875 = pneg %p149
        %p876 = pneg %p173
        %p877 = pneg %p170
        %p878 = pneg %p194
        %p879 = pneg %p191
        %p880 = pneg %p215
        %p881 = pneg %p212
        %p882 = pneg %p236
        %p883 = pneg %p233
        %p884 = pneg %p257
        %p885 = pneg %p254
        %p886 = pneg %p278
        %p887 = pneg %p275
        %p888 = pneg %p299
        %p889 = pneg %p296
        %p890 = pneg %p320
        %p891 = pneg %p317
        %p892 = pneg %p341
        %p893 = pneg %p338
        %p894 = pneg %p362
        %p895 = pneg %p359
        %p896 = pneg %p383
        %p897 = pneg %p380
        %p898 = pneg %p404
        %p899 = pneg %p401
        %p900 = pneg %p425
        %p901 = pneg %p422
        %p902 = pneg %p446
        %p903 = pneg %p443
        %p904 = pneg %p467
        %p905 = pneg %p464
        %p906 = pneg %p488
        %p907 = pneg %p485
        %p908 = pneg %p509
        %p909 = pneg %p506
        %p910 = pneg %p530
        %p911 = pneg %p527
        %p912 = pneg %p551
        %p913 = pneg %p548
        %p914 = pneg %p579
        %p915 = pneg %p576
        %s916 = sand.u32 %s566, 1
        %s917 = scalar_lea.sflag [#allocation9], %s916
        %s918 = sand.u32 %s566, 1
        %s919 = smul.addr %s918, 8
        %s920 = scalar_lea.vmem [#allocation28], %s919
        %p921 = scmp.lt.s32.totalorder %s50, 1
        %s922 = scalar_select %p921, %s50, 1
        %s923 = smul.addr %s922, 8
        %s924 = scalar_lea.vmem %s1, %s923
        %p925 = scmp.lt.s32.totalorder %s50, 1
        %s926 = scalar_select %p925, %s50, 1
        %s927 = smul.addr %s926, 2
        %s928 = smul.addr %s927, 8
        %s929 = scalar_lea.vmem %s2, %s928
        %p931 = scmp.eq.s32.totalorder %s51, 0
        // Predicated region
        $region165: #{tpu_custom_call.1} parent=111 // pred_check
          %p932 = pneg %p931
        $region166: #{tpu_custom_call.1} parent=111 // pred_check_branch
          %934 = sbr.rel (%p932) target = $region168
        $region167: #{tpu_custom_call.1} parent=111 // pred_region
          %v935 = vld [vmem:[%s924] sm:$0xff]
          %v936 = vpack.c.bf16 %v935, %v935
          %v937 = vld [vmem:[#allocation10] sm:$0xf]
          %v938 = vld [vmem:[#allocation10 + $0x4] sm:$0xf]
          %v939 = vld [vmem:[#allocation10 + $0x8] sm:$0xf]
          %v940 = vld [vmem:[#allocation10 + $0xc] sm:$0xf]
          %v941 = vld [vmem:[#allocation12] sm:$0x1]
          %v943 = vlaneseq
          %v944 = vshrl.u32 %v943, 7
          %v945 = vsub.s32 0, %v944
          %v946 = vrot.slane %v941, %v945
          %v952 = vunpack.c.l.b16 %v937
          %v953 = vunpack.c.l.b16 %v938
          %v954 = vunpack.c.l.b16 %v939
          %v955 = vunpack.c.l.b16 %v940
          %v956 = vpack.c.b16 %v953, %v952
          %v957 = vpack.c.b16 %v955, %v954
          %vm960 = vcmask 261120
          %v962 = vsel %vm960, %v936, 0
          %964 = vmatprep.subr.bf16.mxu0 0
          %965 = vmatpush1.bf16.msra.mxu0 %v956
          %966 = vmatprep.subr.bf16.mxu0 0
          %967 = vmatpush1.bf16.msra.mxu0 %v957
          %968 = vmatprep.subr.bf16.mxu0 0
          %969 = vmatpush1.bf16.msra.mxu0 0
          %970 = vmatprep.subr.bf16.mxu0 0
          %971 = vmatpush1.bf16.msra.mxu0 0
          %972 = vmatprep.subr.bf16.mxu0 0
          %973 = vmatpush1.bf16.msra.mxu0 0
          %974 = vmatprep.subr.bf16.mxu0 0
          %975 = vmatpush1.bf16.msra.mxu0 0
          %976 = vmatprep.subr.bf16.mxu0 0
          %977 = vmatpush1.bf16.msra.mxu0 0
          %978 = vmatprep.subr.bf16.mxu0 0
          %979 = vmatpush1.bf16.msra.mxu0 0
          %980 = vmatprep.subr.bf16.mxu0 0
          %981 = vmatpush1.bf16.msra.mxu0 0
          %982 = vmatprep.subr.bf16.mxu0 0
          %983 = vmatpush1.bf16.msra.mxu0 0
          %984 = vmatprep.subr.bf16.mxu0 0
          %985 = vmatpush1.bf16.msra.mxu0 0
          %986 = vmatprep.subr.bf16.mxu0 0
          %987 = vmatpush1.bf16.msra.mxu0 0
          %988 = vmatprep.subr.bf16.mxu0 0
          %989 = vmatpush1.bf16.msra.mxu0 0
          %990 = vmatprep.subr.bf16.mxu0 0
          %991 = vmatpush1.bf16.msra.mxu0 0
          %992 = vmatprep.subr.bf16.mxu0 0
          %993 = vmatpush1.bf16.msra.mxu0 0
          %994 = vmatprep.subr.bf16.mxu0 0
          %995 = vmatpush1.bf16.msra.mxu0 0
          %996 = vmatprep.mubr.bf16.mxu0 0
          %997 = vmatmul.mubr.bf16.gmra.mrb[0].mxu0 %v962
          %v998 = vpop.f32.mrb[0].mxu0
          %v999 = vadd.f32 %v946, %v998
          %v1000 = vpop.f32.mrb[0].mxu0
          %v1001 = vpop.f32.mrb[0].mxu0
          %v1002 = vpop.f32.mrb[0].mxu0
          %1003 = vdwg.mxu0
          %v1004 = vmul.f32 %v999, 0.35355338
          %1006 = vrot.lane.b32.xlu0 %v1004, 120
          %v1007 = vpop.permute.xlu0 %1006
          %1009 = vrot.lane.b32.xlu0 %v1004, 112
          %v1010 = vpop.permute.xlu0 %1009
          %1012 = vrot.lane.b32.xlu0 %v1004, 104
          %v1013 = vpop.permute.xlu0 %1012
          %v1015 = vpack.c.bf16 %v1004, %v1004
          %v1016 = vpack.c.bf16 %v1007, %v1007
          %v1017 = vpack.c.bf16 %v1010, %v1010
          %v1018 = vpack.c.bf16 %v1013, %v1013
          %vm1019 = vcmask 60416
          %1020 = vst.msk [vmem:[#allocation2] sm:$0xf] %vm1019, %v1015
          %1021 = vst.msk [vmem:[#allocation2 + $0x4] sm:$0xf] %vm1019, %v1016
          %1022 = vst.msk [vmem:[#allocation2 + $0x8] sm:$0xf] %vm1019, %v1017
          %1023 = vst.msk [vmem:[#allocation2 + $0xc] sm:$0xf] %vm1019, %v1018
          %1025 = vrot.lane.b32.xlu0 %v999, 120
          %v1026 = vpop.permute.xlu0 %1025
          %1028 = vrot.lane.b32.xlu0 %v999, 112
          %v1029 = vpop.permute.xlu0 %1028
          %1031 = vrot.lane.b32.xlu0 %v999, 104
          %v1032 = vpop.permute.xlu0 %1031
          %v1034 = vpack.c.bf16 %v999, %v999
          %v1035 = vpack.c.bf16 %v1026, %v1026
          %v1036 = vpack.c.bf16 %v1029, %v1029
          %v1037 = vpack.c.bf16 %v1032, %v1032
          %v1042 = vunpack.c.l.b16 %v1034
          %v1043 = vunpack.c.l.b16 %v1035
          %v1044 = vunpack.c.l.b16 %v1036
          %v1045 = vunpack.c.l.b16 %v1037
          %v1046 = vpack.c.b16 %v1042, %v1042
          %v1047 = vpack.c.b16 %v1043, %v1043
          %v1048 = vpack.c.b16 %v1044, %v1044
          %v1049 = vpack.c.b16 %v1045, %v1045
          %1050 = vrot.lane.b32.xlu0 %v1046, 96
          %v1051 = vpop.permute.xlu0 %1050
          %1052 = vrot.lane.b32.xlu0 %v1047, 96
          %v1053 = vpop.permute.xlu0 %1052
          %1054 = vrot.lane.b32.xlu0 %v1048, 96
          %v1055 = vpop.permute.xlu0 %1054
          %1056 = vrot.lane.b32.xlu0 %v1049, 96
          %v1057 = vpop.permute.xlu0 %1056
          %1062 = vst.msk [vmem:[#allocation3] sm:$0xf] %vm1019, %v1051
          %1063 = vst.msk [vmem:[#allocation3 + $0x4] sm:$0xf] %vm1019, %v1053
          %1064 = vst.msk [vmem:[#allocation3 + $0x8] sm:$0xf] %vm1019, %v1055
          %1065 = vst.msk [vmem:[#allocation3 + $0xc] sm:$0xf] %vm1019, %v1057
          %1066 = vrot.lane.b32.xlu0 %v1046, 64
          %v1067 = vpop.permute.xlu0 %1066
          %1068 = vrot.lane.b32.xlu0 %v1047, 64
          %v1069 = vpop.permute.xlu0 %1068
          %1070 = vrot.lane.b32.xlu0 %v1048, 64
          %v1071 = vpop.permute.xlu0 %1070
          %1072 = vrot.lane.b32.xlu0 %v1049, 64
          %v1073 = vpop.permute.xlu0 %1072
          %1078 = vst.msk [vmem:[#allocation4] sm:$0xf] %vm1019, %v1067
          %1079 = vst.msk [vmem:[#allocation4 + $0x4] sm:$0xf] %vm1019, %v1069
          %1080 = vst.msk [vmem:[#allocation4 + $0x8] sm:$0xf] %vm1019, %v1071
          %1081 = vst.msk [vmem:[#allocation4 + $0xc] sm:$0xf] %vm1019, %v1073
          %v1082 = vld [vmem:[%s929] sm:$0xff]
          %v1083 = vld [vmem:[%s929 + $0x8] sm:$0xff]
          %v1084 = vpack.c.bf16 %v1083, %v1082
          %v1085 = vld [vmem:[#allocation21] sm:$0xf]
          %v1086 = vld [vmem:[#allocation21 + $0x4] sm:$0xf]
          %v1087 = vld [vmem:[#allocation21 + $0x8] sm:$0xf]
          %v1088 = vld [vmem:[#allocation21 + $0xc] sm:$0xf]
          %v1089 = vld [vmem:[#allocation22] sm:$0x1]
          %v1091 = vlaneseq
          %v1092 = vshrl.u32 %v1091, 7
          %v1093 = vsub.s32 0, %v1092
          %v1094 = vrot.slane %v1089, %v1093
          %v1100 = vunpack.c.l.b16 %v1085
          %v1101 = vunpack.c.l.b16 %v1086
          %v1102 = vunpack.c.l.b16 %v1087
          %v1103 = vunpack.c.l.b16 %v1088
          %v1104 = vpack.c.b16 %v1101, %v1100
          %v1105 = vpack.c.b16 %v1103, %v1102
          %v1109 = vsel %vm960, %v1084, 0
          %1111 = vmatprep.subr.bf16.mxu0 0
          %1112 = vmatpush1.bf16.msra.mxu0 %v1104
          %1113 = vmatprep.subr.bf16.mxu0 0
          %1114 = vmatpush1.bf16.msra.mxu0 %v1105
          %1115 = vmatprep.subr.bf16.mxu0 0
          %1116 = vmatpush1.bf16.msra.mxu0 0
          %1117 = vmatprep.subr.bf16.mxu0 0
          %1118 = vmatpush1.bf16.msra.mxu0 0
          %1119 = vmatprep.subr.bf16.mxu0 0
          %1120 = vmatpush1.bf16.msra.mxu0 0
          %1121 = vmatprep.subr.bf16.mxu0 0
          %1122 = vmatpush1.bf16.msra.mxu0 0
          %1123 = vmatprep.subr.bf16.mxu0 0
          %1124 = vmatpush1.bf16.msra.mxu0 0
          %1125 = vmatprep.subr.bf16.mxu0 0
          %1126 = vmatpush1.bf16.msra.mxu0 0
          %1127 = vmatprep.subr.bf16.mxu0 0
          %1128 = vmatpush1.bf16.msra.mxu0 0
          %1129 = vmatprep.subr.bf16.mxu0 0
          %1130 = vmatpush1.bf16.msra.mxu0 0
          %1131 = vmatprep.subr.bf16.mxu0 0
          %1132 = vmatpush1.bf16.msra.mxu0 0
          %1133 = vmatprep.subr.bf16.mxu0 0
          %1134 = vmatpush1.bf16.msra.mxu0 0
          %1135 = vmatprep.subr.bf16.mxu0 0
          %1136 = vmatpush1.bf16.msra.mxu0 0
          %1137 = vmatprep.subr.bf16.mxu0 0
          %1138 = vmatpush1.bf16.msra.mxu0 0
          %1139 = vmatprep.subr.bf16.mxu0 0
          %1140 = vmatpush1.bf16.msra.mxu0 0
          %1141 = vmatprep.subr.bf16.mxu0 0
          %1142 = vmatpush1.bf16.msra.mxu0 0
          %1143 = vmatprep.mubr.bf16.mxu0 0
          %1144 = vmatmul.mubr.bf16.gmra.mrb[0].mxu0 %v1109
          %v1145 = vpop.f32.mrb[0].mxu0
          %v1146 = vadd.f32 %v1094, %v1145
          %v1147 = vpop.f32.mrb[0].mxu0
          %v1148 = vpop.f32.mrb[0].mxu0
          %v1149 = vadd.f32 %v1094, %v1148
          %v1150 = vpop.f32.mrb[0].mxu0
          %1151 = vdwg.mxu0
          %1154 = vrot.lane.b32.xlu0 %v1146, 120
          %v1155 = vpop.permute.xlu0 %1154
          %1156 = vrot.lane.b32.xlu0 %v1149, 120
          %v1157 = vpop.permute.xlu0 %1156
          %1160 = vrot.lane.b32.xlu0 %v1146, 112
          %v1161 = vpop.permute.xlu0 %1160
          %1162 = vrot.lane.b32.xlu0 %v1149, 112
          %v1163 = vpop.permute.xlu0 %1162
          %1166 = vrot.lane.b32.xlu0 %v1146, 104
          %v1167 = vpop.permute.xlu0 %1166
          %1168 = vrot.lane.b32.xlu0 %v1149, 104
          %v1169 = vpop.permute.xlu0 %1168
          %v1172 = vpack.c.bf16 %v1149, %v1146
          %v1173 = vpack.c.bf16 %v1157, %v1155
          %v1174 = vpack.c.bf16 %v1163, %v1161
          %v1175 = vpack.c.bf16 %v1169, %v1167
          %vm1176 = vcmask 64512
          %1177 = vst.msk [vmem:[#allocation5] sm:$0xff] %vm1176, %v1172
          %1178 = vst.msk [vmem:[#allocation5 + $0x8] sm:$0xff] %vm1176, %v1173
          %1179 = vst.msk [vmem:[#allocation5 + $0x10] sm:$0xff] %vm1176, %v1174
          %1180 = vst.msk [vmem:[#allocation5 + $0x18] sm:$0xff] %vm1176, %v1175
          %1185 = vrot.lane.b32.xlu0 %v1172, 96
          %v1186 = vpop.permute.xlu0 %1185
          %1187 = vrot.lane.b32.xlu0 %v1173, 96
          %v1188 = vpop.permute.xlu0 %1187
          %1189 = vrot.lane.b32.xlu0 %v1174, 96
          %v1190 = vpop.permute.xlu0 %1189
          %1191 = vrot.lane.b32.xlu0 %v1175, 96
          %v1192 = vpop.permute.xlu0 %1191
          %1197 = vst.msk [vmem:[#allocation6] sm:$0xff] %vm1176, %v1186
          %1198 = vst.msk [vmem:[#allocation6 + $0x8] sm:$0xff] %vm1176, %v1188
          %1199 = vst.msk [vmem:[#allocation6 + $0x10] sm:$0xff] %vm1176, %v1190
          %1200 = vst.msk [vmem:[#allocation6 + $0x18] sm:$0xff] %vm1176, %v1192
        $region168: #{tpu_custom_call.1} parent=111 // pred_fallthru
          _
        %s1201 = smul.u32 %s51, 8
        %s1202 = scalar_lea.vmem %s924, %s1201
        %v1203 = vld [vmem:[%s1202] sm:$0xff]
        %v1204 = vlaneseq
        %v1205 = vshrl.u32 %v1204, 7
        %v1206 = vstv %s1201
        %v1207 = vadd.s32 %v1206, %v1205
        %v1208 = vlaneseq
        %v1209 = vand.u32 %v1208, 127
        %vm1210 = vcmp.le.s32.totalorder %v1209, %v1207
        %v1211 = vsel %vm1210, 0.0, -10000.0
        %s1212 = sshra.s32 %s1201, 3
        %s1213 = sand.u32 %s1201, 7
        %s1214 = smul.addr %s1212, 4
        %s1215 = scalar_lea.vmem [#allocation2], %s1214
        %v1216 = vld [vmem:[%s1215] sm:$0xf]
        %v1217 = vld [vmem:[%s1215 + $0x4] sm:$0xf]
        %v1218 = vld [vmem:[%s1215 + $0x8] sm:$0xf]
        %v1219 = vld [vmem:[%s1215 + $0xc] sm:$0xf]
        %v1220 = vld [vmem:[#allocation3] sm:$0xf]
        %v1221 = vld [vmem:[#allocation3 + $0x4] sm:$0xf]
        %v1222 = vld [vmem:[#allocation3 + $0x8] sm:$0xf]
        %v1223 = vld [vmem:[#allocation3 + $0xc] sm:$0xf]
        %vm1224 = vcmask 64512
        %v1226 = vsel %vm1224, %v1216, 0
        %v1229 = vsel %vm1224, %v1220, 0
        %1231 = vmatprep.subr.bf16.mxu0 0
        %1232 = vmatpush1.bf16.xpose.msra.mxu0 %v1229
        %1233 = vmatprep.subr.bf16.mxu0 0
        %1234 = vmatpush1.bf16.xpose.msra.mxu0 0
        %1235 = vmatprep.subr.bf16.mxu0 0
        %1236 = vmatpush1.bf16.xpose.msra.mxu0 0
        %1237 = vmatprep.subr.bf16.mxu0 0
        %1238 = vmatpush1.bf16.xpose.msra.mxu0 0
        %1239 = vmatprep.subr.bf16.mxu0 0
        %1240 = vmatpush1.bf16.xpose.msra.mxu0 0
        %1241 = vmatprep.subr.bf16.mxu0 0
        %1242 = vmatpush1.bf16.xpose.msra.mxu0 0
        %1243 = vmatprep.subr.bf16.mxu0 0
        %1244 = vmatpush1.bf16.xpose.msra.mxu0 0
        %1245 = vmatprep.subr.bf16.mxu0 0
        %1246 = vmatpush1.bf16.xpose.msra.mxu0 0
        %1247 = vmatprep.subr.bf16.mxu0 0
        %1248 = vmatpush1.bf16.xpose.msra.mxu0 0
        %1249 = vmatprep.subr.bf16.mxu0 0
        %1250 = vmatpush1.bf16.xpose.msra.mxu0 0
        %1251 = vmatprep.subr.bf16.mxu0 0
        %1252 = vmatpush1.bf16.xpose.msra.mxu0 0
        %1253 = vmatprep.subr.bf16.mxu0 0
        %1254 = vmatpush1.bf16.xpose.msra.mxu0 0
        %1255 = vmatprep.subr.bf16.mxu0 0
        %1256 = vmatpush1.bf16.xpose.msra.mxu0 0
        %1257 = vmatprep.subr.bf16.mxu0 0
        %1258 = vmatpush1.bf16.xpose.msra.mxu0 0
        %1259 = vmatprep.subr.bf16.mxu0 0
        %1260 = vmatpush1.bf16.xpose.msra.mxu0 0
        %1261 = vmatprep.subr.bf16.mxu0 0
        %1262 = vmatpush1.bf16.xpose.msra.mxu0 0
        %1263 = vmatprep.mubr.bf16.mxu0 0
        %1264 = vmatmul.mubr.bf16.gmra.mrb[0].mxu0 %v1226
        %v1265 = vpop.f32.mrb[0].mxu0
        %v1266 = vadd.f32 %v1211, %v1265
        %v1267 = vpop.f32.mrb[0].mxu0
        %v1268 = vpop.f32.mrb[0].mxu0
        %v1269 = vpop.f32.mrb[0].mxu0
        %1270 = vdwg.mxu0
        %v1272 = vsel %vm1224, %v1217, 0
        %v1275 = vsel %vm1224, %v1221, 0
        %1277 = vmatprep.subr.bf16.mxu0 0
        %1278 = vmatpush1.bf16.xpose.msra.mxu0 %v1275
        %1279 = vmatprep.subr.bf16.mxu0 0
        %1280 = vmatpush1.bf16.xpose.msra.mxu0 0
        %1281 = vmatprep.subr.bf16.mxu0 0
        %1282 = vmatpush1.bf16.xpose.msra.mxu0 0
        %1283 = vmatprep.subr.bf16.mxu0 0
        %1284 = vmatpush1.bf16.xpose.msra.mxu0 0
        %1285 = vmatprep.subr.bf16.mxu0 0
        %1286 = vmatpush1.bf16.xpose.msra.mxu0 0
        %1287 = vmatprep.subr.bf16.mxu0 0
        %1288 = vmatpush1.bf16.xpose.msra.mxu0 0
        %1289 = vmatprep.subr.bf16.mxu0 0
        %1290 = vmatpush1.bf16.xpose.msra.mxu0 0
        %1291 = vmatprep.subr.bf16.mxu0 0
        %1292 = vmatpush1.bf16.xpose.msra.mxu0 0
        %1293 = vmatprep.subr.bf16.mxu0 0
        %1294 = vmatpush1.bf16.xpose.msra.mxu0 0
        %1295 = vmatprep.subr.bf16.mxu0 0
        %1296 = vmatpush1.bf16.xpose.msra.mxu0 0
        %1297 = vmatprep.subr.bf16.mxu0 0
        %1298 = vmatpush1.bf16.xpose.msra.mxu0 0
        %1299 = vmatprep.subr.bf16.mxu0 0
        %1300 = vmatpush1.bf16.xpose.msra.mxu0 0
        %1301 = vmatprep.subr.bf16.mxu0 0
        %1302 = vmatpush1.bf16.xpose.msra.mxu0 0
        %1303 = vmatprep.subr.bf16.mxu0 0
        %1304 = vmatpush1.bf16.xpose.msra.mxu0 0
        %1305 = vmatprep.subr.bf16.mxu0 0
        %1306 = vmatpush1.bf16.xpose.msra.mxu0 0
        %1307 = vmatprep.subr.bf16.mxu0 0
        %1308 = vmatpush1.bf16.xpose.msra.mxu0 0
        %1309 = vmatprep.mubr.bf16.mxu0 0
        %1310 = vmatmul.mubr.bf16.gmra.mrb[0].mxu0 %v1272
        %v1311 = vpop.f32.mrb[0].mxu0
        %v1312 = vadd.f32 %v1211, %v1311
        %v1313 = vpop.f32.mrb[0].mxu0
        %v1314 = vpop.f32.mrb[0].mxu0
        %v1315 = vpop.f32.mrb[0].mxu0
        %1316 = vdwg.mxu0
        %v1318 = vsel %vm1224, %v1218, 0
        %v1321 = vsel %vm1224, %v1222, 0
        %1323 = vmatprep.subr.bf16.mxu0 0
        %1324 = vmatpush1.bf16.xpose.msra.mxu0 %v1321
        %1325 = vmatprep.subr.bf16.mxu0 0
        %1326 = vmatpush1.bf16.xpose.msra.mxu0 0
        %1327 = vmatprep.subr.bf16.mxu0 0
        %1328 = vmatpush1.bf16.xpose.msra.mxu0 0
        %1329 = vmatprep.subr.bf16.mxu0 0
        %1330 = vmatpush1.bf16.xpose.msra.mxu0 0
        %1331 = vmatprep.subr.bf16.mxu0 0
        %1332 = vmatpush1.bf16.xpose.msra.mxu0 0
        %1333 = vmatprep.subr.bf16.mxu0 0
        %1334 = vmatpush1.bf16.xpose.msra.mxu0 0
        %1335 = vmatprep.subr.bf16.mxu0 0
        %1336 = vmatpush1.bf16.xpose.msra.mxu0 0
        %1337 = vmatprep.subr.bf16.mxu0 0
        %1338 = vmatpush1.bf16.xpose.msra.mxu0 0
        %1339 = vmatprep.subr.bf16.mxu0 0
        %1340 = vmatpush1.bf16.xpose.msra.mxu0 0
        %1341 = vmatprep.subr.bf16.mxu0 0
        %1342 = vmatpush1.bf16.xpose.msra.mxu0 0
        %1343 = vmatprep.subr.bf16.mxu0 0
        %1344 = vmatpush1.bf16.xpose.msra.mxu0 0
        %1345 = vmatprep.subr.bf16.mxu0 0
        %1346 = vmatpush1.bf16.xpose.msra.mxu0 0
        %1347 = vmatprep.subr.bf16.mxu0 0
        %1348 = vmatpush1.bf16.xpose.msra.mxu0 0
        %1349 = vmatprep.subr.bf16.mxu0 0
        %1350 = vmatpush1.bf16.xpose.msra.mxu0 0
        %1351 = vmatprep.subr.bf16.mxu0 0
        %1352 = vmatpush1.bf16.xpose.msra.mxu0 0
        %1353 = vmatprep.subr.bf16.mxu0 0
        %1354 = vmatpush1.bf16.xpose.msra.mxu0 0
        %1355 = vmatprep.mubr.bf16.mxu0 0
        %1356 = vmatmul.mubr.bf16.gmra.mrb[0].mxu0 %v1318
        %v1357 = vpop.f32.mrb[0].mxu0
        %v1358 = vadd.f32 %v1211, %v1357
        %v1359 = vpop.f32.mrb[0].mxu0
        %v1360 = vpop.f32.mrb[0].mxu0
        %v1361 = vpop.f32.mrb[0].mxu0
        %1362 = vdwg.mxu0
        %v1364 = vsel %vm1224, %v1219, 0
        %v1367 = vsel %vm1224, %v1223, 0
        %1369 = vmatprep.subr.bf16.mxu0 0
        %1370 = vmatpush1.bf16.xpose.msra.mxu0 %v1367
        %1371 = vmatprep.subr.bf16.mxu0 0
        %1372 = vmatpush1.bf16.xpose.msra.mxu0 0
        %1373 = vmatprep.subr.bf16.mxu0 0
        %1374 = vmatpush1.bf16.xpose.msra.mxu0 0
        %1375 = vmatprep.subr.bf16.mxu0 0
        %1376 = vmatpush1.bf16.xpose.msra.mxu0 0
        %1377 = vmatprep.subr.bf16.mxu0 0
        %1378 = vmatpush1.bf16.xpose.msra.mxu0 0
        %1379 = vmatprep.subr.bf16.mxu0 0
        %1380 = vmatpush1.bf16.xpose.msra.mxu0 0
        %1381 = vmatprep.subr.bf16.mxu0 0
        %1382 = vmatpush1.bf16.xpose.msra.mxu0 0
        %1383 = vmatprep.subr.bf16.mxu0 0
        %1384 = vmatpush1.bf16.xpose.msra.mxu0 0
        %1385 = vmatprep.subr.bf16.mxu0 0
        %1386 = vmatpush1.bf16.xpose.msra.mxu0 0
        %1387 = vmatprep.subr.bf16.mxu0 0
        %1388 = vmatpush1.bf16.xpose.msra.mxu0 0
        %1389 = vmatprep.subr.bf16.mxu0 0
        %1390 = vmatpush1.bf16.xpose.msra.mxu0 0
        %1391 = vmatprep.subr.bf16.mxu0 0
        %1392 = vmatpush1.bf16.xpose.msra.mxu0 0
        %1393 = vmatprep.subr.bf16.mxu0 0
        %1394 = vmatpush1.bf16.xpose.msra.mxu0 0
        %1395 = vmatprep.subr.bf16.mxu0 0
        %1396 = vmatpush1.bf16.xpose.msra.mxu0 0
        %1397 = vmatprep.subr.bf16.mxu0 0
        %1398 = vmatpush1.bf16.xpose.msra.mxu0 0
        %1399 = vmatprep.subr.bf16.mxu0 0
        %1400 = vmatpush1.bf16.xpose.msra.mxu0 0
        %1401 = vmatprep.mubr.bf16.mxu0 0
        %1402 = vmatmul.mubr.bf16.gmra.mrb[0].mxu0 %v1364
        %v1403 = vpop.f32.mrb[0].mxu0
        %v1404 = vadd.f32 %v1211, %v1403
        %v1405 = vpop.f32.mrb[0].mxu0
        %v1406 = vpop.f32.mrb[0].mxu0
        %v1407 = vpop.f32.mrb[0].mxu0
        %1408 = vdwg.mxu0
        %v1409 = vsel %vm1224, %v1266, -inf
        %1410 = vmax.xlane.f32.xlu0 %v1409
        %v1411 = vpop.xlane.xlu0 %1410
        %v1412 = vsel %vm1224, %v1312, -inf
        %1413 = vmax.xlane.f32.xlu0 %v1412
        %v1414 = vpop.xlane.xlu0 %1413
        %v1415 = vsel %vm1224, %v1358, -inf
        %1416 = vmax.xlane.f32.xlu0 %v1415
        %v1417 = vpop.xlane.xlu0 %1416
        %v1418 = vsel %vm1224, %v1404, -inf
        %1419 = vmax.xlane.f32.xlu0 %v1418
        %v1420 = vpop.xlane.xlu0 %1419
        %v1421 = vsub.f32 %v1266, %v1411
        %v1422 = vsub.f32 %v1312, %v1414
        %v1423 = vsub.f32 %v1358, %v1417
        %v1424 = vsub.f32 %v1404, %v1420
        %v1425 = vmul.f32 %v1421, 1.442695
        %v1426 = vpow.pop %v1425
        %v1427 = vmul.f32 %v1422, 1.442695
        %v1428 = vpow.pop %v1427
        %v1429 = vmul.f32 %v1423, 1.442695
        %v1430 = vpow.pop %v1429
        %v1431 = vmul.f32 %v1424, 1.442695
        %v1432 = vpow.pop %v1431
        %v1433 = vsel %vm1224, %v1426, 0.0
        %1434 = vadd.xlane.f32.xlu0 %v1433
        %v1435 = vpop.xlane.xlu0 %1434
        %v1436 = vsel %vm1224, %v1428, 0.0
        %1437 = vadd.xlane.f32.xlu0 %v1436
        %v1438 = vpop.xlane.xlu0 %1437
        %v1439 = vsel %vm1224, %v1430, 0.0
        %1440 = vadd.xlane.f32.xlu0 %v1439
        %v1441 = vpop.xlane.xlu0 %1440
        %v1442 = vsel %vm1224, %v1432, 0.0
        %1443 = vadd.xlane.f32.xlu0 %v1442
        %v1444 = vpop.xlane.xlu0 %1443
        %v1445 = vrcp.pop %v1435
        %v1446 = vrcp.pop %v1438
        %v1447 = vrcp.pop %v1441
        %v1448 = vrcp.pop %v1444
        %v1449 = vmul.f32 %v1426, %v1445
        %v1450 = vmul.f32 %v1428, %v1446
        %v1451 = vmul.f32 %v1430, %v1447
        %v1452 = vmul.f32 %v1432, %v1448
        %v1453 = vpack.c.bf16 %v1449, %v1449
        %v1454 = vpack.c.bf16 %v1450, %v1450
        %v1455 = vpack.c.bf16 %v1451, %v1451
        %v1456 = vpack.c.bf16 %v1452, %v1452
        %v1457 = vld [vmem:[#allocation4] sm:$0xf]
        %v1458 = vld [vmem:[#allocation4 + $0x4] sm:$0xf]
        %v1459 = vld [vmem:[#allocation4 + $0x8] sm:$0xf]
        %v1460 = vld [vmem:[#allocation4 + $0xc] sm:$0xf]
        %v1462 = vsel %vm1224, %v1453, 0
        %vm1464 = vcmask 1043456
        %v1466 = vsel %vm1464, %v1457, 0
        %1468 = vmatprep.subr.bf16.mxu0 0
        %1469 = vmatpush1.bf16.msra.mxu0 %v1466
        %1470 = vmatprep.subr.bf16.mxu0 0
        %1471 = vmatpush1.bf16.msra.mxu0 0
        %1472 = vmatprep.subr.bf16.mxu0 0
        %1473 = vmatpush1.bf16.msra.mxu0 0
        %1474 = vmatprep.subr.bf16.mxu0 0
        %1475 = vmatpush1.bf16.msra.mxu0 0
        %1476 = vmatprep.subr.bf16.mxu0 0
        %1477 = vmatpush1.bf16.msra.mxu0 0
        %1478 = vmatprep.subr.bf16.mxu0 0
        %1479 = vmatpush1.bf16.msra.mxu0 0
        %1480 = vmatprep.subr.bf16.mxu0 0
        %1481 = vmatpush1.bf16.msra.mxu0 0
        %1482 = vmatprep.subr.bf16.mxu0 0
        %1483 = vmatpush1.bf16.msra.mxu0 0
        %1484 = vmatprep.subr.bf16.mxu0 0
        %1485 = vmatpush1.bf16.msra.mxu0 0
        %1486 = vmatprep.subr.bf16.mxu0 0
        %1487 = vmatpush1.bf16.msra.mxu0 0
        %1488 = vmatprep.subr.bf16.mxu0 0
        %1489 = vmatpush1.bf16.msra.mxu0 0
        %1490 = vmatprep.subr.bf16.mxu0 0
        %1491 = vmatpush1.bf16.msra.mxu0 0
        %1492 = vmatprep.subr.bf16.mxu0 0
        %1493 = vmatpush1.bf16.msra.mxu0 0
        %1494 = vmatprep.subr.bf16.mxu0 0
        %1495 = vmatpush1.bf16.msra.mxu0 0
        %1496 = vmatprep.subr.bf16.mxu0 0
        %1497 = vmatpush1.bf16.msra.mxu0 0
        %1498 = vmatprep.subr.bf16.mxu0 0
        %1499 = vmatpush1.bf16.msra.mxu0 0
        %1500 = vmatprep.mubr.bf16.mxu0 0
        %1501 = vmatmul.mubr.bf16.gmra.mrb[0].mxu0 %v1462
        %v1502 = vpop.f32.mrb[0].mxu0
        %v1503 = vadd.f32 0.0, %v1502
        %v1504 = vpop.f32.mrb[0].mxu0
        %v1505 = vpop.f32.mrb[0].mxu0
        %v1506 = vpop.f32.mrb[0].mxu0
        %1507 = vdwg.mxu0
        %v1509 = vsel %vm1224, %v1454, 0
        %v1512 = vsel %vm1464, %v1458, 0
        %1514 = vmatprep.subr.bf16.mxu0 0
        %1515 = vmatpush1.bf16.msra.mxu0 %v1512
        %1516 = vmatprep.subr.bf16.mxu0 0
        %1517 = vmatpush1.bf16.msra.mxu0 0
        %1518 = vmatprep.subr.bf16.mxu0 0
        %1519 = vmatpush1.bf16.msra.mxu0 0
        %1520 = vmatprep.subr.bf16.mxu0 0
        %1521 = vmatpush1.bf16.msra.mxu0 0
        %1522 = vmatprep.subr.bf16.mxu0 0
        %1523 = vmatpush1.bf16.msra.mxu0 0
        %1524 = vmatprep.subr.bf16.mxu0 0
        %1525 = vmatpush1.bf16.msra.mxu0 0
        %1526 = vmatprep.subr.bf16.mxu0 0
        %1527 = vmatpush1.bf16.msra.mxu0 0
        %1528 = vmatprep.subr.bf16.mxu0 0
        %1529 = vmatpush1.bf16.msra.mxu0 0
        %1530 = vmatprep.subr.bf16.mxu0 0
        %1531 = vmatpush1.bf16.msra.mxu0 0
        %1532 = vmatprep.subr.bf16.mxu0 0
        %1533 = vmatpush1.bf16.msra.mxu0 0
        %1534 = vmatprep.subr.bf16.mxu0 0
        %1535 = vmatpush1.bf16.msra.mxu0 0
        %1536 = vmatprep.subr.bf16.mxu0 0
        %1537 = vmatpush1.bf16.msra.mxu0 0
        %1538 = vmatprep.subr.bf16.mxu0 0
        %1539 = vmatpush1.bf16.msra.mxu0 0
        %1540 = vmatprep.subr.bf16.mxu0 0
        %1541 = vmatpush1.bf16.msra.mxu0 0
        %1542 = vmatprep.subr.bf16.mxu0 0
        %1543 = vmatpush1.bf16.msra.mxu0 0
        %1544 = vmatprep.subr.bf16.mxu0 0
        %1545 = vmatpush1.bf16.msra.mxu0 0
        %1546 = vmatprep.mubr.bf16.mxu0 0
        %1547 = vmatmul.mubr.bf16.gmra.mrb[0].mxu0 %v1509
        %v1548 = vpop.f32.mrb[0].mxu0
        %v1549 = vadd.f32 0.0, %v1548
        %v1550 = vpop.f32.mrb[0].mxu0
        %v1551 = vpop.f32.mrb[0].mxu0
        %v1552 = vpop.f32.mrb[0].mxu0
        %1553 = vdwg.mxu0
        %v1555 = vsel %vm1224, %v1455, 0
        %v1558 = vsel %vm1464, %v1459, 0
        %1560 = vmatprep.subr.bf16.mxu0 0
        %1561 = vmatpush1.bf16.msra.mxu0 %v1558
        %1562 = vmatprep.subr.bf16.mxu0 0
        %1563 = vmatpush1.bf16.msra.mxu0 0
        %1564 = vmatprep.subr.bf16.mxu0 0
        %1565 = vmatpush1.bf16.msra.mxu0 0
        %1566 = vmatprep.subr.bf16.mxu0 0
        %1567 = vmatpush1.bf16.msra.mxu0 0
        %1568 = vmatprep.subr.bf16.mxu0 0
        %1569 = vmatpush1.bf16.msra.mxu0 0
        %1570 = vmatprep.subr.bf16.mxu0 0
        %1571 = vmatpush1.bf16.msra.mxu0 0
        %1572 = vmatprep.subr.bf16.mxu0 0
        %1573 = vmatpush1.bf16.msra.mxu0 0
        %1574 = vmatprep.subr.bf16.mxu0 0
        %1575 = vmatpush1.bf16.msra.mxu0 0
        %1576 = vmatprep.subr.bf16.mxu0 0
        %1577 = vmatpush1.bf16.msra.mxu0 0
        %1578 = vmatprep.subr.bf16.mxu0 0
        %1579 = vmatpush1.bf16.msra.mxu0 0
        %1580 = vmatprep.subr.bf16.mxu0 0
        %1581 = vmatpush1.bf16.msra.mxu0 0
        %1582 = vmatprep.subr.bf16.mxu0 0
        %1583 = vmatpush1.bf16.msra.mxu0 0
        %1584 = vmatprep.subr.bf16.mxu0 0
        %1585 = vmatpush1.bf16.msra.mxu0 0
        %1586 = vmatprep.subr.bf16.mxu0 0
        %1587 = vmatpush1.bf16.msra.mxu0 0
        %1588 = vmatprep.subr.bf16.mxu0 0
        %1589 = vmatpush1.bf16.msra.mxu0 0
        %1590 = vmatprep.subr.bf16.mxu0 0
        %1591 = vmatpush1.bf16.msra.mxu0 0
        %1592 = vmatprep.mubr.bf16.mxu0 0
        %1593 = vmatmul.mubr.bf16.gmra.mrb[0].mxu0 %v1555
        %v1594 = vpop.f32.mrb[0].mxu0
        %v1595 = vadd.f32 0.0, %v1594
        %v1596 = vpop.f32.mrb[0].mxu0
        %v1597 = vpop.f32.mrb[0].mxu0
        %v1598 = vpop.f32.mrb[0].mxu0
        %1599 = vdwg.mxu0
        %v1601 = vsel %vm1224, %v1456, 0
        %v1604 = vsel %vm1464, %v1460, 0
        %1606 = vmatprep.subr.bf16.mxu0 0
        %1607 = vmatpush1.bf16.msra.mxu0 %v1604
        %1608 = vmatprep.subr.bf16.mxu0 0
        %1609 = vmatpush1.bf16.msra.mxu0 0
        %1610 = vmatprep.subr.bf16.mxu0 0
        %1611 = vmatpush1.bf16.msra.mxu0 0
        %1612 = vmatprep.subr.bf16.mxu0 0
        %1613 = vmatpush1.bf16.msra.mxu0 0
        %1614 = vmatprep.subr.bf16.mxu0 0
        %1615 = vmatpush1.bf16.msra.mxu0 0
        %1616 = vmatprep.subr.bf16.mxu0 0
        %1617 = vmatpush1.bf16.msra.mxu0 0
        %1618 = vmatprep.subr.bf16.mxu0 0
        %1619 = vmatpush1.bf16.msra.mxu0 0
        %1620 = vmatprep.subr.bf16.mxu0 0
        %1621 = vmatpush1.bf16.msra.mxu0 0
        %1622 = vmatprep.subr.bf16.mxu0 0
        %1623 = vmatpush1.bf16.msra.mxu0 0
        %1624 = vmatprep.subr.bf16.mxu0 0
        %1625 = vmatpush1.bf16.msra.mxu0 0
        %1626 = vmatprep.subr.bf16.mxu0 0
        %1627 = vmatpush1.bf16.msra.mxu0 0
        %1628 = vmatprep.subr.bf16.mxu0 0
        %1629 = vmatpush1.bf16.msra.mxu0 0
        %1630 = vmatprep.subr.bf16.mxu0 0
        %1631 = vmatpush1.bf16.msra.mxu0 0
        %1632 = vmatprep.subr.bf16.mxu0 0
        %1633 = vmatpush1.bf16.msra.mxu0 0
        %1634 = vmatprep.subr.bf16.mxu0 0
        %1635 = vmatpush1.bf16.msra.mxu0 0
        %1636 = vmatprep.subr.bf16.mxu0 0
        %1637 = vmatpush1.bf16.msra.mxu0 0
        %1638 = vmatprep.mubr.bf16.mxu0 0
        %1639 = vmatmul.mubr.bf16.gmra.mrb[0].mxu0 %v1601
        %v1640 = vpop.f32.mrb[0].mxu0
        %v1641 = vadd.f32 0.0, %v1640
        %v1642 = vpop.f32.mrb[0].mxu0
        %v1643 = vpop.f32.mrb[0].mxu0
        %v1644 = vpop.f32.mrb[0].mxu0
        %1645 = vdwg.mxu0
        %1647 = vrot.lane.b32.xlu0 %v1549, 8
        %v1648 = vpop.permute.xlu0 %1647
        %1651 = vrot.lane.b32.xlu0 %v1595, 16
        %v1652 = vpop.permute.xlu0 %1651
        %1655 = vrot.lane.b32.xlu0 %v1641, 24
        %v1656 = vpop.permute.xlu0 %1655
        %v1658 = vsel %vm1224, %v1503, %v1648
        %vm1659 = vcmask 130048
        %v1660 = vsel %vm1659, %v1658, %v1652
        %vm1661 = vcmask 195584
        %v1662 = vsel %vm1661, %v1660, %v1656
        %v1663 = vpack.c.bf16 %v1662, %v1662
        %v1664 = vld [vmem:[#allocation13] sm:$0xf]
        %v1665 = vld [vmem:[#allocation13 + $0x4] sm:$0xf]
        %v1666 = vld [vmem:[#allocation13 + $0x8] sm:$0xf]
        %v1667 = vld [vmem:[#allocation13 + $0xc] sm:$0xf]
        %v1668 = vld [vmem:[#allocation15] sm:$0x1]
        %v1670 = vlaneseq
        %v1671 = vshrl.u32 %v1670, 7
        %v1672 = vsub.s32 0, %v1671
        %v1673 = vrot.slane %v1668, %v1672
        %v1679 = vunpack.c.l.b16 %v1664
        %v1680 = vunpack.c.l.b16 %v1665
        %v1681 = vunpack.c.l.b16 %v1666
        %v1682 = vunpack.c.l.b16 %v1667
        %v1683 = vpack.c.b16 %v1680, %v1679
        %v1684 = vpack.c.b16 %v1682, %v1681
        %vm1687 = vcmask 261120
        %v1689 = vsel %vm1687, %v1663, 0
        %1691 = vmatprep.subr.bf16.mxu0 0
        %1692 = vmatpush1.bf16.msra.mxu0 %v1683
        %1693 = vmatprep.subr.bf16.mxu0 0
        %1694 = vmatpush1.bf16.msra.mxu0 %v1684
        %1695 = vmatprep.subr.bf16.mxu0 0
        %1696 = vmatpush1.bf16.msra.mxu0 0
        %1697 = vmatprep.subr.bf16.mxu0 0
        %1698 = vmatpush1.bf16.msra.mxu0 0
        %1699 = vmatprep.subr.bf16.mxu0 0
        %1700 = vmatpush1.bf16.msra.mxu0 0
        %1701 = vmatprep.subr.bf16.mxu0 0
        %1702 = vmatpush1.bf16.msra.mxu0 0
        %1703 = vmatprep.subr.bf16.mxu0 0
        %1704 = vmatpush1.bf16.msra.mxu0 0
        %1705 = vmatprep.subr.bf16.mxu0 0
        %1706 = vmatpush1.bf16.msra.mxu0 0
        %1707 = vmatprep.subr.bf16.mxu0 0
        %1708 = vmatpush1.bf16.msra.mxu0 0
        %1709 = vmatprep.subr.bf16.mxu0 0
        %1710 = vmatpush1.bf16.msra.mxu0 0
        %1711 = vmatprep.subr.bf16.mxu0 0
        %1712 = vmatpush1.bf16.msra.mxu0 0
        %1713 = vmatprep.subr.bf16.mxu0 0
        %1714 = vmatpush1.bf16.msra.mxu0 0
        %1715 = vmatprep.subr.bf16.mxu0 0
        %1716 = vmatpush1.bf16.msra.mxu0 0
        %1717 = vmatprep.subr.bf16.mxu0 0
        %1718 = vmatpush1.bf16.msra.mxu0 0
        %1719 = vmatprep.subr.bf16.mxu0 0
        %1720 = vmatpush1.bf16.msra.mxu0 0
        %1721 = vmatprep.subr.bf16.mxu0 0
        %1722 = vmatpush1.bf16.msra.mxu0 0
        %1723 = vmatprep.mubr.bf16.mxu0 0
        %1724 = vmatmul.mubr.bf16.gmra.mrb[0].mxu0 %v1689
        %v1725 = vpop.f32.mrb[0].mxu0
        %v1726 = vadd.f32 %v1673, %v1725
        %v1727 = vpop.f32.mrb[0].mxu0
        %v1728 = vpop.f32.mrb[0].mxu0
        %v1729 = vpop.f32.mrb[0].mxu0
        %1730 = vdwg.mxu0
        %v1731 = vadd.f32 %v1726, %v1203
        %v1732 = vsel %vm1687, %v1731, 0.0
        %1733 = vadd.xlane.f32.xlu0 %v1732
        %v1734 = vpop.xlane.xlu0 %1733
        %v1735 = vrcp.pop 32.0
        %v1736 = vmul.f32 %v1734, %v1735
        %v1737 = vsub.f32 %v1731, %v1736
        %v1738 = vmul.f32 %v1737, %v1737
        %v1739 = vsel %vm1687, %v1738, 0.0
        %1740 = vadd.xlane.f32.xlu0 %v1739
        %v1741 = vpop.xlane.xlu0 %1740
        %v1742 = vmul.f32 %v1741, %v1735
        %v1743 = vadd.f32 %v1742, 1e-12
        %v1744 = vrsqrt.pop %v1743
        %v1745 = vmul.f32 %v1737, %v1744
        %v1746 = vld [vmem:[#allocation16] sm:$0x1]
        %v1748 = vlaneseq
        %v1749 = vshrl.u32 %v1748, 7
        %v1750 = vsub.s32 0, %v1749
        %v1751 = vrot.slane %v1746, %v1750
        %v1753 = vmul.f32 %v1745, %v1751
        %v1754 = vld [vmem:[#allocation18] sm:$0x1]
        %v1756 = vlaneseq
        %v1757 = vshrl.u32 %v1756, 7
        %v1758 = vsub.s32 0, %v1757
        %v1759 = vrot.slane %v1754, %v1758
        %v1761 = vadd.f32 %v1753, %v1759
        %v1762 = vld [vmem:[%s802] sm:$0x1]
        %v1763 = vpack.c.bf16 %v1761, %v1761
        %v1764 = vld [vmem:[%s9] sm:$0xf]
        %v1765 = vld [vmem:[%s9 + $0x4] sm:$0xf]
        %v1766 = vld [vmem:[%s9 + $0x8] sm:$0xf]
        %v1767 = vld [vmem:[%s9 + $0xc] sm:$0xf]
        %v1768 = vld [vmem:[#allocation19] sm:$0x1]
        %v1770 = vlaneseq
        %v1771 = vshrl.u32 %v1770, 7
        %v1772 = vsub.s32 0, %v1771
        %v1773 = vrot.slane %v1768, %v1772
        %v1779 = vunpack.c.l.b16 %v1764
        %v1780 = vunpack.c.l.b16 %v1765
        %v1781 = vunpack.c.l.b16 %v1766
        %v1782 = vunpack.c.l.b16 %v1767
        %v1783 = vpack.c.b16 %v1780, %v1779
        %v1784 = vpack.c.b16 %v1782, %v1781
        %v1788 = vsel %vm1687, %v1763, 0
        %1790 = vmatprep.subr.bf16.mxu0 0
        %1791 = vmatpush1.bf16.msra.mxu0 %v1783
        %1792 = vmatprep.subr.bf16.mxu0 0
        %1793 = vmatpush1.bf16.msra.mxu0 %v1784
        %1794 = vmatprep.subr.bf16.mxu0 0
        %1795 = vmatpush1.bf16.msra.mxu0 0
        %1796 = vmatprep.subr.bf16.mxu0 0
        %1797 = vmatpush1.bf16.msra.mxu0 0
        %1798 = vmatprep.subr.bf16.mxu0 0
        %1799 = vmatpush1.bf16.msra.mxu0 0
        %1800 = vmatprep.subr.bf16.mxu0 0
        %1801 = vmatpush1.bf16.msra.mxu0 0
        %1802 = vmatprep.subr.bf16.mxu0 0
        %1803 = vmatpush1.bf16.msra.mxu0 0
        %1804 = vmatprep.subr.bf16.mxu0 0
        %1805 = vmatpush1.bf16.msra.mxu0 0
        %1806 = vmatprep.subr.bf16.mxu0 0
        %1807 = vmatpush1.bf16.msra.mxu0 0
        %1808 = vmatprep.subr.bf16.mxu0 0
        %1809 = vmatpush1.bf16.msra.mxu0 0
        %1810 = vmatprep.subr.bf16.mxu0 0
        %1811 = vmatpush1.bf16.msra.mxu0 0
        %1812 = vmatprep.subr.bf16.mxu0 0
        %1813 = vmatpush1.bf16.msra.mxu0 0
        %1814 = vmatprep.subr.bf16.mxu0 0
        %1815 = vmatpush1.bf16.msra.mxu0 0
        %1816 = vmatprep.subr.bf16.mxu0 0
        %1817 = vmatpush1.bf16.msra.mxu0 0
        %1818 = vmatprep.subr.bf16.mxu0 0
        %1819 = vmatpush1.bf16.msra.mxu0 0
        %1820 = vmatprep.subr.bf16.mxu0 0
        %1821 = vmatpush1.bf16.msra.mxu0 0
        %1822 = vmatprep.mubr.bf16.mxu0 0
        %1823 = vmatmul.mubr.bf16.gmra.mrb[0].mxu0 %v1788
        %v1824 = vpop.f32.mrb[0].mxu0
        %v1825 = vadd.f32 %v1773, %v1824
        %v1826 = vpop.f32.mrb[0].mxu0
        %v1827 = vpop.f32.mrb[0].mxu0
        %v1828 = vpop.f32.mrb[0].mxu0
        %1829 = vdwg.mxu0
        %v1830 = vmul.f32 %v1825, 0.35355338
        %1832 = vrot.lane.b32.xlu0 %v1830, 120
        %v1833 = vpop.permute.xlu0 %1832
        %1835 = vrot.lane.b32.xlu0 %v1830, 112
        %v1836 = vpop.permute.xlu0 %1835
        %1838 = vrot.lane.b32.xlu0 %v1830, 104
        %v1839 = vpop.permute.xlu0 %1838
        %v1841 = vpack.c.bf16 %v1830, %v1830
        %v1842 = vpack.c.bf16 %v1833, %v1833
        %v1843 = vpack.c.bf16 %v1836, %v1836
        %v1844 = vpack.c.bf16 %v1839, %v1839
        %v1845 = vld [vmem:[#allocation5] sm:$0xff]
        %v1846 = vld [vmem:[#allocation5 + $0x8] sm:$0xff]
        %v1847 = vld [vmem:[#allocation5 + $0x10] sm:$0xff]
        %v1848 = vld [vmem:[#allocation5 + $0x18] sm:$0xff]
        %v1850 = vlaneseq
        %v1851 = vshrl.u32 %v1850, 7
        %v1852 = vsub.s32 0, %v1851
        %v1853 = vrot.slane %v1762, %v1852
        %v1856 = vsel %vm1224, %v1841, 0
        %v1859 = vsel %vm1224, %v1845, 0
        %1861 = vmatprep.subr.bf16.mxu0 0
        %1862 = vmatpush1.bf16.xpose.msra.mxu0 %v1859
        %1863 = vmatprep.subr.bf16.mxu0 0
        %1864 = vmatpush1.bf16.xpose.msra.mxu0 0
        %1865 = vmatprep.subr.bf16.mxu0 0
        %1866 = vmatpush1.bf16.xpose.msra.mxu0 0
        %1867 = vmatprep.subr.bf16.mxu0 0
        %1868 = vmatpush1.bf16.xpose.msra.mxu0 0
        %1869 = vmatprep.subr.bf16.mxu0 0
        %1870 = vmatpush1.bf16.xpose.msra.mxu0 0
        %1871 = vmatprep.subr.bf16.mxu0 0
        %1872 = vmatpush1.bf16.xpose.msra.mxu0 0
        %1873 = vmatprep.subr.bf16.mxu0 0
        %1874 = vmatpush1.bf16.xpose.msra.mxu0 0
        %1875 = vmatprep.subr.bf16.mxu0 0
        %1876 = vmatpush1.bf16.xpose.msra.mxu0 0
        %1877 = vmatprep.subr.bf16.mxu0 0
        %1878 = vmatpush1.bf16.xpose.msra.mxu0 0
        %1879 = vmatprep.subr.bf16.mxu0 0
        %1880 = vmatpush1.bf16.xpose.msra.mxu0 0
        %1881 = vmatprep.subr.bf16.mxu0 0
        %1882 = vmatpush1.bf16.xpose.msra.mxu0 0
        %1883 = vmatprep.subr.bf16.mxu0 0
        %1884 = vmatpush1.bf16.xpose.msra.mxu0 0
        %1885 = vmatprep.subr.bf16.mxu0 0
        %1886 = vmatpush1.bf16.xpose.msra.mxu0 0
        %1887 = vmatprep.subr.bf16.mxu0 0
        %1888 = vmatpush1.bf16.xpose.msra.mxu0 0
        %1889 = vmatprep.subr.bf16.mxu0 0
        %1890 = vmatpush1.bf16.xpose.msra.mxu0 0
        %1891 = vmatprep.subr.bf16.mxu0 0
        %1892 = vmatpush1.bf16.xpose.msra.mxu0 0
        %1893 = vmatprep.mubr.bf16.mxu0 0
        %1894 = vmatmul.mubr.bf16.gmra.mrb[0].mxu0 %v1856
        %v1895 = vpop.f32.mrb[0].mxu0
        %v1896 = vadd.f32 %v1853, %v1895
        %v1897 = vpop.f32.mrb[0].mxu0
        %v1898 = vpop.f32.mrb[0].mxu0
        %v1899 = vpop.f32.mrb[0].mxu0
        %1900 = vdwg.mxu0
        %v1902 = vsel %vm1224, %v1842, 0
        %v1905 = vsel %vm1224, %v1846, 0
        %1907 = vmatprep.subr.bf16.mxu0 0
        %1908 = vmatpush1.bf16.xpose.msra.mxu0 %v1905
        %1909 = vmatprep.subr.bf16.mxu0 0
        %1910 = vmatpush1.bf16.xpose.msra.mxu0 0
        %1911 = vmatprep.subr.bf16.mxu0 0
        %1912 = vmatpush1.bf16.xpose.msra.mxu0 0
        %1913 = vmatprep.subr.bf16.mxu0 0
        %1914 = vmatpush1.bf16.xpose.msra.mxu0 0
        %1915 = vmatprep.subr.bf16.mxu0 0
        %1916 = vmatpush1.bf16.xpose.msra.mxu0 0
        %1917 = vmatprep.subr.bf16.mxu0 0
        %1918 = vmatpush1.bf16.xpose.msra.mxu0 0
        %1919 = vmatprep.subr.bf16.mxu0 0
        %1920 = vmatpush1.bf16.xpose.msra.mxu0 0
        %1921 = vmatprep.subr.bf16.mxu0 0
        %1922 = vmatpush1.bf16.xpose.msra.mxu0 0
        %1923 = vmatprep.subr.bf16.mxu0 0
        %1924 = vmatpush1.bf16.xpose.msra.mxu0 0
        %1925 = vmatprep.subr.bf16.mxu0 0
        %1926 = vmatpush1.bf16.xpose.msra.mxu0 0
        %1927 = vmatprep.subr.bf16.mxu0 0
        %1928 = vmatpush1.bf16.xpose.msra.mxu0 0
        %1929 = vmatprep.subr.bf16.mxu0 0
        %1930 = vmatpush1.bf16.xpose.msra.mxu0 0
        %1931 = vmatprep.subr.bf16.mxu0 0
        %1932 = vmatpush1.bf16.xpose.msra.mxu0 0
        %1933 = vmatprep.subr.bf16.mxu0 0
        %1934 = vmatpush1.bf16.xpose.msra.mxu0 0
        %1935 = vmatprep.subr.bf16.mxu0 0
        %1936 = vmatpush1.bf16.xpose.msra.mxu0 0
        %1937 = vmatprep.subr.bf16.mxu0 0
        %1938 = vmatpush1.bf16.xpose.msra.mxu0 0
        %1939 = vmatprep.mubr.bf16.mxu0 0
        %1940 = vmatmul.mubr.bf16.gmra.mrb[0].mxu0 %v1902
        %v1941 = vpop.f32.mrb[0].mxu0
        %v1942 = vadd.f32 %v1853, %v1941
        %v1943 = vpop.f32.mrb[0].mxu0
        %v1944 = vpop.f32.mrb[0].mxu0
        %v1945 = vpop.f32.mrb[0].mxu0
        %1946 = vdwg.mxu0
        %v1948 = vsel %vm1224, %v1843, 0
        %v1951 = vsel %vm1224, %v1847, 0
        %1953 = vmatprep.subr.bf16.mxu0 0
        %1954 = vmatpush1.bf16.xpose.msra.mxu0 %v1951
        %1955 = vmatprep.subr.bf16.mxu0 0
        %1956 = vmatpush1.bf16.xpose.msra.mxu0 0
        %1957 = vmatprep.subr.bf16.mxu0 0
        %1958 = vmatpush1.bf16.xpose.msra.mxu0 0
        %1959 = vmatprep.subr.bf16.mxu0 0
        %1960 = vmatpush1.bf16.xpose.msra.mxu0 0
        %1961 = vmatprep.subr.bf16.mxu0 0
        %1962 = vmatpush1.bf16.xpose.msra.mxu0 0
        %1963 = vmatprep.subr.bf16.mxu0 0
        %1964 = vmatpush1.bf16.xpose.msra.mxu0 0
        %1965 = vmatprep.subr.bf16.mxu0 0
        %1966 = vmatpush1.bf16.xpose.msra.mxu0 0
        %1967 = vmatprep.subr.bf16.mxu0 0
        %1968 = vmatpush1.bf16.xpose.msra.mxu0 0
        %1969 = vmatprep.subr.bf16.mxu0 0
        %1970 = vmatpush1.bf16.xpose.msra.mxu0 0
        %1971 = vmatprep.subr.bf16.mxu0 0
        %1972 = vmatpush1.bf16.xpose.msra.mxu0 0
        %1973 = vmatprep.subr.bf16.mxu0 0
        %1974 = vmatpush1.bf16.xpose.msra.mxu0 0
        %1975 = vmatprep.subr.bf16.mxu0 0
        %1976 = vmatpush1.bf16.xpose.msra.mxu0 0
        %1977 = vmatprep.subr.bf16.mxu0 0
        %1978 = vmatpush1.bf16.xpose.msra.mxu0 0
        %1979 = vmatprep.subr.bf16.mxu0 0
        %1980 = vmatpush1.bf16.xpose.msra.mxu0 0
        %1981 = vmatprep.subr.bf16.mxu0 0
        %1982 = vmatpush1.bf16.xpose.msra.mxu0 0
        %1983 = vmatprep.subr.bf16.mxu0 0
        %1984 = vmatpush1.bf16.xpose.msra.mxu0 0
        %1985 = vmatprep.mubr.bf16.mxu0 0
        %1986 = vmatmul.mubr.bf16.gmra.mrb[0].mxu0 %v1948
        %v1987 = vpop.f32.mrb[0].mxu0
        %v1988 = vadd.f32 %v1853, %v1987
        %v1989 = vpop.f32.mrb[0].mxu0
        %v1990 = vpop.f32.mrb[0].mxu0
        %v1991 = vpop.f32.mrb[0].mxu0
        %1992 = vdwg.mxu0
        %v1994 = vsel %vm1224, %v1844, 0
        %v1997 = vsel %vm1224, %v1848, 0
        %1999 = vmatprep.subr.bf16.mxu0 0
        %2000 = vmatpush1.bf16.xpose.msra.mxu0 %v1997
        %2001 = vmatprep.subr.bf16.mxu0 0
        %2002 = vmatpush1.bf16.xpose.msra.mxu0 0
        %2003 = vmatprep.subr.bf16.mxu0 0
        %2004 = vmatpush1.bf16.xpose.msra.mxu0 0
        %2005 = vmatprep.subr.bf16.mxu0 0
        %2006 = vmatpush1.bf16.xpose.msra.mxu0 0
        %2007 = vmatprep.subr.bf16.mxu0 0
        %2008 = vmatpush1.bf16.xpose.msra.mxu0 0
        %2009 = vmatprep.subr.bf16.mxu0 0
        %2010 = vmatpush1.bf16.xpose.msra.mxu0 0
        %2011 = vmatprep.subr.bf16.mxu0 0
        %2012 = vmatpush1.bf16.xpose.msra.mxu0 0
        %2013 = vmatprep.subr.bf16.mxu0 0
        %2014 = vmatpush1.bf16.xpose.msra.mxu0 0
        %2015 = vmatprep.subr.bf16.mxu0 0
        %2016 = vmatpush1.bf16.xpose.msra.mxu0 0
        %2017 = vmatprep.subr.bf16.mxu0 0
        %2018 = vmatpush1.bf16.xpose.msra.mxu0 0
        %2019 = vmatprep.subr.bf16.mxu0 0
        %2020 = vmatpush1.bf16.xpose.msra.mxu0 0
        %2021 = vmatprep.subr.bf16.mxu0 0
        %2022 = vmatpush1.bf16.xpose.msra.mxu0 0
        %2023 = vmatprep.subr.bf16.mxu0 0
        %2024 = vmatpush1.bf16.xpose.msra.mxu0 0
        %2025 = vmatprep.subr.bf16.mxu0 0
        %2026 = vmatpush1.bf16.xpose.msra.mxu0 0
        %2027 = vmatprep.subr.bf16.mxu0 0
        %2028 = vmatpush1.bf16.xpose.msra.mxu0 0
        %2029 = vmatprep.subr.bf16.mxu0 0
        %2030 = vmatpush1.bf16.xpose.msra.mxu0 0
        %2031 = vmatprep.mubr.bf16.mxu0 0
        %2032 = vmatmul.mubr.bf16.gmra.mrb[0].mxu0 %v1994
        %v2033 = vpop.f32.mrb[0].mxu0
        %v2034 = vadd.f32 %v1853, %v2033
        %v2035 = vpop.f32.mrb[0].mxu0
        %v2036 = vpop.f32.mrb[0].mxu0
        %v2037 = vpop.f32.mrb[0].mxu0
        %2038 = vdwg.mxu0
        %v2039 = vsel %vm1659, %v1896, -inf
        %2040 = vmax.xlane.f32.xlu0 %v2039
        %v2041 = vpop.xlane.xlu0 %2040
        %v2042 = vsel %vm1659, %v1942, -inf
        %2043 = vmax.xlane.f32.xlu0 %v2042
        %v2044 = vpop.xlane.xlu0 %2043
        %v2045 = vsel %vm1659, %v1988, -inf
        %2046 = vmax.xlane.f32.xlu0 %v2045
        %v2047 = vpop.xlane.xlu0 %2046
        %v2048 = vsel %vm1659, %v2034, -inf
        %2049 = vmax.xlane.f32.xlu0 %v2048
        %v2050 = vpop.xlane.xlu0 %2049
        %v2051 = vsub.f32 %v1896, %v2041
        %v2052 = vsub.f32 %v1942, %v2044
        %v2053 = vsub.f32 %v1988, %v2047
        %v2054 = vsub.f32 %v2034, %v2050
        %v2055 = vmul.f32 %v2051, 1.442695
        %v2056 = vpow.pop %v2055
        %v2057 = vmul.f32 %v2052, 1.442695
        %v2058 = vpow.pop %v2057
        %v2059 = vmul.f32 %v2053, 1.442695
        %v2060 = vpow.pop %v2059
        %v2061 = vmul.f32 %v2054, 1.442695
        %v2062 = vpow.pop %v2061
        %v2063 = vsel %vm1659, %v2056, 0.0
        %2064 = vadd.xlane.f32.xlu0 %v2063
        %v2065 = vpop.xlane.xlu0 %2064
        %v2066 = vsel %vm1659, %v2058, 0.0
        %2067 = vadd.xlane.f32.xlu0 %v2066
        %v2068 = vpop.xlane.xlu0 %2067
        %v2069 = vsel %vm1659, %v2060, 0.0
        %2070 = vadd.xlane.f32.xlu0 %v2069
        %v2071 = vpop.xlane.xlu0 %2070
        %v2072 = vsel %vm1659, %v2062, 0.0
        %2073 = vadd.xlane.f32.xlu0 %v2072
        %v2074 = vpop.xlane.xlu0 %2073
        %v2075 = vrcp.pop %v2065
        %v2076 = vrcp.pop %v2068
        %v2077 = vrcp.pop %v2071
        %v2078 = vrcp.pop %v2074
        %v2079 = vmul.f32 %v2056, %v2075
        %v2080 = vmul.f32 %v2058, %v2076
        %v2081 = vmul.f32 %v2060, %v2077
        %v2082 = vmul.f32 %v2062, %v2078
        %v2083 = vpack.c.bf16 %v2079, %v2079
        %v2084 = vpack.c.bf16 %v2080, %v2080
        %v2085 = vpack.c.bf16 %v2081, %v2081
        %v2086 = vpack.c.bf16 %v2082, %v2082
        %v2087 = vld [vmem:[#allocation6] sm:$0xff]
        %v2088 = vld [vmem:[#allocation6 + $0x8] sm:$0xff]
        %v2089 = vld [vmem:[#allocation6 + $0x10] sm:$0xff]
        %v2090 = vld [vmem:[#allocation6 + $0x18] sm:$0xff]
        %v2092 = vsel %vm1659, %v2083, 0
        %2094 = vmatprep.subr.bf16.mxu0 0
        %2095 = vmatpush1.bf16.msra.mxu0 %v2087
        %2096 = vmatprep.subr.bf16.mxu0 0
        %2097 = vmatpush1.bf16.msra.mxu0 0
        %2098 = vmatprep.subr.bf16.mxu0 0
        %2099 = vmatpush1.bf16.msra.mxu0 0
        %2100 = vmatprep.subr.bf16.mxu0 0
        %2101 = vmatpush1.bf16.msra.mxu0 0
        %2102 = vmatprep.subr.bf16.mxu0 0
        %2103 = vmatpush1.bf16.msra.mxu0 0
        %2104 = vmatprep.subr.bf16.mxu0 0
        %2105 = vmatpush1.bf16.msra.mxu0 0
        %2106 = vmatprep.subr.bf16.mxu0 0
        %2107 = vmatpush1.bf16.msra.mxu0 0
        %2108 = vmatprep.subr.bf16.mxu0 0
        %2109 = vmatpush1.bf16.msra.mxu0 0
        %2110 = vmatprep.subr.bf16.mxu0 0
        %2111 = vmatpush1.bf16.msra.mxu0 0
        %2112 = vmatprep.subr.bf16.mxu0 0
        %2113 = vmatpush1.bf16.msra.mxu0 0
        %2114 = vmatprep.subr.bf16.mxu0 0
        %2115 = vmatpush1.bf16.msra.mxu0 0
        %2116 = vmatprep.subr.bf16.mxu0 0
        %2117 = vmatpush1.bf16.msra.mxu0 0
        %2118 = vmatprep.subr.bf16.mxu0 0
        %2119 = vmatpush1.bf16.msra.mxu0 0
        %2120 = vmatprep.subr.bf16.mxu0 0
        %2121 = vmatpush1.bf16.msra.mxu0 0
        %2122 = vmatprep.subr.bf16.mxu0 0
        %2123 = vmatpush1.bf16.msra.mxu0 0
        %2124 = vmatprep.subr.bf16.mxu0 0
        %2125 = vmatpush1.bf16.msra.mxu0 0
        %2126 = vmatprep.mubr.bf16.mxu0 0
        %2127 = vmatmul.mubr.bf16.gmra.mrb[0].mxu0 %v2092
        %v2128 = vpop.f32.mrb[0].mxu0
        %v2129 = vadd.f32 0.0, %v2128
        %v2130 = vpop.f32.mrb[0].mxu0
        %v2131 = vpop.f32.mrb[0].mxu0
        %v2132 = vpop.f32.mrb[0].mxu0
        %2133 = vdwg.mxu0
        %v2135 = vsel %vm1659, %v2084, 0
        %2137 = vmatprep.subr.bf16.mxu0 0
        %2138 = vmatpush1.bf16.msra.mxu0 %v2088
        %2139 = vmatprep.subr.bf16.mxu0 0
        %2140 = vmatpush1.bf16.msra.mxu0 0
        %2141 = vmatprep.subr.bf16.mxu0 0
        %2142 = vmatpush1.bf16.msra.mxu0 0
        %2143 = vmatprep.subr.bf16.mxu0 0
        %2144 = vmatpush1.bf16.msra.mxu0 0
        %2145 = vmatprep.subr.bf16.mxu0 0
        %2146 = vmatpush1.bf16.msra.mxu0 0
        %2147 = vmatprep.subr.bf16.mxu0 0
        %2148 = vmatpush1.bf16.msra.mxu0 0
        %2149 = vmatprep.subr.bf16.mxu0 0
        %2150 = vmatpush1.bf16.msra.mxu0 0
        %2151 = vmatprep.subr.bf16.mxu0 0
        %2152 = vmatpush1.bf16.msra.mxu0 0
        %2153 = vmatprep.subr.bf16.mxu0 0
        %2154 = vmatpush1.bf16.msra.mxu0 0
        %2155 = vmatprep.subr.bf16.mxu0 0
        %2156 = vmatpush1.bf16.msra.mxu0 0
        %2157 = vmatprep.subr.bf16.mxu0 0
        %2158 = vmatpush1.bf16.msra.mxu0 0
        %2159 = vmatprep.subr.bf16.mxu0 0
        %2160 = vmatpush1.bf16.msra.mxu0 0
        %2161 = vmatprep.subr.bf16.mxu0 0
        %2162 = vmatpush1.bf16.msra.mxu0 0
        %2163 = vmatprep.subr.bf16.mxu0 0
        %2164 = vmatpush1.bf16.msra.mxu0 0
        %2165 = vmatprep.subr.bf16.mxu0 0
        %2166 = vmatpush1.bf16.msra.mxu0 0
        %2167 = vmatprep.subr.bf16.mxu0 0
        %2168 = vmatpush1.bf16.msra.mxu0 0
        %2169 = vmatprep.mubr.bf16.mxu0 0
        %2170 = vmatmul.mubr.bf16.gmra.mrb[0].mxu0 %v2135
        %v2171 = vpop.f32.mrb[0].mxu0
        %v2172 = vadd.f32 0.0, %v2171
        %v2173 = vpop.f32.mrb[0].mxu0
        %v2174 = vpop.f32.mrb[0].mxu0
        %v2175 = vpop.f32.mrb[0].mxu0
        %2176 = vdwg.mxu0
        %v2178 = vsel %vm1659, %v2085, 0
        %2180 = vmatprep.subr.bf16.mxu0 0
        %2181 = vmatpush1.bf16.msra.mxu0 %v2089
        %2182 = vmatprep.subr.bf16.mxu0 0
        %2183 = vmatpush1.bf16.msra.mxu0 0
        %2184 = vmatprep.subr.bf16.mxu0 0
        %2185 = vmatpush1.bf16.msra.mxu0 0
        %2186 = vmatprep.subr.bf16.mxu0 0
        %2187 = vmatpush1.bf16.msra.mxu0 0
        %2188 = vmatprep.subr.bf16.mxu0 0
        %2189 = vmatpush1.bf16.msra.mxu0 0
        %2190 = vmatprep.subr.bf16.mxu0 0
        %2191 = vmatpush1.bf16.msra.mxu0 0
        %2192 = vmatprep.subr.bf16.mxu0 0
        %2193 = vmatpush1.bf16.msra.mxu0 0
        %2194 = vmatprep.subr.bf16.mxu0 0
        %2195 = vmatpush1.bf16.msra.mxu0 0
        %2196 = vmatprep.subr.bf16.mxu0 0
        %2197 = vmatpush1.bf16.msra.mxu0 0
        %2198 = vmatprep.subr.bf16.mxu0 0
        %2199 = vmatpush1.bf16.msra.mxu0 0
        %2200 = vmatprep.subr.bf16.mxu0 0
        %2201 = vmatpush1.bf16.msra.mxu0 0
        %2202 = vmatprep.subr.bf16.mxu0 0
        %2203 = vmatpush1.bf16.msra.mxu0 0
        %2204 = vmatprep.subr.bf16.mxu0 0
        %2205 = vmatpush1.bf16.msra.mxu0 0
        %2206 = vmatprep.subr.bf16.mxu0 0
        %2207 = vmatpush1.bf16.msra.mxu0 0
        %2208 = vmatprep.subr.bf16.mxu0 0
        %2209 = vmatpush1.bf16.msra.mxu0 0
        %2210 = vmatprep.subr.bf16.mxu0 0
        %2211 = vmatpush1.bf16.msra.mxu0 0
        %2212 = vmatprep.mubr.bf16.mxu0 0
        %2213 = vmatmul.mubr.bf16.gmra.mrb[0].mxu0 %v2178
        %v2214 = vpop.f32.mrb[0].mxu0
        %v2215 = vadd.f32 0.0, %v2214
        %v2216 = vpop.f32.mrb[0].mxu0
        %v2217 = vpop.f32.mrb[0].mxu0
        %v2218 = vpop.f32.mrb[0].mxu0
        %2219 = vdwg.mxu0
        %v2221 = vsel %vm1659, %v2086, 0
        %2223 = vmatprep.subr.bf16.mxu0 0
        %2224 = vmatpush1.bf16.msra.mxu0 %v2090
        %2225 = vmatprep.subr.bf16.mxu0 0
        %2226 = vmatpush1.bf16.msra.mxu0 0
        %2227 = vmatprep.subr.bf16.mxu0 0
        %2228 = vmatpush1.bf16.msra.mxu0 0
        %2229 = vmatprep.subr.bf16.mxu0 0
        %2230 = vmatpush1.bf16.msra.mxu0 0
        %2231 = vmatprep.subr.bf16.mxu0 0
        %2232 = vmatpush1.bf16.msra.mxu0 0
        %2233 = vmatprep.subr.bf16.mxu0 0
        %2234 = vmatpush1.bf16.msra.mxu0 0
        %2235 = vmatprep.subr.bf16.mxu0 0
        %2236 = vmatpush1.bf16.msra.mxu0 0
        %2237 = vmatprep.subr.bf16.mxu0 0
        %2238 = vmatpush1.bf16.msra.mxu0 0
        %2239 = vmatprep.subr.bf16.mxu0 0
        %2240 = vmatpush1.bf16.msra.mxu0 0
        %2241 = vmatprep.subr.bf16.mxu0 0
        %2242 = vmatpush1.bf16.msra.mxu0 0
        %2243 = vmatprep.subr.bf16.mxu0 0
        %2244 = vmatpush1.bf16.msra.mxu0 0
        %2245 = vmatprep.subr.bf16.mxu0 0
        %2246 = vmatpush1.bf16.msra.mxu0 0
        %2247 = vmatprep.subr.bf16.mxu0 0
        %2248 = vmatpush1.bf16.msra.mxu0 0
        %2249 = vmatprep.subr.bf16.mxu0 0
        %2250 = vmatpush1.bf16.msra.mxu0 0
        %2251 = vmatprep.subr.bf16.mxu0 0
        %2252 = vmatpush1.bf16.msra.mxu0 0
        %2253 = vmatprep.subr.bf16.mxu0 0
        %2254 = vmatpush1.bf16.msra.mxu0 0
        %2255 = vmatprep.mubr.bf16.mxu0 0
        %2256 = vmatmul.mubr.bf16.gmra.mrb[0].mxu0 %v2221
        %v2257 = vpop.f32.mrb[0].mxu0
        %v2258 = vadd.f32 0.0, %v2257
        %v2259 = vpop.f32.mrb[0].mxu0
        %v2260 = vpop.f32.mrb[0].mxu0
        %v2261 = vpop.f32.mrb[0].mxu0
        %2262 = vdwg.mxu0
        %2264 = vrot.lane.b32.xlu0 %v2172, 8
        %v2265 = vpop.permute.xlu0 %2264
        %2268 = vrot.lane.b32.xlu0 %v2215, 16
        %v2269 = vpop.permute.xlu0 %2268
        %2272 = vrot.lane.b32.xlu0 %v2258, 24
        %v2273 = vpop.permute.xlu0 %2272
        %v2275 = vsel %vm1224, %v2129, %v2265
        %v2276 = vsel %vm1659, %v2275, %v2269
        %v2277 = vsel %vm1661, %v2276, %v2273
        %v2278 = vpack.c.bf16 %v2277, %v2277
        %v2279 = vld [vmem:[%s13] sm:$0xf]
        %v2280 = vld [vmem:[%s13 + $0x4] sm:$0xf]
        %v2281 = vld [vmem:[%s13 + $0x8] sm:$0xf]
        %v2282 = vld [vmem:[%s13 + $0xc] sm:$0xf]
        %v2283 = vld [vmem:[#allocation24] sm:$0x1]
        %v2285 = vlaneseq
        %v2286 = vshrl.u32 %v2285, 7
        %v2287 = vsub.s32 0, %v2286
        %v2288 = vrot.slane %v2283, %v2287
        %v2294 = vunpack.c.l.b16 %v2279
        %v2295 = vunpack.c.l.b16 %v2280
        %v2296 = vunpack.c.l.b16 %v2281
        %v2297 = vunpack.c.l.b16 %v2282
        %v2298 = vpack.c.b16 %v2295, %v2294
        %v2299 = vpack.c.b16 %v2297, %v2296
        %v2303 = vsel %vm1687, %v2278, 0
        %2305 = vmatprep.subr.bf16.mxu0 0
        %2306 = vmatpush1.bf16.msra.mxu0 %v2298
        %2307 = vmatprep.subr.bf16.mxu0 0
        %2308 = vmatpush1.bf16.msra.mxu0 %v2299
        %2309 = vmatprep.subr.bf16.mxu0 0
        %2310 = vmatpush1.bf16.msra.mxu0 0
        %2311 = vmatprep.subr.bf16.mxu0 0
        %2312 = vmatpush1.bf16.msra.mxu0 0
        %2313 = vmatprep.subr.bf16.mxu0 0
        %2314 = vmatpush1.bf16.msra.mxu0 0
        %2315 = vmatprep.subr.bf16.mxu0 0
        %2316 = vmatpush1.bf16.msra.mxu0 0
        %2317 = vmatprep.subr.bf16.mxu0 0
        %2318 = vmatpush1.bf16.msra.mxu0 0
        %2319 = vmatprep.subr.bf16.mxu0 0
        %2320 = vmatpush1.bf16.msra.mxu0 0
        %2321 = vmatprep.subr.bf16.mxu0 0
        %2322 = vmatpush1.bf16.msra.mxu0 0
        %2323 = vmatprep.subr.bf16.mxu0 0
        %2324 = vmatpush1.bf16.msra.mxu0 0
        %2325 = vmatprep.subr.bf16.mxu0 0
        %2326 = vmatpush1.bf16.msra.mxu0 0
        %2327 = vmatprep.subr.bf16.mxu0 0
        %2328 = vmatpush1.bf16.msra.mxu0 0
        %2329 = vmatprep.subr.bf16.mxu0 0
        %2330 = vmatpush1.bf16.msra.mxu0 0
        %2331 = vmatprep.subr.bf16.mxu0 0
        %2332 = vmatpush1.bf16.msra.mxu0 0
        %2333 = vmatprep.subr.bf16.mxu0 0
        %2334 = vmatpush1.bf16.msra.mxu0 0
        %2335 = vmatprep.subr.bf16.mxu0 0
        %2336 = vmatpush1.bf16.msra.mxu0 0
        %2337 = vmatprep.mubr.bf16.mxu0 0
        %2338 = vmatmul.mubr.bf16.gmra.mrb[0].mxu0 %v2303
        %v2339 = vpop.f32.mrb[0].mxu0
        %v2340 = vadd.f32 %v2288, %v2339
        %v2341 = vpop.f32.mrb[0].mxu0
        %v2342 = vpop.f32.mrb[0].mxu0
        %v2343 = vpop.f32.mrb[0].mxu0
        %2344 = vdwg.mxu0
        %v2345 = vadd.f32 %v2340, %v1761
        %v2346 = vsel %vm1687, %v2345, 0.0
        %2347 = vadd.xlane.f32.xlu0 %v2346
        %v2348 = vpop.xlane.xlu0 %2347
        %v2349 = vmul.f32 %v2348, %v1735
        %v2350 = vsub.f32 %v2345, %v2349
        %v2351 = vmul.f32 %v2350, %v2350
        %v2352 = vsel %vm1687, %v2351, 0.0
        %2353 = vadd.xlane.f32.xlu0 %v2352
        %v2354 = vpop.xlane.xlu0 %2353
        %v2355 = vmul.f32 %v2354, %v1735
        %v2356 = vadd.f32 %v2355, 1e-12
        %v2357 = vrsqrt.pop %v2356
        %v2358 = vmul.f32 %v2350, %v2357
        %v2359 = vld [vmem:[#allocation25] sm:$0x1]
        %v2361 = vlaneseq
        %v2362 = vshrl.u32 %v2361, 7
        %v2363 = vsub.s32 0, %v2362
        %v2364 = vrot.slane %v2359, %v2363
        %v2366 = vmul.f32 %v2358, %v2364
        %v2367 = vld [vmem:[#allocation27] sm:$0x1]
        %v2369 = vlaneseq
        %v2370 = vshrl.u32 %v2369, 7
        %v2371 = vsub.s32 0, %v2370
        %v2372 = vrot.slane %v2367, %v2371
        %v2374 = vadd.f32 %v2366, %v2372
        %v2375 = vpack.c.bf16 %v2374, %v2374
        %v2376 = vld [vmem:[%s17] sm:$0xf]
        %v2377 = vld [vmem:[%s17 + $0x4] sm:$0xf]
        %v2378 = vld [vmem:[%s17 + $0x8] sm:$0xf]
        %v2379 = vld [vmem:[%s17 + $0xc] sm:$0xf]
        %v2380 = vld [vmem:[%s18] sm:$0x1]
        %v2382 = vlaneseq
        %v2383 = vshrl.u32 %v2382, 7
        %v2384 = vsub.s32 0, %v2383
        %v2385 = vrot.slane %v2380, %v2384
        %v2391 = vunpack.c.l.b16 %v2376
        %v2392 = vunpack.c.l.b16 %v2377
        %v2393 = vunpack.c.l.b16 %v2378
        %v2394 = vunpack.c.l.b16 %v2379
        %v2395 = vpack.c.b16 %v2392, %v2391
        %v2396 = vpack.c.b16 %v2394, %v2393
        %v2400 = vsel %vm1687, %v2375, 0
        %2402 = vmatprep.subr.bf16.mxu0 0
        %2403 = vmatpush1.bf16.msra.mxu0 %v2395
        %2404 = vmatprep.subr.bf16.mxu0 0
        %2405 = vmatpush1.bf16.msra.mxu0 %v2396
        %2406 = vmatprep.subr.bf16.mxu0 0
        %2407 = vmatpush1.bf16.msra.mxu0 0
        %2408 = vmatprep.subr.bf16.mxu0 0
        %2409 = vmatpush1.bf16.msra.mxu0 0
        %2410 = vmatprep.subr.bf16.mxu0 0
        %2411 = vmatpush1.bf16.msra.mxu0 0
        %2412 = vmatprep.subr.bf16.mxu0 0
        %2413 = vmatpush1.bf16.msra.mxu0 0
        %2414 = vmatprep.subr.bf16.mxu0 0
        %2415 = vmatpush1.bf16.msra.mxu0 0
        %2416 = vmatprep.subr.bf16.mxu0 0
        %2417 = vmatpush1.bf16.msra.mxu0 0
        %2418 = vmatprep.subr.bf16.mxu0 0
        %2419 = vmatpush1.bf16.msra.mxu0 0
        %2420 = vmatprep.subr.bf16.mxu0 0
        %2421 = vmatpush1.bf16.msra.mxu0 0
        %2422 = vmatprep.subr.bf16.mxu0 0
        %2423 = vmatpush1.bf16.msra.mxu0 0
        %2424 = vmatprep.subr.bf16.mxu0 0
        %2425 = vmatpush1.bf16.msra.mxu0 0
        %2426 = vmatprep.subr.bf16.mxu0 0
        %2427 = vmatpush1.bf16.msra.mxu0 0
        %2428 = vmatprep.subr.bf16.mxu0 0
        %2429 = vmatpush1.bf16.msra.mxu0 0
        %2430 = vmatprep.subr.bf16.mxu0 0
        %2431 = vmatpush1.bf16.msra.mxu0 0
        %2432 = vmatprep.subr.bf16.mxu0 0
        %2433 = vmatpush1.bf16.msra.mxu0 0
        %2434 = vmatprep.mubr.bf16.mxu0 0
        %2435 = vmatmul.mubr.bf16.gmra.mrb[0].mxu0 %v2400
        %v2436 = vpop.f32.mrb[0].mxu0
        %v2437 = vadd.f32 %v2385, %v2436
        %v2438 = vpop.f32.mrb[0].mxu0
        %v2439 = vpop.f32.mrb[0].mxu0
        %v2440 = vpop.f32.mrb[0].mxu0
        %2441 = vdwg.mxu0
        %v2442 = vmul.f32 %v2437, 0.5
        %v2443 = vmul.f32 %v2437, 0.70710677
        %v2444 = verf.f32.pop %v2443
        %v2445 = vadd.f32 %v2444, 1.0
        %v2446 = vmul.f32 %v2442, %v2445
        %v2447 = vpack.c.bf16 %v2446, %v2446
        %v2448 = vld [vmem:[%s19] sm:$0xf]
        %v2449 = vld [vmem:[%s19 + $0x4] sm:$0xf]
        %v2450 = vld [vmem:[%s19 + $0x8] sm:$0xf]
        %v2451 = vld [vmem:[%s19 + $0xc] sm:$0xf]
        %v2452 = vld [vmem:[%s19 + $0x10] sm:$0xf]
        %v2453 = vld [vmem:[%s19 + $0x14] sm:$0xf]
        %v2454 = vld [vmem:[%s19 + $0x18] sm:$0xf]
        %v2455 = vld [vmem:[%s19 + $0x1c] sm:$0xf]
        %v2456 = vld [vmem:[%s20] sm:$0x1]
        %v2458 = vlaneseq
        %v2459 = vshrl.u32 %v2458, 7
        %v2460 = vsub.s32 0, %v2459
        %v2461 = vrot.slane %v2456, %v2460
        %v2471 = vunpack.c.l.b16 %v2448
        %v2472 = vunpack.c.l.b16 %v2449
        %v2473 = vunpack.c.l.b16 %v2450
        %v2474 = vunpack.c.l.b16 %v2451
        %v2475 = vunpack.c.l.b16 %v2452
        %v2476 = vunpack.c.l.b16 %v2453
        %v2477 = vunpack.c.l.b16 %v2454
        %v2478 = vunpack.c.l.b16 %v2455
        %v2479 = vpack.c.b16 %v2472, %v2471
        %v2480 = vpack.c.b16 %v2474, %v2473
        %v2481 = vpack.c.b16 %v2476, %v2475
        %v2482 = vpack.c.b16 %v2478, %v2477
        %vm2487 = vcmask 523264
        %v2489 = vsel %vm2487, %v2447, 0
        %2491 = vmatprep.subr.bf16.mxu0 0
        %2492 = vmatpush1.bf16.msra.mxu0 %v2479
        %2493 = vmatprep.subr.bf16.mxu0 0
        %2494 = vmatpush1.bf16.msra.mxu0 %v2480
        %2495 = vmatprep.subr.bf16.mxu0 0
        %2496 = vmatpush1.bf16.msra.mxu0 %v2481
        %2497 = vmatprep.subr.bf16.mxu0 0
        %2498 = vmatpush1.bf16.msra.mxu0 %v2482
        %2499 = vmatprep.subr.bf16.mxu0 0
        %2500 = vmatpush1.bf16.msra.mxu0 0
        %2501 = vmatprep.subr.bf16.mxu0 0
        %2502 = vmatpush1.bf16.msra.mxu0 0
        %2503 = vmatprep.subr.bf16.mxu0 0
        %2504 = vmatpush1.bf16.msra.mxu0 0
        %2505 = vmatprep.subr.bf16.mxu0 0
        %2506 = vmatpush1.bf16.msra.mxu0 0
        %2507 = vmatprep.subr.bf16.mxu0 0
        %2508 = vmatpush1.bf16.msra.mxu0 0
        %2509 = vmatprep.subr.bf16.mxu0 0
        %2510 = vmatpush1.bf16.msra.mxu0 0
        %2511 = vmatprep.subr.bf16.mxu0 0
        %2512 = vmatpush1.bf16.msra.mxu0 0
        %2513 = vmatprep.subr.bf16.mxu0 0
        %2514 = vmatpush1.bf16.msra.mxu0 0
        %2515 = vmatprep.subr.bf16.mxu0 0
        %2516 = vmatpush1.bf16.msra.mxu0 0
        %2517 = vmatprep.subr.bf16.mxu0 0
        %2518 = vmatpush1.bf16.msra.mxu0 0
        %2519 = vmatprep.subr.bf16.mxu0 0
        %2520 = vmatpush1.bf16.msra.mxu0 0
        %2521 = vmatprep.subr.bf16.mxu0 0
        %2522 = vmatpush1.bf16.msra.mxu0 0
        %2523 = vmatprep.mubr.bf16.mxu0 0
        %2524 = vmatmul.mubr.bf16.gmra.mrb[0].mxu0 %v2489
        %v2525 = vpop.f32.mrb[0].mxu0
        %v2526 = vadd.f32 %v2461, %v2525
        %v2527 = vpop.f32.mrb[0].mxu0
        %v2528 = vpop.f32.mrb[0].mxu0
        %v2529 = vpop.f32.mrb[0].mxu0
        %2530 = vdwg.mxu0
        %v2531 = vadd.f32 %v2526, %v2374
        %v2532 = vsel %vm1687, %v2531, 0.0
        %2533 = vadd.xlane.f32.xlu0 %v2532
        %v2534 = vpop.xlane.xlu0 %2533
        %v2535 = vmul.f32 %v2534, %v1735
        %v2536 = vsub.f32 %v2531, %v2535
        %v2537 = vmul.f32 %v2536, %v2536
        %v2538 = vsel %vm1687, %v2537, 0.0
        %2539 = vadd.xlane.f32.xlu0 %v2538
        %v2540 = vpop.xlane.xlu0 %2539
        %v2541 = vmul.f32 %v2540, %v1735
        %v2542 = vadd.f32 %v2541, 1e-12
        %v2543 = vrsqrt.pop %v2542
        %v2544 = vmul.f32 %v2536, %v2543
        %v2545 = vld [vmem:[%s21] sm:$0x1]
        %v2547 = vlaneseq
        %v2548 = vshrl.u32 %v2547, 7
        %v2549 = vsub.s32 0, %v2548
        %v2550 = vrot.slane %v2545, %v2549
        %v2552 = vmul.f32 %v2544, %v2550
        %v2553 = vld [vmem:[%s22] sm:$0x1]
        %v2555 = vlaneseq
        %v2556 = vshrl.u32 %v2555, 7
        %v2557 = vsub.s32 0, %v2556
        %v2558 = vrot.slane %v2553, %v2557
        %v2560 = vadd.f32 %v2552, %v2558
        %2561 = vst.msk [vmem:[%s920] sm:$0xff] %vm1687, %v2560
        %s2562 = sand.u32 %s566, 1
        %s2563 = scalar_lea.sflag [#allocation9], %s2562
        %s2564 = sand.u32 %s566, 1
        %s2565 = smul.addr %s2564, 8
        %s2566 = scalar_lea.vmem [#allocation28], %s2565
        // Predicated region
        $region169: #{tpu_custom_call.1} parent=111 // pred_check
          %p2567 = pneg %p576
        $region170: #{tpu_custom_call.1} parent=111 // pred_check_branch
          %2569 = sbr.rel (%p2567) target = $region172
        $region171: #{tpu_custom_call.1} parent=111 // pred_region
          %s2571 = ssub.s32 128, 128
          %2572 = vsyncadd %s2563, %s2571
          %s2573 = sadd.s32 %s51, %s50
          %s2574 = smul.addr %s2573, 128
          %s2575 = scalar_lea.hbm %s23, %s2574
          %s2577 = sshll.u32 %s2566, 4
          %s2578 = int_to_ptr.vmem [resolvable:$true] %s2577
          %2580 = dma.vmem_to_hbm [thread:$0]  %s2578, 128, %s2575, %s2563
        $region172: #{tpu_custom_call.1} parent=111 // pred_fallthru
          _
      $region112: #{tpu_custom_call.1} parent=5 // pred_fallthru
        _
      %p2581 = scmp.le.s32.totalorder 2, %s41
      // Predicated region
      $region173: #{tpu_custom_call.1} parent=5 // pred_check
        %p2582 = pneg %p2581
      $region174: #{tpu_custom_call.1} parent=5 // pred_check_branch
        %2584 = sbr.rel (%p2582) target = $region176
      $region175: #{tpu_custom_call.1} parent=5 // pred_region
        %s2585 = ssub.s32 %s41, 2
        // Predicated region
        $region177: #{tpu_custom_call.1} parent=175 // pred_check
          %p2586 = pneg %p582
        $region178: #{tpu_custom_call.1} parent=175 // pred_check_branch
          %2588 = sbr.rel (%p2586) target = $region180
        $region179: #{tpu_custom_call.1} parent=175 // pred_region
          %s2589 = sand.u32 %s567, 1
          %s2590 = scalar_lea.sflag [#allocation9], %s2589
          %s2591 = sand.u32 %s567, 1
          %s2592 = smul.addr %s2591, 8
          %s2593 = scalar_lea.vmem [#allocation28], %s2592
          %2594 = dma.done %s2590, 128
        $region180: #{tpu_custom_call.1} parent=175 // pred_fallthru
          _
      $region176: #{tpu_custom_call.1} parent=5 // pred_fallthru
        _
    $region6: #{tpu_custom_call.1} parent=1 // loop_footer
      %s45 = sadd.s32 1, %s41
    $region7: #{tpu_custom_call.1} parent=1 // loop_footer_branch
      %40 = sbr.rel target = $region3
    $region8: #{tpu_custom_call.1} parent=1 // loop_exit
      _
    %2595 = vsyncpa [#allocation8], 1
    %s2596 = scalar_lea.sflag [#allocation8], 1
    %2597 = vsyncpa %s2596, 1
    %2598 = vsyncpa [#allocation11], 1
    %2599 = vsyncpa [#allocation14], 1
    %2600 = vsyncpa [#allocation17], 1
    %2601 = vsyncpa [#allocation20], 1
    %2602 = vsyncpa [#allocation23], 1
    %2603 = vsyncpa [#allocation26], 1
    %2604 = vsyncpa [#allocation9], 1
    %s2605 = scalar_lea.sflag [#allocation9], 1
    %2606 = vsyncpa %s2605, 1

</llo_original>
